<compile_context>
chip_gen: v7x
topology: tpu7x:2x2x1
jax: 0.10.0
libtpu: 0.0.40
codegen_flags: <defaults>
</compile_context>

<pallas_src>
import functools

import numpy as np
import jax
import jax.numpy as jnp
from jax.experimental import pallas as pl
from jax.experimental.pallas import tpu as pltpu

D_MODEL = 32
NHEAD = 4
DIM_FF = 64
SEQ = 8
BATCH = 2
LN_EPS = 1e-5
NEG_INF = -1e9

# Row layout of the packed "vecs" slab (every row is lane-packed [branch1 | branch2],
# zero-padded to max(2E, 2FF) lanes).
_ROW_BO_SELF = 0    # out_proj bias:  self_attn1 | self_attn2
_ROW_BO_CROSS = 1   # out_proj bias:  multihead_attn1 | multihead_attn2
_ROW_BF1 = 2        # FFN bias 1:     linear11 | linear21
_ROW_BF2 = 3        # FFN bias 2:     linear12 | linear22
_ROW_LN_G = 4       # LN gamma rows:  (norm11|norm21), (norm12|norm22), (norm13|norm23)
_ROW_LN_B = 7       # LN beta rows:   same pairing
_VEC_ROWS = 10


# ------------------------------ fused kernel ------------------------------

def _fusion_kernel(*refs, use_pos, E, H, FF):
    if use_pos:
        (x_ref, pos_ref, mask_ref, wa_ref, wf1_ref, wf2_ref, vec_ref,
         out1_ref, out2_ref) = refs
    else:
        (x_ref, mask_ref, wa_ref, wf1_ref, wf2_ref, vec_ref,
         out1_ref, out2_ref) = refs
        pos_ref = None

    f32 = jnp.float32
    R = x_ref.shape[0]          # L * B flattened tokens
    E2 = 2 * E
    FF2 = 2 * FF
    hd = E // H
    G = 2 * H                   # (branch, head) groups
    # TODO(synk): reference scales scores by 1/sqrt(var(d_k)) which is degenerate
    # (variance of the scalar d_k); standard 1/sqrt(d_k) scaling is used instead.
    scale = 1.0 / (hd ** 0.5)

    # Additive attention mask, identical for every (branch, head) block, precomputed by the
    # wrapper for the interleaved row order (row r belongs to batch r % B).
    attn_mask = mask_ref[...]                                      # (G*R, R)

    def vrow(r, width):
        return vec_ref[r:r + 1, :width]                            # (1, width)

    def mha2(q_in, k_in, v_in, widx):
        """Both branches' multi-head attention at once on lane-packed (R, 2E) activations.

        widx = 0 -> (self_attn1 | self_attn2); widx = 1 -> (multihead_attn1 | multihead_attn2).
        Weights are block-diagonal (2E, 2E) so the two branches remain independent.
        """
        q = jnp.dot(q_in, wa_ref[widx, 0], preferred_element_type=f32) * scale
        k = jnp.dot(k_in, wa_ref[widx, 1], preferred_element_type=f32)
        v = jnp.dot(v_in, wa_ref[widx, 2], preferred_element_type=f32)

        # Per-(branch, head) (R, R) score blocks, sublane-stacked -> ONE masked softmax.
        blocks = []
        for g in range(G):
            qg = q[:, g * hd:(g + 1) * hd]
            kg = k[:, g * hd:(g + 1) * hd]
            blocks.append(jnp.einsum('qd,kd->qk', qg, kg, preferred_element_type=f32))
        s = jnp.concatenate(blocks, axis=0) + attn_mask            # (G*R, R)
        m = jnp.max(s, axis=-1, keepdims=True)
        p = jnp.exp(s - m)
        p = p * pl.reciprocal(jnp.sum(p, axis=-1, keepdims=True), approx=True)

        # Per-group PV, lane-concatenate head outputs (head-major per branch), one out-proj.
        outs = []
        for g in range(G):
            pg = p[g * R:(g + 1) * R, :]                           # (R, R), sublane-aligned
            vg = v[:, g * hd:(g + 1) * hd]                         # (R, hd)
            outs.append(jnp.dot(pg, vg, preferred_element_type=f32))
        ao = jnp.concatenate(outs, axis=-1)                        # (R, 2E)
        return (jnp.dot(ao, wa_ref[widx, 3], preferred_element_type=f32)
                + vrow(_ROW_BO_SELF + widx, E2))

    def ln2(x, i):
        """Paired LayerNorm on lane-packed activations: per-branch (E-lane) statistics."""
        def nrm(y):
            mu = jnp.mean(y, axis=-1, keepdims=True)
            yc = y - mu
            var = jnp.mean(yc * yc, axis=-1, keepdims=True)
            return yc * jax.lax.rsqrt(var + LN_EPS)
        xn = jnp.concatenate([nrm(x[:, :E]), nrm(x[:, E:])], axis=-1)
        return xn * vrow(_ROW_LN_G + i, E2) + vrow(_ROW_LN_B + i, E2)

    def ffn2(x):
        """Paired FFN (linear11/linear21, relu, linear12/linear22) with block-diag weights."""
        h = jnp.dot(x, wf1_ref[...], preferred_element_type=f32) + vrow(_ROW_BF1, FF2)
        h = jnp.maximum(h, 0.0)
        return jnp.dot(h, wf2_ref[...], preferred_element_type=f32) + vrow(_ROW_BF2, E2)

    def swap(x):
        """Exchange the two E-lane branch segments (branch1 sees branch2's features)."""
        return jnp.concatenate([x[:, E:], x[:, :E]], axis=-1)

    x = x_ref[...]                                                 # (R, 2E) = [src1 | src2]
    pos = pos_ref[...] if use_pos else None
    add_pos = (lambda t: t + pos) if use_pos else (lambda t: t)

    # Self attention + norm11/norm21 (all dropout layers are identity in eval).
    q = add_pos(x)
    x = ln2(x + mha2(q, q, x, 0), 0)
    # Cross attention: both directions read the SAME post-norm features.
    qp = add_pos(x)
    x = ln2(x + mha2(qp, swap(qp), swap(x), 1), 1)
    # FFN + norm13/norm23.
    x = ln2(x + ffn2(x), 2)

    out1_ref[...] = x[:, :E]
    out2_ref[...] = x[:, E:]


# ------------------------------ forward wrapper ------------------------------

def feature_fusion_forward(src1, src2, packed, pos_src1=None, pos_src2=None):
    L, B, E = src1.shape
    R = L * B
    H = NHEAD
    FF = packed["w_ffn1"].shape[1] // 2
    G = 2 * H

    # Interleaved row order (r = l*B + b): plain reshapes, no wrapper transposes.
    x = jnp.concatenate([src1.reshape(R, E), src2.reshape(R, E)], axis=-1)    # (R, 2E)

    use_pos = (pos_src1 is not None) or (pos_src2 is not None)
    args = [x]
    if use_pos:
        p1 = pos_src1 if pos_src1 is not None else jnp.zeros_like(src1)
        p2 = pos_src2 if pos_src2 is not None else jnp.zeros_like(src2)
        args.append(jnp.concatenate([p1.reshape(R, E), p2.reshape(R, E)], axis=-1))

    # Compile-time-constant additive block mask (tokens only attend within their batch).
    row_b = np.arange(G * R, dtype=np.int32) % B
    col_b = np.arange(R, dtype=np.int32) % B
    mask_np = np.where(row_b[:, None] == col_b[None, :], 0.0, NEG_INF).astype(np.float32)
    args.append(jnp.asarray(mask_np))

    args += [packed["w_attn"], packed["w_ffn1"], packed["w_ffn2"], packed["vecs"]]

    kern = functools.partial(_fusion_kernel, use_pos=use_pos, E=E, H=H, FF=FF)
    vmem = pl.BlockSpec(memory_space=pltpu.MemorySpace.VMEM)

    # Advisory cost estimate for XLA scheduling around the custom call.
    flops = 2 * (2 * 4 * R * (2 * E) * (2 * E))          # qkv + out-proj matmuls (2 merged MHAs)
    flops += 2 * (2 * G * 2 * R * R * (E // H))          # score + PV matmuls
    flops += 2 * (2 * R * (2 * E) * (2 * FF))            # FFN matmuls
    transcendentals = 2 * G * R * R                      # exp in the two stacked softmaxes
    bytes_accessed = sum(int(a.size) * 4 for a in args) + 2 * R * E * 4

    out1, out2 = pl.pallas_call(
        kern,
        out_shape=(jax.ShapeDtypeStruct((R, E), jnp.float32),
                   jax.ShapeDtypeStruct((R, E), jnp.float32)),
        in_specs=[vmem] * len(args),
        out_specs=(vmem, vmem),
        cost_estimate=pl.CostEstimate(flops=int(flops),
                                      transcendentals=int(transcendentals),
                                      bytes_accessed=int(bytes_accessed)),
    )(*args)
    return out1.reshape(L, B, E), out2.reshape(L, B, E)


# ------------------------------ parameters ------------------------------

def _xavier(key, shape):
    limit = (6.0 / (shape[0] + shape[1])) ** 0.5
    return jax.random.uniform(key, shape, jnp.float32, -limit, limit)


def init_params(key):
    """Raw per-module parameters mirroring FeatureFusionLayer (right-multiply convention)."""
    E, FF = D_MODEL, DIM_FF
    ks = iter(jax.random.split(key, 28))
    p = {}
    for name in ("self_attn1", "self_attn2", "multihead_attn1", "multihead_attn2"):
        p[name] = {
            "w_q": _xavier(next(ks), (E, E)),
            "w_k": _xavier(next(ks), (E, E)),
            "w_v": _xavier(next(ks), (E, E)),
            "w_o": _xavier(next(ks), (E, E)),
            "b_o": jax.random.uniform(next(ks), (E,), jnp.float32, -0.1, 0.1),
        }
    for name, (din, dout) in (("linear11", (E, FF)), ("linear12", (FF, E)),
                              ("linear21", (E, FF)), ("linear22", (FF, E))):
        p[name] = {"w": _xavier(next(ks), (din, dout)),
                   "b": jax.random.uniform(next(ks), (dout,), jnp.float32, -0.1, 0.1)}
    for name in ("norm11", "norm12", "norm13", "norm21", "norm22", "norm23"):
        p[name] = {"g": jnp.ones((E,), jnp.float32), "b": jnp.zeros((E,), jnp.float32)}
    return p


def _block_diag(a, b):
    z_ab = jnp.zeros((a.shape[0], b.shape[1]), a.dtype)
    z_ba = jnp.zeros((b.shape[0], a.shape[1]), a.dtype)
    return jnp.concatenate([jnp.concatenate([a, z_ab], axis=1),
                            jnp.concatenate([z_ba, b], axis=1)], axis=0)


def pack_params(p):
    """Pack the raw parameters (once, offline) into the few lane-wide slabs the kernel reads."""
    E, FF = D_MODEL, DIM_FF
    E2, FF2 = 2 * E, 2 * FF
    width = max(E2, FF2)

    def attn_stack(n1, n2):
        return jnp.stack([_block_diag(p[n1][k], p[n2][k])
                          for k in ("w_q", "w_k", "w_v", "w_o")])

    w_attn = jnp.stack([attn_stack("self_attn1", "self_attn2"),
                        attn_stack("multihead_attn1", "multihead_attn2")])   # (2, 4, 2E, 2E)
    w_ffn1 = _block_diag(p["linear11"]["w"], p["linear21"]["w"])             # (2E, 2FF)
    w_ffn2 = _block_diag(p["linear12"]["w"], p["linear22"]["w"])             # (2FF, 2E)

    def vec_row(v1, v2):
        row = jnp.concatenate([v1, v2])
        return jnp.pad(row, (0, width - row.shape[0]))

    rows = [None] * _VEC_ROWS
    rows[_ROW_BO_SELF] = vec_row(p["self_attn1"]["b_o"], p["self_attn2"]["b_o"])
    rows[_ROW_BO_CROSS] = vec_row(p["multihead_attn1"]["b_o"], p["multihead_attn2"]["b_o"])
    rows[_ROW_BF1] = vec_row(p["linear11"]["b"], p["linear21"]["b"])
    rows[_ROW_BF2] = vec_row(p["linear12"]["b"], p["linear22"]["b"])
    for j, (n1, n2) in enumerate((("norm11", "norm21"), ("norm12", "norm22"),
                                  ("norm13", "norm23"))):
        rows[_ROW_LN_G + j] = vec_row(p[n1]["g"], p[n2]["g"])
        rows[_ROW_LN_B + j] = vec_row(p[n1]["b"], p[n2]["b"])
    vecs = jnp.stack(rows)                                                   # (10, max(2E,2FF))

    return {"w_attn": w_attn, "w_ffn1": w_ffn1, "w_ffn2": w_ffn2, "vecs": vecs}


# ----------------------------------- main -----------------------------------

if __name__ == "__main__":
    key = jax.random.PRNGKey(0)
    k1, k2, k3, k4, kp = jax.random.split(key, 5)
    src1 = jax.random.normal(k1, (SEQ, BATCH, D_MODEL), jnp.float32)
    src2 = jax.random.normal(k2, (SEQ, BATCH, D_MODEL), jnp.float32)
    pos1 = jax.random.normal(k3, (SEQ, BATCH, D_MODEL), jnp.float32)
    pos2 = jax.random.normal(k4, (SEQ, BATCH, D_MODEL), jnp.float32)
    packed = pack_params(init_params(kp))

    fwd = jax.jit(lambda a, b: feature_fusion_forward(a, b, packed))
    out1, out2 = fwd(src1, src2)
    jax.block_until_ready((out1, out2))

    fwd_pos = jax.jit(lambda a, b, p1, p2: feature_fusion_forward(a, b, packed, p1, p2))
    o1p, o2p = fwd_pos(src1, src2, pos1, pos2)
    jax.block_until_ready((o1p, o2p))

    ok = (out1.shape == (SEQ, BATCH, D_MODEL) and out2.shape == (SEQ, BATCH, D_MODEL)
          and bool(jnp.all(jnp.isfinite(out1))) and bool(jnp.all(jnp.isfinite(out2)))
          and bool(jnp.all(jnp.isfinite(o1p))) and bool(jnp.all(jnp.isfinite(o2p))))
    assert ok
    print("KERNEL_OK")
</pallas_src>

<mosaic_0001>
module attributes {stable_mosaic.version = 11 : i64} {
  func.func @_fusion_kernel(%arg0: memref<16x64xf32, #tpu.memory_space<vmem>>, %arg1: memref<128x16xf32, #tpu.memory_space<vmem>>, %arg2: memref<2x4x64x64xf32, #tpu.memory_space<vmem>>, %arg3: memref<64x128xf32, #tpu.memory_space<vmem>>, %arg4: memref<128x64xf32, #tpu.memory_space<vmem>>, %arg5: memref<10x128xf32, #tpu.memory_space<vmem>>, %arg6: memref<16x32xf32, #tpu.memory_space<vmem>>, %arg7: memref<16x32xf32, #tpu.memory_space<vmem>>) attributes {dimension_semantics = [], scalar_prefetch = 0 : i64, scratch_operands = 0 : i64, tpu.core_type = #tpu.core_type<tc>} {
    %c0 = arith.constant 0 : index
    %c0_0 = arith.constant 0 : index
    %0 = vector.load %arg1[%c0, %c0_0] : memref<128x16xf32, #tpu.memory_space<vmem>>, vector<128x16xf32>
    %c0_1 = arith.constant 0 : index
    %c0_2 = arith.constant 0 : index
    %1 = vector.load %arg0[%c0_1, %c0_2] : memref<16x64xf32, #tpu.memory_space<vmem>>, vector<16x64xf32>
    %c0_3 = arith.constant 0 : index
    %c0_4 = arith.constant 0 : index
    %c0_5 = arith.constant 0 : index
    %c0_6 = arith.constant 0 : index
    %2 = vector.load %arg2[%c0_3, %c0_4, %c0_5, %c0_6] : memref<2x4x64x64xf32, #tpu.memory_space<vmem>>, vector<1x1x64x64xf32>
    %3 = vector.shape_cast %2 : vector<1x1x64x64xf32> to vector<64x64xf32>
    %cst = arith.constant dense<0.000000e+00> : vector<16x64xf32>
    %4 = tpu.matmul %1, %3, %cst {dimension_numbers = #tpu.dot_dimension_numbers<[1], [0], [0], [1], [0, 0, 1, 1], [], []>} : vector<16x64xf32>, vector<64x64xf32>, vector<16x64xf32> -> vector<16x64xf32>
    %cst_7 = arith.constant 0.353553385 : f32
    %5 = vector.broadcast %cst_7 : f32 to vector<16x64xf32>
    %6 = arith.mulf %4, %5 : vector<16x64xf32>
    %c0_8 = arith.constant 0 : index
    %c1 = arith.constant 1 : index
    %c0_9 = arith.constant 0 : index
    %c0_10 = arith.constant 0 : index
    %7 = vector.load %arg2[%c0_8, %c1, %c0_9, %c0_10] : memref<2x4x64x64xf32, #tpu.memory_space<vmem>>, vector<1x1x64x64xf32>
    %8 = vector.shape_cast %7 : vector<1x1x64x64xf32> to vector<64x64xf32>
    %cst_11 = arith.constant dense<0.000000e+00> : vector<16x64xf32>
    %9 = tpu.matmul %1, %8, %cst_11 {dimension_numbers = #tpu.dot_dimension_numbers<[1], [0], [0], [1], [0, 0, 1, 1], [], []>} : vector<16x64xf32>, vector<64x64xf32>, vector<16x64xf32> -> vector<16x64xf32>
    %c0_12 = arith.constant 0 : index
    %c2 = arith.constant 2 : index
    %c0_13 = arith.constant 0 : index
    %c0_14 = arith.constant 0 : index
    %10 = vector.load %arg2[%c0_12, %c2, %c0_13, %c0_14] : memref<2x4x64x64xf32, #tpu.memory_space<vmem>>, vector<1x1x64x64xf32>
    %11 = vector.shape_cast %10 : vector<1x1x64x64xf32> to vector<64x64xf32>
    %cst_15 = arith.constant dense<0.000000e+00> : vector<16x64xf32>
    %12 = tpu.matmul %1, %11, %cst_15 {dimension_numbers = #tpu.dot_dimension_numbers<[1], [0], [0], [1], [0, 0, 1, 1], [], []>} : vector<16x64xf32>, vector<64x64xf32>, vector<16x64xf32> -> vector<16x64xf32>
    %13 = vector.extract_strided_slice %6 {offsets = [0, 0], sizes = [16, 8], strides = [1, 1]} : vector<16x64xf32> to vector<16x8xf32>
    %14 = vector.extract_strided_slice %9 {offsets = [0, 0], sizes = [16, 8], strides = [1, 1]} : vector<16x64xf32> to vector<16x8xf32>
    "tpu.trace_start"() <{level = 10 : i32, message = "qd,kd->qk"}> : () -> ()
    %cst_16 = arith.constant dense<0.000000e+00> : vector<16x16xf32>
    %15 = tpu.matmul %13, %14, %cst_16 {dimension_numbers = #tpu.dot_dimension_numbers<[1], [1], [0], [0], [0, 0, 1, 0], [], []>} : vector<16x8xf32>, vector<16x8xf32>, vector<16x16xf32> -> vector<16x16xf32>
    "tpu.trace_stop"() : () -> ()
    %16 = vector.extract_strided_slice %6 {offsets = [0, 8], sizes = [16, 8], strides = [1, 1]} : vector<16x64xf32> to vector<16x8xf32>
    %17 = vector.extract_strided_slice %9 {offsets = [0, 8], sizes = [16, 8], strides = [1, 1]} : vector<16x64xf32> to vector<16x8xf32>
    "tpu.trace_start"() <{level = 10 : i32, message = "qd,kd->qk"}> : () -> ()
    %cst_17 = arith.constant dense<0.000000e+00> : vector<16x16xf32>
    %18 = tpu.matmul %16, %17, %cst_17 {dimension_numbers = #tpu.dot_dimension_numbers<[1], [1], [0], [0], [0, 0, 1, 0], [], []>} : vector<16x8xf32>, vector<16x8xf32>, vector<16x16xf32> -> vector<16x16xf32>
    "tpu.trace_stop"() : () -> ()
    %19 = vector.extract_strided_slice %6 {offsets = [0, 16], sizes = [16, 8], strides = [1, 1]} : vector<16x64xf32> to vector<16x8xf32>
    %20 = vector.extract_strided_slice %9 {offsets = [0, 16], sizes = [16, 8], strides = [1, 1]} : vector<16x64xf32> to vector<16x8xf32>
    "tpu.trace_start"() <{level = 10 : i32, message = "qd,kd->qk"}> : () -> ()
    %cst_18 = arith.constant dense<0.000000e+00> : vector<16x16xf32>
    %21 = tpu.matmul %19, %20, %cst_18 {dimension_numbers = #tpu.dot_dimension_numbers<[1], [1], [0], [0], [0, 0, 1, 0], [], []>} : vector<16x8xf32>, vector<16x8xf32>, vector<16x16xf32> -> vector<16x16xf32>
    "tpu.trace_stop"() : () -> ()
    %22 = vector.extract_strided_slice %6 {offsets = [0, 24], sizes = [16, 8], strides = [1, 1]} : vector<16x64xf32> to vector<16x8xf32>
    %23 = vector.extract_strided_slice %9 {offsets = [0, 24], sizes = [16, 8], strides = [1, 1]} : vector<16x64xf32> to vector<16x8xf32>
    "tpu.trace_start"() <{level = 10 : i32, message = "qd,kd->qk"}> : () -> ()
    %cst_19 = arith.constant dense<0.000000e+00> : vector<16x16xf32>
    %24 = tpu.matmul %22, %23, %cst_19 {dimension_numbers = #tpu.dot_dimension_numbers<[1], [1], [0], [0], [0, 0, 1, 0], [], []>} : vector<16x8xf32>, vector<16x8xf32>, vector<16x16xf32> -> vector<16x16xf32>
    "tpu.trace_stop"() : () -> ()
    %25 = vector.extract_strided_slice %6 {offsets = [0, 32], sizes = [16, 8], strides = [1, 1]} : vector<16x64xf32> to vector<16x8xf32>
    %26 = vector.extract_strided_slice %9 {offsets = [0, 32], sizes = [16, 8], strides = [1, 1]} : vector<16x64xf32> to vector<16x8xf32>
    "tpu.trace_start"() <{level = 10 : i32, message = "qd,kd->qk"}> : () -> ()
    %cst_20 = arith.constant dense<0.000000e+00> : vector<16x16xf32>
    %27 = tpu.matmul %25, %26, %cst_20 {dimension_numbers = #tpu.dot_dimension_numbers<[1], [1], [0], [0], [0, 0, 1, 0], [], []>} : vector<16x8xf32>, vector<16x8xf32>, vector<16x16xf32> -> vector<16x16xf32>
    "tpu.trace_stop"() : () -> ()
    %28 = vector.extract_strided_slice %6 {offsets = [0, 40], sizes = [16, 8], strides = [1, 1]} : vector<16x64xf32> to vector<16x8xf32>
    %29 = vector.extract_strided_slice %9 {offsets = [0, 40], sizes = [16, 8], strides = [1, 1]} : vector<16x64xf32> to vector<16x8xf32>
    "tpu.trace_start"() <{level = 10 : i32, message = "qd,kd->qk"}> : () -> ()
    %cst_21 = arith.constant dense<0.000000e+00> : vector<16x16xf32>
    %30 = tpu.matmul %28, %29, %cst_21 {dimension_numbers = #tpu.dot_dimension_numbers<[1], [1], [0], [0], [0, 0, 1, 0], [], []>} : vector<16x8xf32>, vector<16x8xf32>, vector<16x16xf32> -> vector<16x16xf32>
    "tpu.trace_stop"() : () -> ()
    %31 = vector.extract_strided_slice %6 {offsets = [0, 48], sizes = [16, 8], strides = [1, 1]} : vector<16x64xf32> to vector<16x8xf32>
    %32 = vector.extract_strided_slice %9 {offsets = [0, 48], sizes = [16, 8], strides = [1, 1]} : vector<16x64xf32> to vector<16x8xf32>
    "tpu.trace_start"() <{level = 10 : i32, message = "qd,kd->qk"}> : () -> ()
    %cst_22 = arith.constant dense<0.000000e+00> : vector<16x16xf32>
    %33 = tpu.matmul %31, %32, %cst_22 {dimension_numbers = #tpu.dot_dimension_numbers<[1], [1], [0], [0], [0, 0, 1, 0], [], []>} : vector<16x8xf32>, vector<16x8xf32>, vector<16x16xf32> -> vector<16x16xf32>
    "tpu.trace_stop"() : () -> ()
    %34 = vector.extract_strided_slice %6 {offsets = [0, 56], sizes = [16, 8], strides = [1, 1]} : vector<16x64xf32> to vector<16x8xf32>
    %35 = vector.extract_strided_slice %9 {offsets = [0, 56], sizes = [16, 8], strides = [1, 1]} : vector<16x64xf32> to vector<16x8xf32>
    "tpu.trace_start"() <{level = 10 : i32, message = "qd,kd->qk"}> : () -> ()
    %cst_23 = arith.constant dense<0.000000e+00> : vector<16x16xf32>
    %36 = tpu.matmul %34, %35, %cst_23 {dimension_numbers = #tpu.dot_dimension_numbers<[1], [1], [0], [0], [0, 0, 1, 0], [], []>} : vector<16x8xf32>, vector<16x8xf32>, vector<16x16xf32> -> vector<16x16xf32>
    "tpu.trace_stop"() : () -> ()
    %37 = tpu.concatenate %15, %18, %21, %24, %27, %30, %33, %36 in 0 : vector<16x16xf32>, vector<16x16xf32>, vector<16x16xf32>, vector<16x16xf32>, vector<16x16xf32>, vector<16x16xf32>, vector<16x16xf32>, vector<16x16xf32> -> vector<128x16xf32>
    %38 = arith.addf %37, %0 : vector<128x16xf32>
    %cst_24 = arith.constant dense<0xFF800000> : vector<128xf32>
    %39 = vector.multi_reduction <maximumf>, %38, %cst_24 [1] : vector<128x16xf32> to vector<128xf32>
    %40 = vector.shape_cast %39 : vector<128xf32> to vector<128x1xf32>
    %41 = vector.broadcast %40 : vector<128x1xf32> to vector<128x16xf32>
    %42 = arith.subf %38, %41 : vector<128x16xf32>
    %43 = math.exp %42 : vector<128x16xf32>
    %cst_25 = arith.constant dense<0.000000e+00> : vector<128xf32>
    %44 = vector.multi_reduction <add>, %43, %cst_25 [1] : vector<128x16xf32> to vector<128xf32>
    %45 = vector.shape_cast %44 : vector<128xf32> to vector<128x1xf32>
    %46 = tpu.reciprocal %45 {approx = true} : vector<128x1xf32> -> vector<128x1xf32>
    %47 = vector.broadcast %46 : vector<128x1xf32> to vector<128x16xf32>
    %48 = arith.mulf %43, %47 : vector<128x16xf32>
    %49 = vector.extract_strided_slice %48 {offsets = [0, 0], sizes = [16, 16], strides = [1, 1]} : vector<128x16xf32> to vector<16x16xf32>
    %50 = vector.extract_strided_slice %12 {offsets = [0, 0], sizes = [16, 8], strides = [1, 1]} : vector<16x64xf32> to vector<16x8xf32>
    %cst_26 = arith.constant dense<0.000000e+00> : vector<16x8xf32>
    %51 = tpu.matmul %49, %50, %cst_26 {dimension_numbers = #tpu.dot_dimension_numbers<[1], [0], [0], [1], [0, 0, 1, 1], [], []>} : vector<16x16xf32>, vector<16x8xf32>, vector<16x8xf32> -> vector<16x8xf32>
    %52 = vector.extract_strided_slice %48 {offsets = [16, 0], sizes = [16, 16], strides = [1, 1]} : vector<128x16xf32> to vector<16x16xf32>
    %53 = vector.extract_strided_slice %12 {offsets = [0, 8], sizes = [16, 8], strides = [1, 1]} : vector<16x64xf32> to vector<16x8xf32>
    %cst_27 = arith.constant dense<0.000000e+00> : vector<16x8xf32>
    %54 = tpu.matmul %52, %53, %cst_27 {dimension_numbers = #tpu.dot_dimension_numbers<[1], [0], [0], [1], [0, 0, 1, 1], [], []>} : vector<16x16xf32>, vector<16x8xf32>, vector<16x8xf32> -> vector<16x8xf32>
    %55 = vector.extract_strided_slice %48 {offsets = [32, 0], sizes = [16, 16], strides = [1, 1]} : vector<128x16xf32> to vector<16x16xf32>
    %56 = vector.extract_strided_slice %12 {offsets = [0, 16], sizes = [16, 8], strides = [1, 1]} : vector<16x64xf32> to vector<16x8xf32>
    %cst_28 = arith.constant dense<0.000000e+00> : vector<16x8xf32>
    %57 = tpu.matmul %55, %56, %cst_28 {dimension_numbers = #tpu.dot_dimension_numbers<[1], [0], [0], [1], [0, 0, 1, 1], [], []>} : vector<16x16xf32>, vector<16x8xf32>, vector<16x8xf32> -> vector<16x8xf32>
    %58 = vector.extract_strided_slice %48 {offsets = [48, 0], sizes = [16, 16], strides = [1, 1]} : vector<128x16xf32> to vector<16x16xf32>
    %59 = vector.extract_strided_slice %12 {offsets = [0, 24], sizes = [16, 8], strides = [1, 1]} : vector<16x64xf32> to vector<16x8xf32>
    %cst_29 = arith.constant dense<0.000000e+00> : vector<16x8xf32>
    %60 = tpu.matmul %58, %59, %cst_29 {dimension_numbers = #tpu.dot_dimension_numbers<[1], [0], [0], [1], [0, 0, 1, 1], [], []>} : vector<16x16xf32>, vector<16x8xf32>, vector<16x8xf32> -> vector<16x8xf32>
    %61 = vector.extract_strided_slice %48 {offsets = [64, 0], sizes = [16, 16], strides = [1, 1]} : vector<128x16xf32> to vector<16x16xf32>
    %62 = vector.extract_strided_slice %12 {offsets = [0, 32], sizes = [16, 8], strides = [1, 1]} : vector<16x64xf32> to vector<16x8xf32>
    %cst_30 = arith.constant dense<0.000000e+00> : vector<16x8xf32>
    %63 = tpu.matmul %61, %62, %cst_30 {dimension_numbers = #tpu.dot_dimension_numbers<[1], [0], [0], [1], [0, 0, 1, 1], [], []>} : vector<16x16xf32>, vector<16x8xf32>, vector<16x8xf32> -> vector<16x8xf32>
    %64 = vector.extract_strided_slice %48 {offsets = [80, 0], sizes = [16, 16], strides = [1, 1]} : vector<128x16xf32> to vector<16x16xf32>
    %65 = vector.extract_strided_slice %12 {offsets = [0, 40], sizes = [16, 8], strides = [1, 1]} : vector<16x64xf32> to vector<16x8xf32>
    %cst_31 = arith.constant dense<0.000000e+00> : vector<16x8xf32>
    %66 = tpu.matmul %64, %65, %cst_31 {dimension_numbers = #tpu.dot_dimension_numbers<[1], [0], [0], [1], [0, 0, 1, 1], [], []>} : vector<16x16xf32>, vector<16x8xf32>, vector<16x8xf32> -> vector<16x8xf32>
    %67 = vector.extract_strided_slice %48 {offsets = [96, 0], sizes = [16, 16], strides = [1, 1]} : vector<128x16xf32> to vector<16x16xf32>
    %68 = vector.extract_strided_slice %12 {offsets = [0, 48], sizes = [16, 8], strides = [1, 1]} : vector<16x64xf32> to vector<16x8xf32>
    %cst_32 = arith.constant dense<0.000000e+00> : vector<16x8xf32>
    %69 = tpu.matmul %67, %68, %cst_32 {dimension_numbers = #tpu.dot_dimension_numbers<[1], [0], [0], [1], [0, 0, 1, 1], [], []>} : vector<16x16xf32>, vector<16x8xf32>, vector<16x8xf32> -> vector<16x8xf32>
    %70 = vector.extract_strided_slice %48 {offsets = [112, 0], sizes = [16, 16], strides = [1, 1]} : vector<128x16xf32> to vector<16x16xf32>
    %71 = vector.extract_strided_slice %12 {offsets = [0, 56], sizes = [16, 8], strides = [1, 1]} : vector<16x64xf32> to vector<16x8xf32>
    %cst_33 = arith.constant dense<0.000000e+00> : vector<16x8xf32>
    %72 = tpu.matmul %70, %71, %cst_33 {dimension_numbers = #tpu.dot_dimension_numbers<[1], [0], [0], [1], [0, 0, 1, 1], [], []>} : vector<16x16xf32>, vector<16x8xf32>, vector<16x8xf32> -> vector<16x8xf32>
    %73 = tpu.concatenate %51, %54, %57, %60, %63, %66, %69, %72 in 1 : vector<16x8xf32>, vector<16x8xf32>, vector<16x8xf32>, vector<16x8xf32>, vector<16x8xf32>, vector<16x8xf32>, vector<16x8xf32>, vector<16x8xf32> -> vector<16x64xf32>
    %c0_34 = arith.constant 0 : index
    %c3 = arith.constant 3 : index
    %c0_35 = arith.constant 0 : index
    %c0_36 = arith.constant 0 : index
    %74 = vector.load %arg2[%c0_34, %c3, %c0_35, %c0_36] : memref<2x4x64x64xf32, #tpu.memory_space<vmem>>, vector<1x1x64x64xf32>
    %75 = vector.shape_cast %74 : vector<1x1x64x64xf32> to vector<64x64xf32>
    %cst_37 = arith.constant dense<0.000000e+00> : vector<16x64xf32>
    %76 = tpu.matmul %73, %75, %cst_37 {dimension_numbers = #tpu.dot_dimension_numbers<[1], [0], [0], [1], [0, 0, 1, 1], [], []>} : vector<16x64xf32>, vector<64x64xf32>, vector<16x64xf32> -> vector<16x64xf32>
    %c0_38 = arith.constant 0 : index
    %c0_39 = arith.constant 0 : index
    %77 = vector.load %arg5[%c0_38, %c0_39] : memref<10x128xf32, #tpu.memory_space<vmem>>, vector<1x64xf32>
    %78 = vector.broadcast %77 : vector<1x64xf32> to vector<16x64xf32>
    %79 = arith.addf %76, %78 : vector<16x64xf32>
    %80 = arith.addf %1, %79 : vector<16x64xf32>
    %81 = vector.extract_strided_slice %80 {offsets = [0, 0], sizes = [16, 32], strides = [1, 1]} : vector<16x64xf32> to vector<16x32xf32>
    %cst_40 = arith.constant dense<0.000000e+00> : vector<16xf32>
    %82 = vector.multi_reduction <add>, %81, %cst_40 [1] : vector<16x32xf32> to vector<16xf32>
    %83 = vector.shape_cast %82 : vector<16xf32> to vector<16x1xf32>
    %cst_41 = arith.constant 3.200000e+01 : f32
    %84 = vector.broadcast %cst_41 : f32 to vector<16x1xf32>
    %85 = arith.divf %83, %84 : vector<16x1xf32>
    %86 = vector.broadcast %85 : vector<16x1xf32> to vector<16x32xf32>
    %87 = arith.subf %81, %86 : vector<16x32xf32>
    %88 = arith.mulf %87, %87 : vector<16x32xf32>
    %cst_42 = arith.constant dense<0.000000e+00> : vector<16xf32>
    %89 = vector.multi_reduction <add>, %88, %cst_42 [1] : vector<16x32xf32> to vector<16xf32>
    %90 = vector.shape_cast %89 : vector<16xf32> to vector<16x1xf32>
    %cst_43 = arith.constant 3.200000e+01 : f32
    %91 = vector.broadcast %cst_43 : f32 to vector<16x1xf32>
    %92 = arith.divf %90, %91 : vector<16x1xf32>
    %cst_44 = arith.constant 9.99999974E-6 : f32
    %93 = vector.broadcast %cst_44 : f32 to vector<16x1xf32>
    %94 = arith.addf %92, %93 : vector<16x1xf32>
    %95 = math.rsqrt %94 : vector<16x1xf32>
    %96 = vector.broadcast %95 : vector<16x1xf32> to vector<16x32xf32>
    %97 = arith.mulf %87, %96 : vector<16x32xf32>
    %98 = vector.extract_strided_slice %80 {offsets = [0, 32], sizes = [16, 32], strides = [1, 1]} : vector<16x64xf32> to vector<16x32xf32>
    %cst_45 = arith.constant dense<0.000000e+00> : vector<16xf32>
    %99 = vector.multi_reduction <add>, %98, %cst_45 [1] : vector<16x32xf32> to vector<16xf32>
    %100 = vector.shape_cast %99 : vector<16xf32> to vector<16x1xf32>
    %cst_46 = arith.constant 3.200000e+01 : f32
    %101 = vector.broadcast %cst_46 : f32 to vector<16x1xf32>
    %102 = arith.divf %100, %101 : vector<16x1xf32>
    %103 = vector.broadcast %102 : vector<16x1xf32> to vector<16x32xf32>
    %104 = arith.subf %98, %103 : vector<16x32xf32>
    %105 = arith.mulf %104, %104 : vector<16x32xf32>
    %cst_47 = arith.constant dense<0.000000e+00> : vector<16xf32>
    %106 = vector.multi_reduction <add>, %105, %cst_47 [1] : vector<16x32xf32> to vector<16xf32>
    %107 = vector.shape_cast %106 : vector<16xf32> to vector<16x1xf32>
    %cst_48 = arith.constant 3.200000e+01 : f32
    %108 = vector.broadcast %cst_48 : f32 to vector<16x1xf32>
    %109 = arith.divf %107, %108 : vector<16x1xf32>
    %cst_49 = arith.constant 9.99999974E-6 : f32
    %110 = vector.broadcast %cst_49 : f32 to vector<16x1xf32>
    %111 = arith.addf %109, %110 : vector<16x1xf32>
    %112 = math.rsqrt %111 : vector<16x1xf32>
    %113 = vector.broadcast %112 : vector<16x1xf32> to vector<16x32xf32>
    %114 = arith.mulf %104, %113 : vector<16x32xf32>
    %115 = tpu.concatenate %97, %114 in 1 : vector<16x32xf32>, vector<16x32xf32> -> vector<16x64xf32>
    %c4 = arith.constant 4 : index
    %c0_50 = arith.constant 0 : index
    %116 = vector.load %arg5[%c4, %c0_50] : memref<10x128xf32, #tpu.memory_space<vmem>>, vector<1x64xf32>
    %117 = vector.broadcast %116 : vector<1x64xf32> to vector<16x64xf32>
    %118 = arith.mulf %115, %117 : vector<16x64xf32>
    %c7 = arith.constant 7 : index
    %c0_51 = arith.constant 0 : index
    %119 = vector.load %arg5[%c7, %c0_51] : memref<10x128xf32, #tpu.memory_space<vmem>>, vector<1x64xf32>
    %120 = vector.broadcast %119 : vector<1x64xf32> to vector<16x64xf32>
    %121 = arith.addf %118, %120 : vector<16x64xf32>
    %122 = vector.extract_strided_slice %121 {offsets = [0, 32], sizes = [16, 32], strides = [1, 1]} : vector<16x64xf32> to vector<16x32xf32>
    %123 = vector.extract_strided_slice %121 {offsets = [0, 0], sizes = [16, 32], strides = [1, 1]} : vector<16x64xf32> to vector<16x32xf32>
    %124 = tpu.concatenate %122, %123 in 1 : vector<16x32xf32>, vector<16x32xf32> -> vector<16x64xf32>
    %125 = vector.extract_strided_slice %121 {offsets = [0, 32], sizes = [16, 32], strides = [1, 1]} : vector<16x64xf32> to vector<16x32xf32>
    %126 = vector.extract_strided_slice %121 {offsets = [0, 0], sizes = [16, 32], strides = [1, 1]} : vector<16x64xf32> to vector<16x32xf32>
    %127 = tpu.concatenate %125, %126 in 1 : vector<16x32xf32>, vector<16x32xf32> -> vector<16x64xf32>
    %c1_52 = arith.constant 1 : index
    %c0_53 = arith.constant 0 : index
    %c0_54 = arith.constant 0 : index
    %c0_55 = arith.constant 0 : index
    %128 = vector.load %arg2[%c1_52, %c0_53, %c0_54, %c0_55] : memref<2x4x64x64xf32, #tpu.memory_space<vmem>>, vector<1x1x64x64xf32>
    %129 = vector.shape_cast %128 : vector<1x1x64x64xf32> to vector<64x64xf32>
    %cst_56 = arith.constant dense<0.000000e+00> : vector<16x64xf32>
    %130 = tpu.matmul %121, %129, %cst_56 {dimension_numbers = #tpu.dot_dimension_numbers<[1], [0], [0], [1], [0, 0, 1, 1], [], []>} : vector<16x64xf32>, vector<64x64xf32>, vector<16x64xf32> -> vector<16x64xf32>
    %cst_57 = arith.constant 0.353553385 : f32
    %131 = vector.broadcast %cst_57 : f32 to vector<16x64xf32>
    %132 = arith.mulf %130, %131 : vector<16x64xf32>
    %c1_58 = arith.constant 1 : index
    %c1_59 = arith.constant 1 : index
    %c0_60 = arith.constant 0 : index
    %c0_61 = arith.constant 0 : index
    %133 = vector.load %arg2[%c1_58, %c1_59, %c0_60, %c0_61] : memref<2x4x64x64xf32, #tpu.memory_space<vmem>>, vector<1x1x64x64xf32>
    %134 = vector.shape_cast %133 : vector<1x1x64x64xf32> to vector<64x64xf32>
    %cst_62 = arith.constant dense<0.000000e+00> : vector<16x64xf32>
    %135 = tpu.matmul %124, %134, %cst_62 {dimension_numbers = #tpu.dot_dimension_numbers<[1], [0], [0], [1], [0, 0, 1, 1], [], []>} : vector<16x64xf32>, vector<64x64xf32>, vector<16x64xf32> -> vector<16x64xf32>
    %c1_63 = arith.constant 1 : index
    %c2_64 = arith.constant 2 : index
    %c0_65 = arith.constant 0 : index
    %c0_66 = arith.constant 0 : index
    %136 = vector.load %arg2[%c1_63, %c2_64, %c0_65, %c0_66] : memref<2x4x64x64xf32, #tpu.memory_space<vmem>>, vector<1x1x64x64xf32>
    %137 = vector.shape_cast %136 : vector<1x1x64x64xf32> to vector<64x64xf32>
    %cst_67 = arith.constant dense<0.000000e+00> : vector<16x64xf32>
    %138 = tpu.matmul %127, %137, %cst_67 {dimension_numbers = #tpu.dot_dimension_numbers<[1], [0], [0], [1], [0, 0, 1, 1], [], []>} : vector<16x64xf32>, vector<64x64xf32>, vector<16x64xf32> -> vector<16x64xf32>
    %139 = vector.extract_strided_slice %132 {offsets = [0, 0], sizes = [16, 8], strides = [1, 1]} : vector<16x64xf32> to vector<16x8xf32>
    %140 = vector.extract_strided_slice %135 {offsets = [0, 0], sizes = [16, 8], strides = [1, 1]} : vector<16x64xf32> to vector<16x8xf32>
    "tpu.trace_start"() <{level = 10 : i32, message = "qd,kd->qk"}> : () -> ()
    %cst_68 = arith.constant dense<0.000000e+00> : vector<16x16xf32>
    %141 = tpu.matmul %139, %140, %cst_68 {dimension_numbers = #tpu.dot_dimension_numbers<[1], [1], [0], [0], [0, 0, 1, 0], [], []>} : vector<16x8xf32>, vector<16x8xf32>, vector<16x16xf32> -> vector<16x16xf32>
    "tpu.trace_stop"() : () -> ()
    %142 = vector.extract_strided_slice %132 {offsets = [0, 8], sizes = [16, 8], strides = [1, 1]} : vector<16x64xf32> to vector<16x8xf32>
    %143 = vector.extract_strided_slice %135 {offsets = [0, 8], sizes = [16, 8], strides = [1, 1]} : vector<16x64xf32> to vector<16x8xf32>
    "tpu.trace_start"() <{level = 10 : i32, message = "qd,kd->qk"}> : () -> ()
    %cst_69 = arith.constant dense<0.000000e+00> : vector<16x16xf32>
    %144 = tpu.matmul %142, %143, %cst_69 {dimension_numbers = #tpu.dot_dimension_numbers<[1], [1], [0], [0], [0, 0, 1, 0], [], []>} : vector<16x8xf32>, vector<16x8xf32>, vector<16x16xf32> -> vector<16x16xf32>
    "tpu.trace_stop"() : () -> ()
    %145 = vector.extract_strided_slice %132 {offsets = [0, 16], sizes = [16, 8], strides = [1, 1]} : vector<16x64xf32> to vector<16x8xf32>
    %146 = vector.extract_strided_slice %135 {offsets = [0, 16], sizes = [16, 8], strides = [1, 1]} : vector<16x64xf32> to vector<16x8xf32>
    "tpu.trace_start"() <{level = 10 : i32, message = "qd,kd->qk"}> : () -> ()
    %cst_70 = arith.constant dense<0.000000e+00> : vector<16x16xf32>
    %147 = tpu.matmul %145, %146, %cst_70 {dimension_numbers = #tpu.dot_dimension_numbers<[1], [1], [0], [0], [0, 0, 1, 0], [], []>} : vector<16x8xf32>, vector<16x8xf32>, vector<16x16xf32> -> vector<16x16xf32>
    "tpu.trace_stop"() : () -> ()
    %148 = vector.extract_strided_slice %132 {offsets = [0, 24], sizes = [16, 8], strides = [1, 1]} : vector<16x64xf32> to vector<16x8xf32>
    %149 = vector.extract_strided_slice %135 {offsets = [0, 24], sizes = [16, 8], strides = [1, 1]} : vector<16x64xf32> to vector<16x8xf32>
    "tpu.trace_start"() <{level = 10 : i32, message = "qd,kd->qk"}> : () -> ()
    %cst_71 = arith.constant dense<0.000000e+00> : vector<16x16xf32>
    %150 = tpu.matmul %148, %149, %cst_71 {dimension_numbers = #tpu.dot_dimension_numbers<[1], [1], [0], [0], [0, 0, 1, 0], [], []>} : vector<16x8xf32>, vector<16x8xf32>, vector<16x16xf32> -> vector<16x16xf32>
    "tpu.trace_stop"() : () -> ()
    %151 = vector.extract_strided_slice %132 {offsets = [0, 32], sizes = [16, 8], strides = [1, 1]} : vector<16x64xf32> to vector<16x8xf32>
    %152 = vector.extract_strided_slice %135 {offsets = [0, 32], sizes = [16, 8], strides = [1, 1]} : vector<16x64xf32> to vector<16x8xf32>
    "tpu.trace_start"() <{level = 10 : i32, message = "qd,kd->qk"}> : () -> ()
    %cst_72 = arith.constant dense<0.000000e+00> : vector<16x16xf32>
    %153 = tpu.matmul %151, %152, %cst_72 {dimension_numbers = #tpu.dot_dimension_numbers<[1], [1], [0], [0], [0, 0, 1, 0], [], []>} : vector<16x8xf32>, vector<16x8xf32>, vector<16x16xf32> -> vector<16x16xf32>
    "tpu.trace_stop"() : () -> ()
    %154 = vector.extract_strided_slice %132 {offsets = [0, 40], sizes = [16, 8], strides = [1, 1]} : vector<16x64xf32> to vector<16x8xf32>
    %155 = vector.extract_strided_slice %135 {offsets = [0, 40], sizes = [16, 8], strides = [1, 1]} : vector<16x64xf32> to vector<16x8xf32>
    "tpu.trace_start"() <{level = 10 : i32, message = "qd,kd->qk"}> : () -> ()
    %cst_73 = arith.constant dense<0.000000e+00> : vector<16x16xf32>
    %156 = tpu.matmul %154, %155, %cst_73 {dimension_numbers = #tpu.dot_dimension_numbers<[1], [1], [0], [0], [0, 0, 1, 0], [], []>} : vector<16x8xf32>, vector<16x8xf32>, vector<16x16xf32> -> vector<16x16xf32>
    "tpu.trace_stop"() : () -> ()
    %157 = vector.extract_strided_slice %132 {offsets = [0, 48], sizes = [16, 8], strides = [1, 1]} : vector<16x64xf32> to vector<16x8xf32>
    %158 = vector.extract_strided_slice %135 {offsets = [0, 48], sizes = [16, 8], strides = [1, 1]} : vector<16x64xf32> to vector<16x8xf32>
    "tpu.trace_start"() <{level = 10 : i32, message = "qd,kd->qk"}> : () -> ()
    %cst_74 = arith.constant dense<0.000000e+00> : vector<16x16xf32>
    %159 = tpu.matmul %157, %158, %cst_74 {dimension_numbers = #tpu.dot_dimension_numbers<[1], [1], [0], [0], [0, 0, 1, 0], [], []>} : vector<16x8xf32>, vector<16x8xf32>, vector<16x16xf32> -> vector<16x16xf32>
    "tpu.trace_stop"() : () -> ()
    %160 = vector.extract_strided_slice %132 {offsets = [0, 56], sizes = [16, 8], strides = [1, 1]} : vector<16x64xf32> to vector<16x8xf32>
    %161 = vector.extract_strided_slice %135 {offsets = [0, 56], sizes = [16, 8], strides = [1, 1]} : vector<16x64xf32> to vector<16x8xf32>
    "tpu.trace_start"() <{level = 10 : i32, message = "qd,kd->qk"}> : () -> ()
    %cst_75 = arith.constant dense<0.000000e+00> : vector<16x16xf32>
    %162 = tpu.matmul %160, %161, %cst_75 {dimension_numbers = #tpu.dot_dimension_numbers<[1], [1], [0], [0], [0, 0, 1, 0], [], []>} : vector<16x8xf32>, vector<16x8xf32>, vector<16x16xf32> -> vector<16x16xf32>
    "tpu.trace_stop"() : () -> ()
    %163 = tpu.concatenate %141, %144, %147, %150, %153, %156, %159, %162 in 0 : vector<16x16xf32>, vector<16x16xf32>, vector<16x16xf32>, vector<16x16xf32>, vector<16x16xf32>, vector<16x16xf32>, vector<16x16xf32>, vector<16x16xf32> -> vector<128x16xf32>
    %164 = arith.addf %163, %0 : vector<128x16xf32>
    %cst_76 = arith.constant dense<0xFF800000> : vector<128xf32>
    %165 = vector.multi_reduction <maximumf>, %164, %cst_76 [1] : vector<128x16xf32> to vector<128xf32>
    %166 = vector.shape_cast %165 : vector<128xf32> to vector<128x1xf32>
    %167 = vector.broadcast %166 : vector<128x1xf32> to vector<128x16xf32>
    %168 = arith.subf %164, %167 : vector<128x16xf32>
    %169 = math.exp %168 : vector<128x16xf32>
    %cst_77 = arith.constant dense<0.000000e+00> : vector<128xf32>
    %170 = vector.multi_reduction <add>, %169, %cst_77 [1] : vector<128x16xf32> to vector<128xf32>
    %171 = vector.shape_cast %170 : vector<128xf32> to vector<128x1xf32>
    %172 = tpu.reciprocal %171 {approx = true} : vector<128x1xf32> -> vector<128x1xf32>
    %173 = vector.broadcast %172 : vector<128x1xf32> to vector<128x16xf32>
    %174 = arith.mulf %169, %173 : vector<128x16xf32>
    %175 = vector.extract_strided_slice %174 {offsets = [0, 0], sizes = [16, 16], strides = [1, 1]} : vector<128x16xf32> to vector<16x16xf32>
    %176 = vector.extract_strided_slice %138 {offsets = [0, 0], sizes = [16, 8], strides = [1, 1]} : vector<16x64xf32> to vector<16x8xf32>
    %cst_78 = arith.constant dense<0.000000e+00> : vector<16x8xf32>
    %177 = tpu.matmul %175, %176, %cst_78 {dimension_numbers = #tpu.dot_dimension_numbers<[1], [0], [0], [1], [0, 0, 1, 1], [], []>} : vector<16x16xf32>, vector<16x8xf32>, vector<16x8xf32> -> vector<16x8xf32>
    %178 = vector.extract_strided_slice %174 {offsets = [16, 0], sizes = [16, 16], strides = [1, 1]} : vector<128x16xf32> to vector<16x16xf32>
    %179 = vector.extract_strided_slice %138 {offsets = [0, 8], sizes = [16, 8], strides = [1, 1]} : vector<16x64xf32> to vector<16x8xf32>
    %cst_79 = arith.constant dense<0.000000e+00> : vector<16x8xf32>
    %180 = tpu.matmul %178, %179, %cst_79 {dimension_numbers = #tpu.dot_dimension_numbers<[1], [0], [0], [1], [0, 0, 1, 1], [], []>} : vector<16x16xf32>, vector<16x8xf32>, vector<16x8xf32> -> vector<16x8xf32>
    %181 = vector.extract_strided_slice %174 {offsets = [32, 0], sizes = [16, 16], strides = [1, 1]} : vector<128x16xf32> to vector<16x16xf32>
    %182 = vector.extract_strided_slice %138 {offsets = [0, 16], sizes = [16, 8], strides = [1, 1]} : vector<16x64xf32> to vector<16x8xf32>
    %cst_80 = arith.constant dense<0.000000e+00> : vector<16x8xf32>
    %183 = tpu.matmul %181, %182, %cst_80 {dimension_numbers = #tpu.dot_dimension_numbers<[1], [0], [0], [1], [0, 0, 1, 1], [], []>} : vector<16x16xf32>, vector<16x8xf32>, vector<16x8xf32> -> vector<16x8xf32>
    %184 = vector.extract_strided_slice %174 {offsets = [48, 0], sizes = [16, 16], strides = [1, 1]} : vector<128x16xf32> to vector<16x16xf32>
    %185 = vector.extract_strided_slice %138 {offsets = [0, 24], sizes = [16, 8], strides = [1, 1]} : vector<16x64xf32> to vector<16x8xf32>
    %cst_81 = arith.constant dense<0.000000e+00> : vector<16x8xf32>
    %186 = tpu.matmul %184, %185, %cst_81 {dimension_numbers = #tpu.dot_dimension_numbers<[1], [0], [0], [1], [0, 0, 1, 1], [], []>} : vector<16x16xf32>, vector<16x8xf32>, vector<16x8xf32> -> vector<16x8xf32>
    %187 = vector.extract_strided_slice %174 {offsets = [64, 0], sizes = [16, 16], strides = [1, 1]} : vector<128x16xf32> to vector<16x16xf32>
    %188 = vector.extract_strided_slice %138 {offsets = [0, 32], sizes = [16, 8], strides = [1, 1]} : vector<16x64xf32> to vector<16x8xf32>
    %cst_82 = arith.constant dense<0.000000e+00> : vector<16x8xf32>
    %189 = tpu.matmul %187, %188, %cst_82 {dimension_numbers = #tpu.dot_dimension_numbers<[1], [0], [0], [1], [0, 0, 1, 1], [], []>} : vector<16x16xf32>, vector<16x8xf32>, vector<16x8xf32> -> vector<16x8xf32>
    %190 = vector.extract_strided_slice %174 {offsets = [80, 0], sizes = [16, 16], strides = [1, 1]} : vector<128x16xf32> to vector<16x16xf32>
    %191 = vector.extract_strided_slice %138 {offsets = [0, 40], sizes = [16, 8], strides = [1, 1]} : vector<16x64xf32> to vector<16x8xf32>
    %cst_83 = arith.constant dense<0.000000e+00> : vector<16x8xf32>
    %192 = tpu.matmul %190, %191, %cst_83 {dimension_numbers = #tpu.dot_dimension_numbers<[1], [0], [0], [1], [0, 0, 1, 1], [], []>} : vector<16x16xf32>, vector<16x8xf32>, vector<16x8xf32> -> vector<16x8xf32>
    %193 = vector.extract_strided_slice %174 {offsets = [96, 0], sizes = [16, 16], strides = [1, 1]} : vector<128x16xf32> to vector<16x16xf32>
    %194 = vector.extract_strided_slice %138 {offsets = [0, 48], sizes = [16, 8], strides = [1, 1]} : vector<16x64xf32> to vector<16x8xf32>
    %cst_84 = arith.constant dense<0.000000e+00> : vector<16x8xf32>
    %195 = tpu.matmul %193, %194, %cst_84 {dimension_numbers = #tpu.dot_dimension_numbers<[1], [0], [0], [1], [0, 0, 1, 1], [], []>} : vector<16x16xf32>, vector<16x8xf32>, vector<16x8xf32> -> vector<16x8xf32>
    %196 = vector.extract_strided_slice %174 {offsets = [112, 0], sizes = [16, 16], strides = [1, 1]} : vector<128x16xf32> to vector<16x16xf32>
    %197 = vector.extract_strided_slice %138 {offsets = [0, 56], sizes = [16, 8], strides = [1, 1]} : vector<16x64xf32> to vector<16x8xf32>
    %cst_85 = arith.constant dense<0.000000e+00> : vector<16x8xf32>
    %198 = tpu.matmul %196, %197, %cst_85 {dimension_numbers = #tpu.dot_dimension_numbers<[1], [0], [0], [1], [0, 0, 1, 1], [], []>} : vector<16x16xf32>, vector<16x8xf32>, vector<16x8xf32> -> vector<16x8xf32>
    %199 = tpu.concatenate %177, %180, %183, %186, %189, %192, %195, %198 in 1 : vector<16x8xf32>, vector<16x8xf32>, vector<16x8xf32>, vector<16x8xf32>, vector<16x8xf32>, vector<16x8xf32>, vector<16x8xf32>, vector<16x8xf32> -> vector<16x64xf32>
    %c1_86 = arith.constant 1 : index
    %c3_87 = arith.constant 3 : index
    %c0_88 = arith.constant 0 : index
    %c0_89 = arith.constant 0 : index
    %200 = vector.load %arg2[%c1_86, %c3_87, %c0_88, %c0_89] : memref<2x4x64x64xf32, #tpu.memory_space<vmem>>, vector<1x1x64x64xf32>
    %201 = vector.shape_cast %200 : vector<1x1x64x64xf32> to vector<64x64xf32>
    %cst_90 = arith.constant dense<0.000000e+00> : vector<16x64xf32>
    %202 = tpu.matmul %199, %201, %cst_90 {dimension_numbers = #tpu.dot_dimension_numbers<[1], [0], [0], [1], [0, 0, 1, 1], [], []>} : vector<16x64xf32>, vector<64x64xf32>, vector<16x64xf32> -> vector<16x64xf32>
    %c1_91 = arith.constant 1 : index
    %c0_92 = arith.constant 0 : index
    %203 = vector.load %arg5[%c1_91, %c0_92] : memref<10x128xf32, #tpu.memory_space<vmem>>, vector<1x64xf32>
    %204 = vector.broadcast %203 : vector<1x64xf32> to vector<16x64xf32>
    %205 = arith.addf %202, %204 : vector<16x64xf32>
    %206 = arith.addf %121, %205 : vector<16x64xf32>
    %207 = vector.extract_strided_slice %206 {offsets = [0, 0], sizes = [16, 32], strides = [1, 1]} : vector<16x64xf32> to vector<16x32xf32>
    %cst_93 = arith.constant dense<0.000000e+00> : vector<16xf32>
    %208 = vector.multi_reduction <add>, %207, %cst_93 [1] : vector<16x32xf32> to vector<16xf32>
    %209 = vector.shape_cast %208 : vector<16xf32> to vector<16x1xf32>
    %cst_94 = arith.constant 3.200000e+01 : f32
    %210 = vector.broadcast %cst_94 : f32 to vector<16x1xf32>
    %211 = arith.divf %209, %210 : vector<16x1xf32>
    %212 = vector.broadcast %211 : vector<16x1xf32> to vector<16x32xf32>
    %213 = arith.subf %207, %212 : vector<16x32xf32>
    %214 = arith.mulf %213, %213 : vector<16x32xf32>
    %cst_95 = arith.constant dense<0.000000e+00> : vector<16xf32>
    %215 = vector.multi_reduction <add>, %214, %cst_95 [1] : vector<16x32xf32> to vector<16xf32>
    %216 = vector.shape_cast %215 : vector<16xf32> to vector<16x1xf32>
    %cst_96 = arith.constant 3.200000e+01 : f32
    %217 = vector.broadcast %cst_96 : f32 to vector<16x1xf32>
    %218 = arith.divf %216, %217 : vector<16x1xf32>
    %cst_97 = arith.constant 9.99999974E-6 : f32
    %219 = vector.broadcast %cst_97 : f32 to vector<16x1xf32>
    %220 = arith.addf %218, %219 : vector<16x1xf32>
    %221 = math.rsqrt %220 : vector<16x1xf32>
    %222 = vector.broadcast %221 : vector<16x1xf32> to vector<16x32xf32>
    %223 = arith.mulf %213, %222 : vector<16x32xf32>
    %224 = vector.extract_strided_slice %206 {offsets = [0, 32], sizes = [16, 32], strides = [1, 1]} : vector<16x64xf32> to vector<16x32xf32>
    %cst_98 = arith.constant dense<0.000000e+00> : vector<16xf32>
    %225 = vector.multi_reduction <add>, %224, %cst_98 [1] : vector<16x32xf32> to vector<16xf32>
    %226 = vector.shape_cast %225 : vector<16xf32> to vector<16x1xf32>
    %cst_99 = arith.constant 3.200000e+01 : f32
    %227 = vector.broadcast %cst_99 : f32 to vector<16x1xf32>
    %228 = arith.divf %226, %227 : vector<16x1xf32>
    %229 = vector.broadcast %228 : vector<16x1xf32> to vector<16x32xf32>
    %230 = arith.subf %224, %229 : vector<16x32xf32>
    %231 = arith.mulf %230, %230 : vector<16x32xf32>
    %cst_100 = arith.constant dense<0.000000e+00> : vector<16xf32>
    %232 = vector.multi_reduction <add>, %231, %cst_100 [1] : vector<16x32xf32> to vector<16xf32>
    %233 = vector.shape_cast %232 : vector<16xf32> to vector<16x1xf32>
    %cst_101 = arith.constant 3.200000e+01 : f32
    %234 = vector.broadcast %cst_101 : f32 to vector<16x1xf32>
    %235 = arith.divf %233, %234 : vector<16x1xf32>
    %cst_102 = arith.constant 9.99999974E-6 : f32
    %236 = vector.broadcast %cst_102 : f32 to vector<16x1xf32>
    %237 = arith.addf %235, %236 : vector<16x1xf32>
    %238 = math.rsqrt %237 : vector<16x1xf32>
    %239 = vector.broadcast %238 : vector<16x1xf32> to vector<16x32xf32>
    %240 = arith.mulf %230, %239 : vector<16x32xf32>
    %241 = tpu.concatenate %223, %240 in 1 : vector<16x32xf32>, vector<16x32xf32> -> vector<16x64xf32>
    %c5 = arith.constant 5 : index
    %c0_103 = arith.constant 0 : index
    %242 = vector.load %arg5[%c5, %c0_103] : memref<10x128xf32, #tpu.memory_space<vmem>>, vector<1x64xf32>
    %243 = vector.broadcast %242 : vector<1x64xf32> to vector<16x64xf32>
    %244 = arith.mulf %241, %243 : vector<16x64xf32>
    %c8 = arith.constant 8 : index
    %c0_104 = arith.constant 0 : index
    %245 = vector.load %arg5[%c8, %c0_104] : memref<10x128xf32, #tpu.memory_space<vmem>>, vector<1x64xf32>
    %246 = vector.broadcast %245 : vector<1x64xf32> to vector<16x64xf32>
    %247 = arith.addf %244, %246 : vector<16x64xf32>
    %c0_105 = arith.constant 0 : index
    %c0_106 = arith.constant 0 : index
    %248 = vector.load %arg3[%c0_105, %c0_106] : memref<64x128xf32, #tpu.memory_space<vmem>>, vector<64x128xf32>
    %cst_107 = arith.constant dense<0.000000e+00> : vector<16x128xf32>
    %249 = tpu.matmul %247, %248, %cst_107 {dimension_numbers = #tpu.dot_dimension_numbers<[1], [0], [0], [1], [0, 0, 1, 1], [], []>} : vector<16x64xf32>, vector<64x128xf32>, vector<16x128xf32> -> vector<16x128xf32>
    %c2_108 = arith.constant 2 : index
    %c0_109 = arith.constant 0 : index
    %250 = vector.load %arg5[%c2_108, %c0_109] : memref<10x128xf32, #tpu.memory_space<vmem>>, vector<1x128xf32>
    %251 = vector.broadcast %250 : vector<1x128xf32> to vector<16x128xf32>
    %252 = arith.addf %249, %251 : vector<16x128xf32>
    %cst_110 = arith.constant 0.000000e+00 : f32
    %253 = vector.broadcast %cst_110 : f32 to vector<16x128xf32>
    %254 = arith.maximumf %252, %253 : vector<16x128xf32>
    %c0_111 = arith.constant 0 : index
    %c0_112 = arith.constant 0 : index
    %255 = vector.load %arg4[%c0_111, %c0_112] : memref<128x64xf32, #tpu.memory_space<vmem>>, vector<128x64xf32>
    %cst_113 = arith.constant dense<0.000000e+00> : vector<16x64xf32>
    %256 = tpu.matmul %254, %255, %cst_113 {dimension_numbers = #tpu.dot_dimension_numbers<[1], [0], [0], [1], [0, 0, 1, 1], [], []>} : vector<16x128xf32>, vector<128x64xf32>, vector<16x64xf32> -> vector<16x64xf32>
    %c3_114 = arith.constant 3 : index
    %c0_115 = arith.constant 0 : index
    %257 = vector.load %arg5[%c3_114, %c0_115] : memref<10x128xf32, #tpu.memory_space<vmem>>, vector<1x64xf32>
    %258 = vector.broadcast %257 : vector<1x64xf32> to vector<16x64xf32>
    %259 = arith.addf %256, %258 : vector<16x64xf32>
    %260 = arith.addf %247, %259 : vector<16x64xf32>
    %261 = vector.extract_strided_slice %260 {offsets = [0, 0], sizes = [16, 32], strides = [1, 1]} : vector<16x64xf32> to vector<16x32xf32>
    %cst_116 = arith.constant dense<0.000000e+00> : vector<16xf32>
    %262 = vector.multi_reduction <add>, %261, %cst_116 [1] : vector<16x32xf32> to vector<16xf32>
    %263 = vector.shape_cast %262 : vector<16xf32> to vector<16x1xf32>
    %cst_117 = arith.constant 3.200000e+01 : f32
    %264 = vector.broadcast %cst_117 : f32 to vector<16x1xf32>
    %265 = arith.divf %263, %264 : vector<16x1xf32>
    %266 = vector.broadcast %265 : vector<16x1xf32> to vector<16x32xf32>
    %267 = arith.subf %261, %266 : vector<16x32xf32>
    %268 = arith.mulf %267, %267 : vector<16x32xf32>
    %cst_118 = arith.constant dense<0.000000e+00> : vector<16xf32>
    %269 = vector.multi_reduction <add>, %268, %cst_118 [1] : vector<16x32xf32> to vector<16xf32>
    %270 = vector.shape_cast %269 : vector<16xf32> to vector<16x1xf32>
    %cst_119 = arith.constant 3.200000e+01 : f32
    %271 = vector.broadcast %cst_119 : f32 to vector<16x1xf32>
    %272 = arith.divf %270, %271 : vector<16x1xf32>
    %cst_120 = arith.constant 9.99999974E-6 : f32
    %273 = vector.broadcast %cst_120 : f32 to vector<16x1xf32>
    %274 = arith.addf %272, %273 : vector<16x1xf32>
    %275 = math.rsqrt %274 : vector<16x1xf32>
    %276 = vector.broadcast %275 : vector<16x1xf32> to vector<16x32xf32>
    %277 = arith.mulf %267, %276 : vector<16x32xf32>
    %278 = vector.extract_strided_slice %260 {offsets = [0, 32], sizes = [16, 32], strides = [1, 1]} : vector<16x64xf32> to vector<16x32xf32>
    %cst_121 = arith.constant dense<0.000000e+00> : vector<16xf32>
    %279 = vector.multi_reduction <add>, %278, %cst_121 [1] : vector<16x32xf32> to vector<16xf32>
    %280 = vector.shape_cast %279 : vector<16xf32> to vector<16x1xf32>
    %cst_122 = arith.constant 3.200000e+01 : f32
    %281 = vector.broadcast %cst_122 : f32 to vector<16x1xf32>
    %282 = arith.divf %280, %281 : vector<16x1xf32>
    %283 = vector.broadcast %282 : vector<16x1xf32> to vector<16x32xf32>
    %284 = arith.subf %278, %283 : vector<16x32xf32>
    %285 = arith.mulf %284, %284 : vector<16x32xf32>
    %cst_123 = arith.constant dense<0.000000e+00> : vector<16xf32>
    %286 = vector.multi_reduction <add>, %285, %cst_123 [1] : vector<16x32xf32> to vector<16xf32>
    %287 = vector.shape_cast %286 : vector<16xf32> to vector<16x1xf32>
    %cst_124 = arith.constant 3.200000e+01 : f32
    %288 = vector.broadcast %cst_124 : f32 to vector<16x1xf32>
    %289 = arith.divf %287, %288 : vector<16x1xf32>
    %cst_125 = arith.constant 9.99999974E-6 : f32
    %290 = vector.broadcast %cst_125 : f32 to vector<16x1xf32>
    %291 = arith.addf %289, %290 : vector<16x1xf32>
    %292 = math.rsqrt %291 : vector<16x1xf32>
    %293 = vector.broadcast %292 : vector<16x1xf32> to vector<16x32xf32>
    %294 = arith.mulf %284, %293 : vector<16x32xf32>
    %295 = tpu.concatenate %277, %294 in 1 : vector<16x32xf32>, vector<16x32xf32> -> vector<16x64xf32>
    %c6 = arith.constant 6 : index
    %c0_126 = arith.constant 0 : index
    %296 = vector.load %arg5[%c6, %c0_126] : memref<10x128xf32, #tpu.memory_space<vmem>>, vector<1x64xf32>
    %297 = vector.broadcast %296 : vector<1x64xf32> to vector<16x64xf32>
    %298 = arith.mulf %295, %297 : vector<16x64xf32>
    %c9 = arith.constant 9 : index
    %c0_127 = arith.constant 0 : index
    %299 = vector.load %arg5[%c9, %c0_127] : memref<10x128xf32, #tpu.memory_space<vmem>>, vector<1x64xf32>
    %300 = vector.broadcast %299 : vector<1x64xf32> to vector<16x64xf32>
    %301 = arith.addf %298, %300 : vector<16x64xf32>
    %302 = vector.extract_strided_slice %301 {offsets = [0, 0], sizes = [16, 32], strides = [1, 1]} : vector<16x64xf32> to vector<16x32xf32>
    %c0_128 = arith.constant 0 : index
    %c0_129 = arith.constant 0 : index
    %303 = vector.load %arg6[%c0_128, %c0_129] : memref<16x32xf32, #tpu.memory_space<vmem>>, vector<16x32xf32>
    tpu.vector_store %arg6[%c0_128, %c0_129], %302 {strides = array<i32>} : memref<16x32xf32, #tpu.memory_space<vmem>>, vector<16x32xf32>,
    %304 = vector.extract_strided_slice %301 {offsets = [0, 32], sizes = [16, 32], strides = [1, 1]} : vector<16x64xf32> to vector<16x32xf32>
    %c0_130 = arith.constant 0 : index
    %c0_131 = arith.constant 0 : index
    %305 = vector.load %arg7[%c0_130, %c0_131] : memref<16x32xf32, #tpu.memory_space<vmem>>, vector<16x32xf32>
    tpu.vector_store %arg7[%c0_130, %c0_131], %304 {strides = array<i32>} : memref<16x32xf32, #tpu.memory_space<vmem>>, vector<16x32xf32>,
    return
  }
}

</mosaic_0001>

<llo_original>
// kernel: _lambda_.1
$region0: #{_lambda_.1}
  #allocation0 [shape = 'u32[]', space=smem, size = 0x4, offset = 0x4, fixed_abs, tag = 'smem constant byte address 0x4 - core index']
  #allocation1 [shape = 'u32[144,128]{1,0:T(1,128)}', space=vmem, size = 0x12000, scoped, tag = 'internal scratch']
  %s0 = inlined_call_operand.vmem [shape: f32[16,64], index: 0, kind: input, shape index: {}]
  %s1 = inlined_call_operand.hbm [shape: f32[128,16], index: 1, kind: input, shape index: {}]
  %s2 = inlined_call_operand.hbm [shape: f32[2,4,64,64], index: 2, kind: input, shape index: {}]
  %s3 = inlined_call_operand.vmem [shape: f32[64,128], index: 3, kind: input, shape index: {}]
  %s4 = inlined_call_operand.hbm [shape: f32[128,64], index: 4, kind: input, shape index: {}]
  %s5 = inlined_call_operand.hbm [shape: f32[10,128], index: 5, kind: input, shape index: {}]
  %s6 = inlined_call_operand.hbm [shape: f32[16,32], index: 6, kind: output, shape index: {0}]
  %s7 = inlined_call_operand.hbm [shape: f32[16,32], index: 7, kind: output, shape index: {1}]
  %8 = xla_tuple %s6, %s7
  %s9 = sld [smem:[#allocation0]]
  $region58: #{_lambda_.1} parent=0
    _
  %s11 = ssub.s32 1, %s9
  %s12 = scalar_select 0, %s11, %s9
  $region1: #{_lambda_.1} parent=0
    #allocation2 [shape = 'u8[65536]{0}', space=vmem, size = 0x10000, scoped, tag = 'input window, operand 1, single buffered']
    #allocation3 [shape = 's32[1]{0}', space=sflag, size = 0x4, scoped, tag = 'scoped memory for _lambda_.1']
    #allocation4 [shape = 's32[1]{0}', space=sflag, size = 0x4, scoped, tag = 'scoped memory for _lambda_.1']
    #allocation5 [shape = 'u8[262144]{0}', space=vmem, size = 0x40000, scoped, tag = 'input window, operand 2, single buffered']
    #allocation6 [shape = 's32[1]{0}', space=sflag, size = 0x4, scoped, tag = 'scoped memory for _lambda_.1']
    #allocation7 [shape = 'u8[65536]{0}', space=vmem, size = 0x10000, scoped, tag = 'input window, operand 4, single buffered']
    #allocation8 [shape = 'u8[8192]{0}', space=vmem, size = 0x2000, scoped, tag = 'input window, operand 5, single buffered']
    #allocation9 [shape = 's32[1]{0}', space=sflag, size = 0x4, scoped, tag = 'scoped memory for _lambda_.1']
    #allocation10 [shape = 'u8[8192]{0}', space=vmem, size = 0x2000, scoped, tag = 'output window, operand 0, single buffered']
    #allocation11 [shape = 'u8[8192]{0}', space=vmem, size = 0x2000, scoped, tag = 'output window, operand 1, single buffered']
    #allocation12 [shape = 's32[1]{0}', space=sflag, size = 0x4, scoped, tag = 'scoped memory for _lambda_.1']
    %13 = vsyncpa [#allocation3], 0
    %14 = vsyncpa [#allocation6], 0
    %15 = vsyncpa [#allocation9], 0
    %16 = vsyncpa [#allocation4], 0
    %17 = vsyncpa [#allocation12], 0
    // Predicated region
    $region2: #{_lambda_.1} parent=1 // pred_check
      _
    $region3: #{_lambda_.1} parent=1 // pred_check_branch
      %19 = sbr.rel (0) target = $region5
    $region4: #{_lambda_.1} parent=1 // pred_region
      _
    $region5: #{_lambda_.1} parent=1 // pred_fallthru
      _
    // Predicated region
    $region6: #{_lambda_.1} parent=1 // pred_check
      _
    $region7: #{_lambda_.1} parent=1 // pred_check_branch
      %21 = sbr.rel (0) target = $region9
    $region8: #{_lambda_.1} parent=1 // pred_region
      %s23 = ssub.s32 2048, 2048
      %24 = vsyncadd [#allocation3], %s23
      %s25 = sshll.u32 [#allocation2], 4
      %s26 = int_to_ptr.vmem [resolvable:$true] %s25
      %31 = dma.hbm_to_vmem [thread:$0]  %s1, 2048, %s26, [#allocation3], 128, 128, 8
    $region9: #{_lambda_.1} parent=1 // pred_fallthru
      _
    // Predicated region
    $region10: #{_lambda_.1} parent=1 // pred_check
      _
    $region11: #{_lambda_.1} parent=1 // pred_check_branch
      %33 = sbr.rel (0) target = $region13
    $region12: #{_lambda_.1} parent=1 // pred_region
      %s35 = ssub.s32 8192, 8192
      %36 = vsyncadd [#allocation6], %s35
      %s37 = sshll.u32 [#allocation5], 4
      %s38 = int_to_ptr.vmem [resolvable:$true] %s37
      %43 = dma.hbm_to_vmem [thread:$0]  %s2, 8192, %s38, [#allocation6], 128, 128, 8
    $region13: #{_lambda_.1} parent=1 // pred_fallthru
      _
    // Predicated region
    $region14: #{_lambda_.1} parent=1 // pred_check
      _
    $region15: #{_lambda_.1} parent=1 // pred_check_branch
      %45 = sbr.rel (0) target = $region17
    $region16: #{_lambda_.1} parent=1 // pred_region
      _
    $region17: #{_lambda_.1} parent=1 // pred_fallthru
      _
    // Predicated region
    $region18: #{_lambda_.1} parent=1 // pred_check
      _
    $region19: #{_lambda_.1} parent=1 // pred_check_branch
      %47 = sbr.rel (0) target = $region21
    $region20: #{_lambda_.1} parent=1 // pred_region
      %s49 = ssub.s32 2048, 2048
      %50 = vsyncadd [#allocation6], %s49
      %s51 = sshll.u32 [#allocation7], 4
      %s52 = int_to_ptr.vmem [resolvable:$true] %s51
      %57 = dma.hbm_to_vmem [thread:$0]  %s4, 2048, %s52, [#allocation6], 128, 128, 8
    $region21: #{_lambda_.1} parent=1 // pred_fallthru
      _
    // Predicated region
    $region22: #{_lambda_.1} parent=1 // pred_check
      _
    $region23: #{_lambda_.1} parent=1 // pred_check_branch
      %59 = sbr.rel (0) target = $region25
    $region24: #{_lambda_.1} parent=1 // pred_region
      %s61 = ssub.s32 256, 256
      %62 = vsyncadd [#allocation9], %s61
      %s63 = sshll.u32 [#allocation8], 4
      %s64 = int_to_ptr.vmem [resolvable:$true] %s63
      %69 = dma.hbm_to_vmem [thread:$0]  %s5, 256, %s64, [#allocation9], 128, 128, 8
    $region25: #{_lambda_.1} parent=1 // pred_fallthru
      _
    // Predicated region
    $region26: #{_lambda_.1} parent=1 // pred_check
      _
    $region27: #{_lambda_.1} parent=1 // pred_check_branch
      %71 = sbr.rel (0) target = $region29
    $region28: #{_lambda_.1} parent=1 // pred_region
      %72 = dma.done [#allocation3], 2048
    $region29: #{_lambda_.1} parent=1 // pred_fallthru
      _
    // Predicated region
    $region30: #{_lambda_.1} parent=1 // pred_check
      _
    $region31: #{_lambda_.1} parent=1 // pred_check_branch
      %74 = sbr.rel (0) target = $region33
    $region32: #{_lambda_.1} parent=1 // pred_region
      %75 = dma.done [#allocation6], 8192
    $region33: #{_lambda_.1} parent=1 // pred_fallthru
      _
    // Predicated region
    $region34: #{_lambda_.1} parent=1 // pred_check
      _
    $region35: #{_lambda_.1} parent=1 // pred_check_branch
      %77 = sbr.rel (0) target = $region37
    $region36: #{_lambda_.1} parent=1 // pred_region
      %78 = dma.done [#allocation6], 2048
    $region37: #{_lambda_.1} parent=1 // pred_fallthru
      _
    // Predicated region
    $region38: #{_lambda_.1} parent=1 // pred_check
      _
    $region39: #{_lambda_.1} parent=1 // pred_check_branch
      %80 = sbr.rel (0) target = $region41
    $region40: #{_lambda_.1} parent=1 // pred_region
      %81 = dma.done [#allocation9], 256
    $region41: #{_lambda_.1} parent=1 // pred_fallthru
      _
    %v82 = vld [vmem:[#allocation2] sm:$0xff]
    %v83 = vld [vmem:[#allocation2 + $0x8] sm:$0xff]
    %v84 = vld [vmem:[#allocation2 + $0x10] sm:$0xff]
    %v85 = vld [vmem:[#allocation2 + $0x18] sm:$0xff]
    %v86 = vld [vmem:[#allocation2 + $0x20] sm:$0xff]
    %v87 = vld [vmem:[#allocation2 + $0x28] sm:$0xff]
    %v88 = vld [vmem:[#allocation2 + $0x30] sm:$0xff]
    %v89 = vld [vmem:[#allocation2 + $0x38] sm:$0xff]
    %v90 = vld [vmem:[#allocation2 + $0x40] sm:$0xff]
    %v91 = vld [vmem:[#allocation2 + $0x48] sm:$0xff]
    %v92 = vld [vmem:[#allocation2 + $0x50] sm:$0xff]
    %v93 = vld [vmem:[#allocation2 + $0x58] sm:$0xff]
    %v94 = vld [vmem:[#allocation2 + $0x60] sm:$0xff]
    %v95 = vld [vmem:[#allocation2 + $0x68] sm:$0xff]
    %v96 = vld [vmem:[#allocation2 + $0x70] sm:$0xff]
    %v97 = vld [vmem:[#allocation2 + $0x78] sm:$0xff]
    %v98 = vld [vmem:[%s0] sm:$0xff]
    %v99 = vld [vmem:[%s0 + $0x8] sm:$0xff]
    %v100 = vld [vmem:[#allocation5] sm:$0xff]
    %v101 = vld [vmem:[#allocation5 + $0x8] sm:$0xff]
    %v102 = vld [vmem:[#allocation5 + $0x10] sm:$0xff]
    %v103 = vld [vmem:[#allocation5 + $0x18] sm:$0xff]
    %v104 = vld [vmem:[#allocation5 + $0x20] sm:$0xff]
    %v105 = vld [vmem:[#allocation5 + $0x28] sm:$0xff]
    %v106 = vld [vmem:[#allocation5 + $0x30] sm:$0xff]
    %v107 = vld [vmem:[#allocation5 + $0x38] sm:$0xff]
    %vm108 = vcmask 523264
    %v110 = vsel %vm108, %v98, 0
    %v113 = vsel %vm108, %v99, 0
    %115 = vmatprep.subr.mxu0 0.0
    %116 = vmatpush1.msra.mxu0 %v100
    %117 = vmatprep.subr.mxu0 0.0
    %118 = vmatpush1.msra.mxu0 %v101
    %119 = vmatprep.subr.mxu0 0.0
    %120 = vmatpush1.msra.mxu0 %v102
    %121 = vmatprep.subr.mxu0 0.0
    %122 = vmatpush1.msra.mxu0 %v103
    %123 = vmatprep.subr.mxu0 0.0
    %124 = vmatpush1.msra.mxu0 %v104
    %125 = vmatprep.subr.mxu0 0.0
    %126 = vmatpush1.msra.mxu0 %v105
    %127 = vmatprep.subr.mxu0 0.0
    %128 = vmatpush1.msra.mxu0 %v106
    %129 = vmatprep.subr.mxu0 0.0
    %130 = vmatpush1.msra.mxu0 %v107
    %131 = vmatprep.subr.mxu0 0.0
    %132 = vmatpush1.msra.mxu0 0.0
    %133 = vmatprep.subr.mxu0 0.0
    %134 = vmatpush1.msra.mxu0 0.0
    %135 = vmatprep.subr.mxu0 0.0
    %136 = vmatpush1.msra.mxu0 0.0
    %137 = vmatprep.subr.mxu0 0.0
    %138 = vmatpush1.msra.mxu0 0.0
    %139 = vmatprep.subr.mxu0 0.0
    %140 = vmatpush1.msra.mxu0 0.0
    %141 = vmatprep.subr.mxu0 0.0
    %142 = vmatpush1.msra.mxu0 0.0
    %143 = vmatprep.subr.mxu0 0.0
    %144 = vmatpush1.msra.mxu0 0.0
    %145 = vmatprep.subr.mxu0 0.0
    %146 = vmatpush1.msra.mxu0 0.0
    %147 = vmatprep.subr.mxu0 0.0
    %148 = vmatpush1.msra.mxu0 0.0
    %149 = vmatprep.subr.mxu0 0.0
    %150 = vmatpush1.msra.mxu0 0.0
    %151 = vmatprep.subr.mxu0 0.0
    %152 = vmatpush1.msra.mxu0 0.0
    %153 = vmatprep.subr.mxu0 0.0
    %154 = vmatpush1.msra.mxu0 0.0
    %155 = vmatprep.subr.mxu0 0.0
    %156 = vmatpush1.msra.mxu0 0.0
    %157 = vmatprep.subr.mxu0 0.0
    %158 = vmatpush1.msra.mxu0 0.0
    %159 = vmatprep.subr.mxu0 0.0
    %160 = vmatpush1.msra.mxu0 0.0
    %161 = vmatprep.subr.mxu0 0.0
    %162 = vmatpush1.msra.mxu0 0.0
    %163 = vmatprep.subr.mxu0 0.0
    %164 = vmatpush1.msra.mxu0 0.0
    %165 = vmatprep.subr.mxu0 0.0
    %166 = vmatpush1.msra.mxu0 0.0
    %167 = vmatprep.subr.mxu0 0.0
    %168 = vmatpush1.msra.mxu0 0.0
    %169 = vmatprep.subr.mxu0 0.0
    %170 = vmatpush1.msra.mxu0 0.0
    %171 = vmatprep.subr.mxu0 0.0
    %172 = vmatpush1.msra.mxu0 0.0
    %173 = vmatprep.subr.mxu0 0.0
    %174 = vmatpush1.msra.mxu0 0.0
    %175 = vmatprep.subr.mxu0 0.0
    %176 = vmatpush1.msra.mxu0 0.0
    %177 = vmatprep.subr.mxu0 0.0
    %178 = vmatpush1.msra.mxu0 0.0
    %179 = vmatprep.mubr.f32.mxu0 0.0
    %180 = vmatmul.mubr.f32.gmra.mrb[0].mxu0 %v110
    %v181 = vpop.f32.mrb[0].mxu0
    %v182 = vadd.f32 0.0, %v181
    %v183 = vpop.f32.mrb[0].mxu0
    %184 = vmatprep.mubr.f32.mxu0 0.0
    %185 = vmatmul.mubr.f32.gmra.mrb[0].mxu0 %v113
    %v186 = vpop.f32.mrb[0].mxu0
    %v187 = vadd.f32 0.0, %v186
    %v188 = vpop.f32.mrb[0].mxu0
    %189 = vdwg.mxu0
    %v190 = vmul.f32 %v182, 0.35355338
    %v191 = vmul.f32 %v187, 0.35355338
    %s192 = scalar_lea.vmem [#allocation5], 64
    %v193 = vld [vmem:[%s192] sm:$0xff]
    %v194 = vld [vmem:[%s192 + $0x8] sm:$0xff]
    %v195 = vld [vmem:[%s192 + $0x10] sm:$0xff]
    %v196 = vld [vmem:[%s192 + $0x18] sm:$0xff]
    %v197 = vld [vmem:[%s192 + $0x20] sm:$0xff]
    %v198 = vld [vmem:[%s192 + $0x28] sm:$0xff]
    %v199 = vld [vmem:[%s192 + $0x30] sm:$0xff]
    %v200 = vld [vmem:[%s192 + $0x38] sm:$0xff]
    %201 = vmatprep.subr.mxu0 0.0
    %202 = vmatpush1.msra.mxu0 %v193
    %203 = vmatprep.subr.mxu0 0.0
    %204 = vmatpush1.msra.mxu0 %v194
    %205 = vmatprep.subr.mxu0 0.0
    %206 = vmatpush1.msra.mxu0 %v195
    %207 = vmatprep.subr.mxu0 0.0
    %208 = vmatpush1.msra.mxu0 %v196
    %209 = vmatprep.subr.mxu0 0.0
    %210 = vmatpush1.msra.mxu0 %v197
    %211 = vmatprep.subr.mxu0 0.0
    %212 = vmatpush1.msra.mxu0 %v198
    %213 = vmatprep.subr.mxu0 0.0
    %214 = vmatpush1.msra.mxu0 %v199
    %215 = vmatprep.subr.mxu0 0.0
    %216 = vmatpush1.msra.mxu0 %v200
    %217 = vmatprep.subr.mxu0 0.0
    %218 = vmatpush1.msra.mxu0 0.0
    %219 = vmatprep.subr.mxu0 0.0
    %220 = vmatpush1.msra.mxu0 0.0
    %221 = vmatprep.subr.mxu0 0.0
    %222 = vmatpush1.msra.mxu0 0.0
    %223 = vmatprep.subr.mxu0 0.0
    %224 = vmatpush1.msra.mxu0 0.0
    %225 = vmatprep.subr.mxu0 0.0
    %226 = vmatpush1.msra.mxu0 0.0
    %227 = vmatprep.subr.mxu0 0.0
    %228 = vmatpush1.msra.mxu0 0.0
    %229 = vmatprep.subr.mxu0 0.0
    %230 = vmatpush1.msra.mxu0 0.0
    %231 = vmatprep.subr.mxu0 0.0
    %232 = vmatpush1.msra.mxu0 0.0
    %233 = vmatprep.subr.mxu0 0.0
    %234 = vmatpush1.msra.mxu0 0.0
    %235 = vmatprep.subr.mxu0 0.0
    %236 = vmatpush1.msra.mxu0 0.0
    %237 = vmatprep.subr.mxu0 0.0
    %238 = vmatpush1.msra.mxu0 0.0
    %239 = vmatprep.subr.mxu0 0.0
    %240 = vmatpush1.msra.mxu0 0.0
    %241 = vmatprep.subr.mxu0 0.0
    %242 = vmatpush1.msra.mxu0 0.0
    %243 = vmatprep.subr.mxu0 0.0
    %244 = vmatpush1.msra.mxu0 0.0
    %245 = vmatprep.subr.mxu0 0.0
    %246 = vmatpush1.msra.mxu0 0.0
    %247 = vmatprep.subr.mxu0 0.0
    %248 = vmatpush1.msra.mxu0 0.0
    %249 = vmatprep.subr.mxu0 0.0
    %250 = vmatpush1.msra.mxu0 0.0
    %251 = vmatprep.subr.mxu0 0.0
    %252 = vmatpush1.msra.mxu0 0.0
    %253 = vmatprep.subr.mxu0 0.0
    %254 = vmatpush1.msra.mxu0 0.0
    %255 = vmatprep.subr.mxu0 0.0
    %256 = vmatpush1.msra.mxu0 0.0
    %257 = vmatprep.subr.mxu0 0.0
    %258 = vmatpush1.msra.mxu0 0.0
    %259 = vmatprep.subr.mxu0 0.0
    %260 = vmatpush1.msra.mxu0 0.0
    %261 = vmatprep.subr.mxu0 0.0
    %262 = vmatpush1.msra.mxu0 0.0
    %263 = vmatprep.subr.mxu0 0.0
    %264 = vmatpush1.msra.mxu0 0.0
    %265 = vmatprep.mubr.f32.mxu0 0.0
    %266 = vmatmul.mubr.f32.gmra.mrb[0].mxu0 %v110
    %v267 = vpop.f32.mrb[0].mxu0
    %v268 = vadd.f32 0.0, %v267
    %v269 = vpop.f32.mrb[0].mxu0
    %270 = vmatprep.mubr.f32.mxu0 0.0
    %271 = vmatmul.mubr.f32.gmra.mrb[0].mxu0 %v113
    %v272 = vpop.f32.mrb[0].mxu0
    %v273 = vadd.f32 0.0, %v272
    %v274 = vpop.f32.mrb[0].mxu0
    %275 = vdwg.mxu0
    %s276 = scalar_lea.vmem [#allocation5], 128
    %v277 = vld [vmem:[%s276] sm:$0xff]
    %v278 = vld [vmem:[%s276 + $0x8] sm:$0xff]
    %v279 = vld [vmem:[%s276 + $0x10] sm:$0xff]
    %v280 = vld [vmem:[%s276 + $0x18] sm:$0xff]
    %v281 = vld [vmem:[%s276 + $0x20] sm:$0xff]
    %v282 = vld [vmem:[%s276 + $0x28] sm:$0xff]
    %v283 = vld [vmem:[%s276 + $0x30] sm:$0xff]
    %v284 = vld [vmem:[%s276 + $0x38] sm:$0xff]
    %285 = vmatprep.subr.mxu0 0.0
    %286 = vmatpush1.msra.mxu0 %v277
    %287 = vmatprep.subr.mxu0 0.0
    %288 = vmatpush1.msra.mxu0 %v278
    %289 = vmatprep.subr.mxu0 0.0
    %290 = vmatpush1.msra.mxu0 %v279
    %291 = vmatprep.subr.mxu0 0.0
    %292 = vmatpush1.msra.mxu0 %v280
    %293 = vmatprep.subr.mxu0 0.0
    %294 = vmatpush1.msra.mxu0 %v281
    %295 = vmatprep.subr.mxu0 0.0
    %296 = vmatpush1.msra.mxu0 %v282
    %297 = vmatprep.subr.mxu0 0.0
    %298 = vmatpush1.msra.mxu0 %v283
    %299 = vmatprep.subr.mxu0 0.0
    %300 = vmatpush1.msra.mxu0 %v284
    %301 = vmatprep.subr.mxu0 0.0
    %302 = vmatpush1.msra.mxu0 0.0
    %303 = vmatprep.subr.mxu0 0.0
    %304 = vmatpush1.msra.mxu0 0.0
    %305 = vmatprep.subr.mxu0 0.0
    %306 = vmatpush1.msra.mxu0 0.0
    %307 = vmatprep.subr.mxu0 0.0
    %308 = vmatpush1.msra.mxu0 0.0
    %309 = vmatprep.subr.mxu0 0.0
    %310 = vmatpush1.msra.mxu0 0.0
    %311 = vmatprep.subr.mxu0 0.0
    %312 = vmatpush1.msra.mxu0 0.0
    %313 = vmatprep.subr.mxu0 0.0
    %314 = vmatpush1.msra.mxu0 0.0
    %315 = vmatprep.subr.mxu0 0.0
    %316 = vmatpush1.msra.mxu0 0.0
    %317 = vmatprep.subr.mxu0 0.0
    %318 = vmatpush1.msra.mxu0 0.0
    %319 = vmatprep.subr.mxu0 0.0
    %320 = vmatpush1.msra.mxu0 0.0
    %321 = vmatprep.subr.mxu0 0.0
    %322 = vmatpush1.msra.mxu0 0.0
    %323 = vmatprep.subr.mxu0 0.0
    %324 = vmatpush1.msra.mxu0 0.0
    %325 = vmatprep.subr.mxu0 0.0
    %326 = vmatpush1.msra.mxu0 0.0
    %327 = vmatprep.subr.mxu0 0.0
    %328 = vmatpush1.msra.mxu0 0.0
    %329 = vmatprep.subr.mxu0 0.0
    %330 = vmatpush1.msra.mxu0 0.0
    %331 = vmatprep.subr.mxu0 0.0
    %332 = vmatpush1.msra.mxu0 0.0
    %333 = vmatprep.subr.mxu0 0.0
    %334 = vmatpush1.msra.mxu0 0.0
    %335 = vmatprep.subr.mxu0 0.0
    %336 = vmatpush1.msra.mxu0 0.0
    %337 = vmatprep.subr.mxu0 0.0
    %338 = vmatpush1.msra.mxu0 0.0
    %339 = vmatprep.subr.mxu0 0.0
    %340 = vmatpush1.msra.mxu0 0.0
    %341 = vmatprep.subr.mxu0 0.0
    %342 = vmatpush1.msra.mxu0 0.0
    %343 = vmatprep.subr.mxu0 0.0
    %344 = vmatpush1.msra.mxu0 0.0
    %345 = vmatprep.subr.mxu0 0.0
    %346 = vmatpush1.msra.mxu0 0.0
    %347 = vmatprep.subr.mxu0 0.0
    %348 = vmatpush1.msra.mxu0 0.0
    %349 = vmatprep.mubr.f32.mxu0 0.0
    %350 = vmatmul.mubr.f32.gmra.mrb[0].mxu0 %v110
    %v351 = vpop.f32.mrb[0].mxu0
    %v352 = vadd.f32 0.0, %v351
    %v353 = vpop.f32.mrb[0].mxu0
    %354 = vmatprep.mubr.f32.mxu0 0.0
    %355 = vmatmul.mubr.f32.gmra.mrb[0].mxu0 %v113
    %v356 = vpop.f32.mrb[0].mxu0
    %v357 = vadd.f32 0.0, %v356
    %v358 = vpop.f32.mrb[0].mxu0
    %359 = vdwg.mxu0
    %vm360 = vcmask 64512
    %v362 = vsel %vm360, %v190, 0
    %v365 = vsel %vm360, %v191, 0
    %v368 = vsel %vm360, %v268, 0
    %v371 = vsel %vm360, %v273, 0
    %373 = vmatprep.subr.mxu0 0.0
    %374 = vmatpush1.xpose.msra.mxu0 %v368
    %375 = vmatprep.subr.mxu0 0.0
    %376 = vmatpush1.xpose.msra.mxu0 %v371
    %377 = vmatprep.subr.mxu0 0.0
    %378 = vmatpush1.xpose.msra.mxu0 0.0
    %379 = vmatprep.subr.mxu0 0.0
    %380 = vmatpush1.xpose.msra.mxu0 0.0
    %381 = vmatprep.subr.mxu0 0.0
    %382 = vmatpush1.xpose.msra.mxu0 0.0
    %383 = vmatprep.subr.mxu0 0.0
    %384 = vmatpush1.xpose.msra.mxu0 0.0
    %385 = vmatprep.subr.mxu0 0.0
    %386 = vmatpush1.xpose.msra.mxu0 0.0
    %387 = vmatprep.subr.mxu0 0.0
    %388 = vmatpush1.xpose.msra.mxu0 0.0
    %389 = vmatprep.subr.mxu0 0.0
    %390 = vmatpush1.xpose.msra.mxu0 0.0
    %391 = vmatprep.subr.mxu0 0.0
    %392 = vmatpush1.xpose.msra.mxu0 0.0
    %393 = vmatprep.subr.mxu0 0.0
    %394 = vmatpush1.xpose.msra.mxu0 0.0
    %395 = vmatprep.subr.mxu0 0.0
    %396 = vmatpush1.xpose.msra.mxu0 0.0
    %397 = vmatprep.subr.mxu0 0.0
    %398 = vmatpush1.xpose.msra.mxu0 0.0
    %399 = vmatprep.subr.mxu0 0.0
    %400 = vmatpush1.xpose.msra.mxu0 0.0
    %401 = vmatprep.subr.mxu0 0.0
    %402 = vmatpush1.xpose.msra.mxu0 0.0
    %403 = vmatprep.subr.mxu0 0.0
    %404 = vmatpush1.xpose.msra.mxu0 0.0
    %405 = vmatprep.subr.mxu0 0.0
    %406 = vmatpush1.xpose.msra.mxu0 0.0
    %407 = vmatprep.subr.mxu0 0.0
    %408 = vmatpush1.xpose.msra.mxu0 0.0
    %409 = vmatprep.subr.mxu0 0.0
    %410 = vmatpush1.xpose.msra.mxu0 0.0
    %411 = vmatprep.subr.mxu0 0.0
    %412 = vmatpush1.xpose.msra.mxu0 0.0
    %413 = vmatprep.subr.mxu0 0.0
    %414 = vmatpush1.xpose.msra.mxu0 0.0
    %415 = vmatprep.subr.mxu0 0.0
    %416 = vmatpush1.xpose.msra.mxu0 0.0
    %417 = vmatprep.subr.mxu0 0.0
    %418 = vmatpush1.xpose.msra.mxu0 0.0
    %419 = vmatprep.subr.mxu0 0.0
    %420 = vmatpush1.xpose.msra.mxu0 0.0
    %421 = vmatprep.subr.mxu0 0.0
    %422 = vmatpush1.xpose.msra.mxu0 0.0
    %423 = vmatprep.subr.mxu0 0.0
    %424 = vmatpush1.xpose.msra.mxu0 0.0
    %425 = vmatprep.subr.mxu0 0.0
    %426 = vmatpush1.xpose.msra.mxu0 0.0
    %427 = vmatprep.subr.mxu0 0.0
    %428 = vmatpush1.xpose.msra.mxu0 0.0
    %429 = vmatprep.subr.mxu0 0.0
    %430 = vmatpush1.xpose.msra.mxu0 0.0
    %431 = vmatprep.subr.mxu0 0.0
    %432 = vmatpush1.xpose.msra.mxu0 0.0
    %433 = vmatprep.subr.mxu0 0.0
    %434 = vmatpush1.xpose.msra.mxu0 0.0
    %435 = vmatprep.subr.mxu0 0.0
    %436 = vmatpush1.xpose.msra.mxu0 0.0
    %437 = vmatprep.mubr.f32.mxu0 0.0
    %438 = vmatmul.mubr.f32.gmra.mrb[0].mxu0 %v362
    %v439 = vpop.f32.mrb[0].mxu0
    %v440 = vadd.f32 0.0, %v439
    %v441 = vpop.f32.mrb[0].mxu0
    %442 = vmatprep.mubr.f32.mxu0 0.0
    %443 = vmatmul.mubr.f32.gmra.mrb[0].mxu0 %v365
    %v444 = vpop.f32.mrb[0].mxu0
    %v445 = vadd.f32 0.0, %v444
    %v446 = vpop.f32.mrb[0].mxu0
    %447 = vdwg.mxu0
    %448 = vrot.lane.b32.xlu0 %v190, 120
    %v449 = vpop.permute.xlu0 %448
    %450 = vrot.lane.b32.xlu0 %v191, 120
    %v451 = vpop.permute.xlu0 %450
    %452 = vrot.lane.b32.xlu0 %v268, 120
    %v453 = vpop.permute.xlu0 %452
    %454 = vrot.lane.b32.xlu0 %v273, 120
    %v455 = vpop.permute.xlu0 %454
    %v456 = vsel %vm360, %v449, 0
    %v458 = vsel %vm360, %v451, 0
    %v460 = vsel %vm360, %v453, 0
    %v462 = vsel %vm360, %v455, 0
    %464 = vmatprep.subr.mxu0 0.0
    %465 = vmatpush1.xpose.msra.mxu0 %v460
    %466 = vmatprep.subr.mxu0 0.0
    %467 = vmatpush1.xpose.msra.mxu0 %v462
    %468 = vmatprep.subr.mxu0 0.0
    %469 = vmatpush1.xpose.msra.mxu0 0.0
    %470 = vmatprep.subr.mxu0 0.0
    %471 = vmatpush1.xpose.msra.mxu0 0.0
    %472 = vmatprep.subr.mxu0 0.0
    %473 = vmatpush1.xpose.msra.mxu0 0.0
    %474 = vmatprep.subr.mxu0 0.0
    %475 = vmatpush1.xpose.msra.mxu0 0.0
    %476 = vmatprep.subr.mxu0 0.0
    %477 = vmatpush1.xpose.msra.mxu0 0.0
    %478 = vmatprep.subr.mxu0 0.0
    %479 = vmatpush1.xpose.msra.mxu0 0.0
    %480 = vmatprep.subr.mxu0 0.0
    %481 = vmatpush1.xpose.msra.mxu0 0.0
    %482 = vmatprep.subr.mxu0 0.0
    %483 = vmatpush1.xpose.msra.mxu0 0.0
    %484 = vmatprep.subr.mxu0 0.0
    %485 = vmatpush1.xpose.msra.mxu0 0.0
    %486 = vmatprep.subr.mxu0 0.0
    %487 = vmatpush1.xpose.msra.mxu0 0.0
    %488 = vmatprep.subr.mxu0 0.0
    %489 = vmatpush1.xpose.msra.mxu0 0.0
    %490 = vmatprep.subr.mxu0 0.0
    %491 = vmatpush1.xpose.msra.mxu0 0.0
    %492 = vmatprep.subr.mxu0 0.0
    %493 = vmatpush1.xpose.msra.mxu0 0.0
    %494 = vmatprep.subr.mxu0 0.0
    %495 = vmatpush1.xpose.msra.mxu0 0.0
    %496 = vmatprep.subr.mxu0 0.0
    %497 = vmatpush1.xpose.msra.mxu0 0.0
    %498 = vmatprep.subr.mxu0 0.0
    %499 = vmatpush1.xpose.msra.mxu0 0.0
    %500 = vmatprep.subr.mxu0 0.0
    %501 = vmatpush1.xpose.msra.mxu0 0.0
    %502 = vmatprep.subr.mxu0 0.0
    %503 = vmatpush1.xpose.msra.mxu0 0.0
    %504 = vmatprep.subr.mxu0 0.0
    %505 = vmatpush1.xpose.msra.mxu0 0.0
    %506 = vmatprep.subr.mxu0 0.0
    %507 = vmatpush1.xpose.msra.mxu0 0.0
    %508 = vmatprep.subr.mxu0 0.0
    %509 = vmatpush1.xpose.msra.mxu0 0.0
    %510 = vmatprep.subr.mxu0 0.0
    %511 = vmatpush1.xpose.msra.mxu0 0.0
    %512 = vmatprep.subr.mxu0 0.0
    %513 = vmatpush1.xpose.msra.mxu0 0.0
    %514 = vmatprep.subr.mxu0 0.0
    %515 = vmatpush1.xpose.msra.mxu0 0.0
    %516 = vmatprep.subr.mxu0 0.0
    %517 = vmatpush1.xpose.msra.mxu0 0.0
    %518 = vmatprep.subr.mxu0 0.0
    %519 = vmatpush1.xpose.msra.mxu0 0.0
    %520 = vmatprep.subr.mxu0 0.0
    %521 = vmatpush1.xpose.msra.mxu0 0.0
    %522 = vmatprep.subr.mxu0 0.0
    %523 = vmatpush1.xpose.msra.mxu0 0.0
    %524 = vmatprep.subr.mxu0 0.0
    %525 = vmatpush1.xpose.msra.mxu0 0.0
    %526 = vmatprep.subr.mxu0 0.0
    %527 = vmatpush1.xpose.msra.mxu0 0.0
    %528 = vmatprep.mubr.f32.mxu0 0.0
    %529 = vmatmul.mubr.f32.gmra.mrb[0].mxu0 %v456
    %v530 = vpop.f32.mrb[0].mxu0
    %v531 = vadd.f32 0.0, %v530
    %v532 = vpop.f32.mrb[0].mxu0
    %533 = vmatprep.mubr.f32.mxu0 0.0
    %534 = vmatmul.mubr.f32.gmra.mrb[0].mxu0 %v458
    %v535 = vpop.f32.mrb[0].mxu0
    %v536 = vadd.f32 0.0, %v535
    %v537 = vpop.f32.mrb[0].mxu0
    %538 = vdwg.mxu0
    %539 = vrot.lane.b32.xlu0 %v190, 112
    %v540 = vpop.permute.xlu0 %539
    %541 = vrot.lane.b32.xlu0 %v191, 112
    %v542 = vpop.permute.xlu0 %541
    %543 = vrot.lane.b32.xlu0 %v268, 112
    %v544 = vpop.permute.xlu0 %543
    %545 = vrot.lane.b32.xlu0 %v273, 112
    %v546 = vpop.permute.xlu0 %545
    %v547 = vsel %vm360, %v540, 0
    %v549 = vsel %vm360, %v542, 0
    %v551 = vsel %vm360, %v544, 0
    %v553 = vsel %vm360, %v546, 0
    %555 = vmatprep.subr.mxu0 0.0
    %556 = vmatpush1.xpose.msra.mxu0 %v551
    %557 = vmatprep.subr.mxu0 0.0
    %558 = vmatpush1.xpose.msra.mxu0 %v553
    %559 = vmatprep.subr.mxu0 0.0
    %560 = vmatpush1.xpose.msra.mxu0 0.0
    %561 = vmatprep.subr.mxu0 0.0
    %562 = vmatpush1.xpose.msra.mxu0 0.0
    %563 = vmatprep.subr.mxu0 0.0
    %564 = vmatpush1.xpose.msra.mxu0 0.0
    %565 = vmatprep.subr.mxu0 0.0
    %566 = vmatpush1.xpose.msra.mxu0 0.0
    %567 = vmatprep.subr.mxu0 0.0
    %568 = vmatpush1.xpose.msra.mxu0 0.0
    %569 = vmatprep.subr.mxu0 0.0
    %570 = vmatpush1.xpose.msra.mxu0 0.0
    %571 = vmatprep.subr.mxu0 0.0
    %572 = vmatpush1.xpose.msra.mxu0 0.0
    %573 = vmatprep.subr.mxu0 0.0
    %574 = vmatpush1.xpose.msra.mxu0 0.0
    %575 = vmatprep.subr.mxu0 0.0
    %576 = vmatpush1.xpose.msra.mxu0 0.0
    %577 = vmatprep.subr.mxu0 0.0
    %578 = vmatpush1.xpose.msra.mxu0 0.0
    %579 = vmatprep.subr.mxu0 0.0
    %580 = vmatpush1.xpose.msra.mxu0 0.0
    %581 = vmatprep.subr.mxu0 0.0
    %582 = vmatpush1.xpose.msra.mxu0 0.0
    %583 = vmatprep.subr.mxu0 0.0
    %584 = vmatpush1.xpose.msra.mxu0 0.0
    %585 = vmatprep.subr.mxu0 0.0
    %586 = vmatpush1.xpose.msra.mxu0 0.0
    %587 = vmatprep.subr.mxu0 0.0
    %588 = vmatpush1.xpose.msra.mxu0 0.0
    %589 = vmatprep.subr.mxu0 0.0
    %590 = vmatpush1.xpose.msra.mxu0 0.0
    %591 = vmatprep.subr.mxu0 0.0
    %592 = vmatpush1.xpose.msra.mxu0 0.0
    %593 = vmatprep.subr.mxu0 0.0
    %594 = vmatpush1.xpose.msra.mxu0 0.0
    %595 = vmatprep.subr.mxu0 0.0
    %596 = vmatpush1.xpose.msra.mxu0 0.0
    %597 = vmatprep.subr.mxu0 0.0
    %598 = vmatpush1.xpose.msra.mxu0 0.0
    %599 = vmatprep.subr.mxu0 0.0
    %600 = vmatpush1.xpose.msra.mxu0 0.0
    %601 = vmatprep.subr.mxu0 0.0
    %602 = vmatpush1.xpose.msra.mxu0 0.0
    %603 = vmatprep.subr.mxu0 0.0
    %604 = vmatpush1.xpose.msra.mxu0 0.0
    %605 = vmatprep.subr.mxu0 0.0
    %606 = vmatpush1.xpose.msra.mxu0 0.0
    %607 = vmatprep.subr.mxu0 0.0
    %608 = vmatpush1.xpose.msra.mxu0 0.0
    %609 = vmatprep.subr.mxu0 0.0
    %610 = vmatpush1.xpose.msra.mxu0 0.0
    %611 = vmatprep.subr.mxu0 0.0
    %612 = vmatpush1.xpose.msra.mxu0 0.0
    %613 = vmatprep.subr.mxu0 0.0
    %614 = vmatpush1.xpose.msra.mxu0 0.0
    %615 = vmatprep.subr.mxu0 0.0
    %616 = vmatpush1.xpose.msra.mxu0 0.0
    %617 = vmatprep.subr.mxu0 0.0
    %618 = vmatpush1.xpose.msra.mxu0 0.0
    %619 = vmatprep.mubr.f32.mxu0 0.0
    %620 = vmatmul.mubr.f32.gmra.mrb[0].mxu0 %v547
    %v621 = vpop.f32.mrb[0].mxu0
    %v622 = vadd.f32 0.0, %v621
    %v623 = vpop.f32.mrb[0].mxu0
    %624 = vmatprep.mubr.f32.mxu0 0.0
    %625 = vmatmul.mubr.f32.gmra.mrb[0].mxu0 %v549
    %v626 = vpop.f32.mrb[0].mxu0
    %v627 = vadd.f32 0.0, %v626
    %v628 = vpop.f32.mrb[0].mxu0
    %629 = vdwg.mxu0
    %630 = vrot.lane.b32.xlu0 %v190, 104
    %v631 = vpop.permute.xlu0 %630
    %632 = vrot.lane.b32.xlu0 %v191, 104
    %v633 = vpop.permute.xlu0 %632
    %634 = vrot.lane.b32.xlu0 %v268, 104
    %v635 = vpop.permute.xlu0 %634
    %636 = vrot.lane.b32.xlu0 %v273, 104
    %v637 = vpop.permute.xlu0 %636
    %v638 = vsel %vm360, %v631, 0
    %v640 = vsel %vm360, %v633, 0
    %v642 = vsel %vm360, %v635, 0
    %v644 = vsel %vm360, %v637, 0
    %646 = vmatprep.subr.mxu0 0.0
    %647 = vmatpush1.xpose.msra.mxu0 %v642
    %648 = vmatprep.subr.mxu0 0.0
    %649 = vmatpush1.xpose.msra.mxu0 %v644
    %650 = vmatprep.subr.mxu0 0.0
    %651 = vmatpush1.xpose.msra.mxu0 0.0
    %652 = vmatprep.subr.mxu0 0.0
    %653 = vmatpush1.xpose.msra.mxu0 0.0
    %654 = vmatprep.subr.mxu0 0.0
    %655 = vmatpush1.xpose.msra.mxu0 0.0
    %656 = vmatprep.subr.mxu0 0.0
    %657 = vmatpush1.xpose.msra.mxu0 0.0
    %658 = vmatprep.subr.mxu0 0.0
    %659 = vmatpush1.xpose.msra.mxu0 0.0
    %660 = vmatprep.subr.mxu0 0.0
    %661 = vmatpush1.xpose.msra.mxu0 0.0
    %662 = vmatprep.subr.mxu0 0.0
    %663 = vmatpush1.xpose.msra.mxu0 0.0
    %664 = vmatprep.subr.mxu0 0.0
    %665 = vmatpush1.xpose.msra.mxu0 0.0
    %666 = vmatprep.subr.mxu0 0.0
    %667 = vmatpush1.xpose.msra.mxu0 0.0
    %668 = vmatprep.subr.mxu0 0.0
    %669 = vmatpush1.xpose.msra.mxu0 0.0
    %670 = vmatprep.subr.mxu0 0.0
    %671 = vmatpush1.xpose.msra.mxu0 0.0
    %672 = vmatprep.subr.mxu0 0.0
    %673 = vmatpush1.xpose.msra.mxu0 0.0
    %674 = vmatprep.subr.mxu0 0.0
    %675 = vmatpush1.xpose.msra.mxu0 0.0
    %676 = vmatprep.subr.mxu0 0.0
    %677 = vmatpush1.xpose.msra.mxu0 0.0
    %678 = vmatprep.subr.mxu0 0.0
    %679 = vmatpush1.xpose.msra.mxu0 0.0
    %680 = vmatprep.subr.mxu0 0.0
    %681 = vmatpush1.xpose.msra.mxu0 0.0
    %682 = vmatprep.subr.mxu0 0.0
    %683 = vmatpush1.xpose.msra.mxu0 0.0
    %684 = vmatprep.subr.mxu0 0.0
    %685 = vmatpush1.xpose.msra.mxu0 0.0
    %686 = vmatprep.subr.mxu0 0.0
    %687 = vmatpush1.xpose.msra.mxu0 0.0
    %688 = vmatprep.subr.mxu0 0.0
    %689 = vmatpush1.xpose.msra.mxu0 0.0
    %690 = vmatprep.subr.mxu0 0.0
    %691 = vmatpush1.xpose.msra.mxu0 0.0
    %692 = vmatprep.subr.mxu0 0.0
    %693 = vmatpush1.xpose.msra.mxu0 0.0
    %694 = vmatprep.subr.mxu0 0.0
    %695 = vmatpush1.xpose.msra.mxu0 0.0
    %696 = vmatprep.subr.mxu0 0.0
    %697 = vmatpush1.xpose.msra.mxu0 0.0
    %698 = vmatprep.subr.mxu0 0.0
    %699 = vmatpush1.xpose.msra.mxu0 0.0
    %700 = vmatprep.subr.mxu0 0.0
    %701 = vmatpush1.xpose.msra.mxu0 0.0
    %702 = vmatprep.subr.mxu0 0.0
    %703 = vmatpush1.xpose.msra.mxu0 0.0
    %704 = vmatprep.subr.mxu0 0.0
    %705 = vmatpush1.xpose.msra.mxu0 0.0
    %706 = vmatprep.subr.mxu0 0.0
    %707 = vmatpush1.xpose.msra.mxu0 0.0
    %708 = vmatprep.subr.mxu0 0.0
    %709 = vmatpush1.xpose.msra.mxu0 0.0
    %710 = vmatprep.mubr.f32.mxu0 0.0
    %711 = vmatmul.mubr.f32.gmra.mrb[0].mxu0 %v638
    %v712 = vpop.f32.mrb[0].mxu0
    %v713 = vadd.f32 0.0, %v712
    %v714 = vpop.f32.mrb[0].mxu0
    %715 = vmatprep.mubr.f32.mxu0 0.0
    %716 = vmatmul.mubr.f32.gmra.mrb[0].mxu0 %v640
    %v717 = vpop.f32.mrb[0].mxu0
    %v718 = vadd.f32 0.0, %v717
    %v719 = vpop.f32.mrb[0].mxu0
    %720 = vdwg.mxu0
    %721 = vrot.lane.b32.xlu0 %v190, 96
    %v722 = vpop.permute.xlu0 %721
    %723 = vrot.lane.b32.xlu0 %v191, 96
    %v724 = vpop.permute.xlu0 %723
    %725 = vrot.lane.b32.xlu0 %v268, 96
    %v726 = vpop.permute.xlu0 %725
    %727 = vrot.lane.b32.xlu0 %v273, 96
    %v728 = vpop.permute.xlu0 %727
    %v729 = vsel %vm360, %v722, 0
    %v731 = vsel %vm360, %v724, 0
    %v733 = vsel %vm360, %v726, 0
    %v735 = vsel %vm360, %v728, 0
    %737 = vmatprep.subr.mxu0 0.0
    %738 = vmatpush1.xpose.msra.mxu0 %v733
    %739 = vmatprep.subr.mxu0 0.0
    %740 = vmatpush1.xpose.msra.mxu0 %v735
    %741 = vmatprep.subr.mxu0 0.0
    %742 = vmatpush1.xpose.msra.mxu0 0.0
    %743 = vmatprep.subr.mxu0 0.0
    %744 = vmatpush1.xpose.msra.mxu0 0.0
    %745 = vmatprep.subr.mxu0 0.0
    %746 = vmatpush1.xpose.msra.mxu0 0.0
    %747 = vmatprep.subr.mxu0 0.0
    %748 = vmatpush1.xpose.msra.mxu0 0.0
    %749 = vmatprep.subr.mxu0 0.0
    %750 = vmatpush1.xpose.msra.mxu0 0.0
    %751 = vmatprep.subr.mxu0 0.0
    %752 = vmatpush1.xpose.msra.mxu0 0.0
    %753 = vmatprep.subr.mxu0 0.0
    %754 = vmatpush1.xpose.msra.mxu0 0.0
    %755 = vmatprep.subr.mxu0 0.0
    %756 = vmatpush1.xpose.msra.mxu0 0.0
    %757 = vmatprep.subr.mxu0 0.0
    %758 = vmatpush1.xpose.msra.mxu0 0.0
    %759 = vmatprep.subr.mxu0 0.0
    %760 = vmatpush1.xpose.msra.mxu0 0.0
    %761 = vmatprep.subr.mxu0 0.0
    %762 = vmatpush1.xpose.msra.mxu0 0.0
    %763 = vmatprep.subr.mxu0 0.0
    %764 = vmatpush1.xpose.msra.mxu0 0.0
    %765 = vmatprep.subr.mxu0 0.0
    %766 = vmatpush1.xpose.msra.mxu0 0.0
    %767 = vmatprep.subr.mxu0 0.0
    %768 = vmatpush1.xpose.msra.mxu0 0.0
    %769 = vmatprep.subr.mxu0 0.0
    %770 = vmatpush1.xpose.msra.mxu0 0.0
    %771 = vmatprep.subr.mxu0 0.0
    %772 = vmatpush1.xpose.msra.mxu0 0.0
    %773 = vmatprep.subr.mxu0 0.0
    %774 = vmatpush1.xpose.msra.mxu0 0.0
    %775 = vmatprep.subr.mxu0 0.0
    %776 = vmatpush1.xpose.msra.mxu0 0.0
    %777 = vmatprep.subr.mxu0 0.0
    %778 = vmatpush1.xpose.msra.mxu0 0.0
    %779 = vmatprep.subr.mxu0 0.0
    %780 = vmatpush1.xpose.msra.mxu0 0.0
    %781 = vmatprep.subr.mxu0 0.0
    %782 = vmatpush1.xpose.msra.mxu0 0.0
    %783 = vmatprep.subr.mxu0 0.0
    %784 = vmatpush1.xpose.msra.mxu0 0.0
    %785 = vmatprep.subr.mxu0 0.0
    %786 = vmatpush1.xpose.msra.mxu0 0.0
    %787 = vmatprep.subr.mxu0 0.0
    %788 = vmatpush1.xpose.msra.mxu0 0.0
    %789 = vmatprep.subr.mxu0 0.0
    %790 = vmatpush1.xpose.msra.mxu0 0.0
    %791 = vmatprep.subr.mxu0 0.0
    %792 = vmatpush1.xpose.msra.mxu0 0.0
    %793 = vmatprep.subr.mxu0 0.0
    %794 = vmatpush1.xpose.msra.mxu0 0.0
    %795 = vmatprep.subr.mxu0 0.0
    %796 = vmatpush1.xpose.msra.mxu0 0.0
    %797 = vmatprep.subr.mxu0 0.0
    %798 = vmatpush1.xpose.msra.mxu0 0.0
    %799 = vmatprep.subr.mxu0 0.0
    %800 = vmatpush1.xpose.msra.mxu0 0.0
    %801 = vmatprep.mubr.f32.mxu0 0.0
    %802 = vmatmul.mubr.f32.gmra.mrb[0].mxu0 %v729
    %v803 = vpop.f32.mrb[0].mxu0
    %v804 = vadd.f32 0.0, %v803
    %v805 = vpop.f32.mrb[0].mxu0
    %806 = vmatprep.mubr.f32.mxu0 0.0
    %807 = vmatmul.mubr.f32.gmra.mrb[0].mxu0 %v731
    %v808 = vpop.f32.mrb[0].mxu0
    %v809 = vadd.f32 0.0, %v808
    %v810 = vpop.f32.mrb[0].mxu0
    %811 = vdwg.mxu0
    %812 = vrot.lane.b32.xlu0 %v190, 88
    %v813 = vpop.permute.xlu0 %812
    %814 = vrot.lane.b32.xlu0 %v191, 88
    %v815 = vpop.permute.xlu0 %814
    %816 = vrot.lane.b32.xlu0 %v268, 88
    %v817 = vpop.permute.xlu0 %816
    %818 = vrot.lane.b32.xlu0 %v273, 88
    %v819 = vpop.permute.xlu0 %818
    %v820 = vsel %vm360, %v813, 0
    %v822 = vsel %vm360, %v815, 0
    %v824 = vsel %vm360, %v817, 0
    %v826 = vsel %vm360, %v819, 0
    %828 = vmatprep.subr.mxu0 0.0
    %829 = vmatpush1.xpose.msra.mxu0 %v824
    %830 = vmatprep.subr.mxu0 0.0
    %831 = vmatpush1.xpose.msra.mxu0 %v826
    %832 = vmatprep.subr.mxu0 0.0
    %833 = vmatpush1.xpose.msra.mxu0 0.0
    %834 = vmatprep.subr.mxu0 0.0
    %835 = vmatpush1.xpose.msra.mxu0 0.0
    %836 = vmatprep.subr.mxu0 0.0
    %837 = vmatpush1.xpose.msra.mxu0 0.0
    %838 = vmatprep.subr.mxu0 0.0
    %839 = vmatpush1.xpose.msra.mxu0 0.0
    %840 = vmatprep.subr.mxu0 0.0
    %841 = vmatpush1.xpose.msra.mxu0 0.0
    %842 = vmatprep.subr.mxu0 0.0
    %843 = vmatpush1.xpose.msra.mxu0 0.0
    %844 = vmatprep.subr.mxu0 0.0
    %845 = vmatpush1.xpose.msra.mxu0 0.0
    %846 = vmatprep.subr.mxu0 0.0
    %847 = vmatpush1.xpose.msra.mxu0 0.0
    %848 = vmatprep.subr.mxu0 0.0
    %849 = vmatpush1.xpose.msra.mxu0 0.0
    %850 = vmatprep.subr.mxu0 0.0
    %851 = vmatpush1.xpose.msra.mxu0 0.0
    %852 = vmatprep.subr.mxu0 0.0
    %853 = vmatpush1.xpose.msra.mxu0 0.0
    %854 = vmatprep.subr.mxu0 0.0
    %855 = vmatpush1.xpose.msra.mxu0 0.0
    %856 = vmatprep.subr.mxu0 0.0
    %857 = vmatpush1.xpose.msra.mxu0 0.0
    %858 = vmatprep.subr.mxu0 0.0
    %859 = vmatpush1.xpose.msra.mxu0 0.0
    %860 = vmatprep.subr.mxu0 0.0
    %861 = vmatpush1.xpose.msra.mxu0 0.0
    %862 = vmatprep.subr.mxu0 0.0
    %863 = vmatpush1.xpose.msra.mxu0 0.0
    %864 = vmatprep.subr.mxu0 0.0
    %865 = vmatpush1.xpose.msra.mxu0 0.0
    %866 = vmatprep.subr.mxu0 0.0
    %867 = vmatpush1.xpose.msra.mxu0 0.0
    %868 = vmatprep.subr.mxu0 0.0
    %869 = vmatpush1.xpose.msra.mxu0 0.0
    %870 = vmatprep.subr.mxu0 0.0
    %871 = vmatpush1.xpose.msra.mxu0 0.0
    %872 = vmatprep.subr.mxu0 0.0
    %873 = vmatpush1.xpose.msra.mxu0 0.0
    %874 = vmatprep.subr.mxu0 0.0
    %875 = vmatpush1.xpose.msra.mxu0 0.0
    %876 = vmatprep.subr.mxu0 0.0
    %877 = vmatpush1.xpose.msra.mxu0 0.0
    %878 = vmatprep.subr.mxu0 0.0
    %879 = vmatpush1.xpose.msra.mxu0 0.0
    %880 = vmatprep.subr.mxu0 0.0
    %881 = vmatpush1.xpose.msra.mxu0 0.0
    %882 = vmatprep.subr.mxu0 0.0
    %883 = vmatpush1.xpose.msra.mxu0 0.0
    %884 = vmatprep.subr.mxu0 0.0
    %885 = vmatpush1.xpose.msra.mxu0 0.0
    %886 = vmatprep.subr.mxu0 0.0
    %887 = vmatpush1.xpose.msra.mxu0 0.0
    %888 = vmatprep.subr.mxu0 0.0
    %889 = vmatpush1.xpose.msra.mxu0 0.0
    %890 = vmatprep.subr.mxu0 0.0
    %891 = vmatpush1.xpose.msra.mxu0 0.0
    %892 = vmatprep.mubr.f32.mxu0 0.0
    %893 = vmatmul.mubr.f32.gmra.mrb[0].mxu0 %v820
    %v894 = vpop.f32.mrb[0].mxu0
    %v895 = vadd.f32 0.0, %v894
    %v896 = vpop.f32.mrb[0].mxu0
    %897 = vmatprep.mubr.f32.mxu0 0.0
    %898 = vmatmul.mubr.f32.gmra.mrb[0].mxu0 %v822
    %v899 = vpop.f32.mrb[0].mxu0
    %v900 = vadd.f32 0.0, %v899
    %v901 = vpop.f32.mrb[0].mxu0
    %902 = vdwg.mxu0
    %903 = vrot.lane.b32.xlu0 %v190, 80
    %v904 = vpop.permute.xlu0 %903
    %905 = vrot.lane.b32.xlu0 %v191, 80
    %v906 = vpop.permute.xlu0 %905
    %907 = vrot.lane.b32.xlu0 %v268, 80
    %v908 = vpop.permute.xlu0 %907
    %909 = vrot.lane.b32.xlu0 %v273, 80
    %v910 = vpop.permute.xlu0 %909
    %v911 = vsel %vm360, %v904, 0
    %v913 = vsel %vm360, %v906, 0
    %v915 = vsel %vm360, %v908, 0
    %v917 = vsel %vm360, %v910, 0
    %919 = vmatprep.subr.mxu0 0.0
    %920 = vmatpush1.xpose.msra.mxu0 %v915
    %921 = vmatprep.subr.mxu0 0.0
    %922 = vmatpush1.xpose.msra.mxu0 %v917
    %923 = vmatprep.subr.mxu0 0.0
    %924 = vmatpush1.xpose.msra.mxu0 0.0
    %925 = vmatprep.subr.mxu0 0.0
    %926 = vmatpush1.xpose.msra.mxu0 0.0
    %927 = vmatprep.subr.mxu0 0.0
    %928 = vmatpush1.xpose.msra.mxu0 0.0
    %929 = vmatprep.subr.mxu0 0.0
    %930 = vmatpush1.xpose.msra.mxu0 0.0
    %931 = vmatprep.subr.mxu0 0.0
    %932 = vmatpush1.xpose.msra.mxu0 0.0
    %933 = vmatprep.subr.mxu0 0.0
    %934 = vmatpush1.xpose.msra.mxu0 0.0
    %935 = vmatprep.subr.mxu0 0.0
    %936 = vmatpush1.xpose.msra.mxu0 0.0
    %937 = vmatprep.subr.mxu0 0.0
    %938 = vmatpush1.xpose.msra.mxu0 0.0
    %939 = vmatprep.subr.mxu0 0.0
    %940 = vmatpush1.xpose.msra.mxu0 0.0
    %941 = vmatprep.subr.mxu0 0.0
    %942 = vmatpush1.xpose.msra.mxu0 0.0
    %943 = vmatprep.subr.mxu0 0.0
    %944 = vmatpush1.xpose.msra.mxu0 0.0
    %945 = vmatprep.subr.mxu0 0.0
    %946 = vmatpush1.xpose.msra.mxu0 0.0
    %947 = vmatprep.subr.mxu0 0.0
    %948 = vmatpush1.xpose.msra.mxu0 0.0
    %949 = vmatprep.subr.mxu0 0.0
    %950 = vmatpush1.xpose.msra.mxu0 0.0
    %951 = vmatprep.subr.mxu0 0.0
    %952 = vmatpush1.xpose.msra.mxu0 0.0
    %953 = vmatprep.subr.mxu0 0.0
    %954 = vmatpush1.xpose.msra.mxu0 0.0
    %955 = vmatprep.subr.mxu0 0.0
    %956 = vmatpush1.xpose.msra.mxu0 0.0
    %957 = vmatprep.subr.mxu0 0.0
    %958 = vmatpush1.xpose.msra.mxu0 0.0
    %959 = vmatprep.subr.mxu0 0.0
    %960 = vmatpush1.xpose.msra.mxu0 0.0
    %961 = vmatprep.subr.mxu0 0.0
    %962 = vmatpush1.xpose.msra.mxu0 0.0
    %963 = vmatprep.subr.mxu0 0.0
    %964 = vmatpush1.xpose.msra.mxu0 0.0
    %965 = vmatprep.subr.mxu0 0.0
    %966 = vmatpush1.xpose.msra.mxu0 0.0
    %967 = vmatprep.subr.mxu0 0.0
    %968 = vmatpush1.xpose.msra.mxu0 0.0
    %969 = vmatprep.subr.mxu0 0.0
    %970 = vmatpush1.xpose.msra.mxu0 0.0
    %971 = vmatprep.subr.mxu0 0.0
    %972 = vmatpush1.xpose.msra.mxu0 0.0
    %973 = vmatprep.subr.mxu0 0.0
    %974 = vmatpush1.xpose.msra.mxu0 0.0
    %975 = vmatprep.subr.mxu0 0.0
    %976 = vmatpush1.xpose.msra.mxu0 0.0
    %977 = vmatprep.subr.mxu0 0.0
    %978 = vmatpush1.xpose.msra.mxu0 0.0
    %979 = vmatprep.subr.mxu0 0.0
    %980 = vmatpush1.xpose.msra.mxu0 0.0
    %981 = vmatprep.subr.mxu0 0.0
    %982 = vmatpush1.xpose.msra.mxu0 0.0
    %983 = vmatprep.mubr.f32.mxu0 0.0
    %984 = vmatmul.mubr.f32.gmra.mrb[0].mxu0 %v911
    %v985 = vpop.f32.mrb[0].mxu0
    %v986 = vadd.f32 0.0, %v985
    %v987 = vpop.f32.mrb[0].mxu0
    %988 = vmatprep.mubr.f32.mxu0 0.0
    %989 = vmatmul.mubr.f32.gmra.mrb[0].mxu0 %v913
    %v990 = vpop.f32.mrb[0].mxu0
    %v991 = vadd.f32 0.0, %v990
    %v992 = vpop.f32.mrb[0].mxu0
    %993 = vdwg.mxu0
    %994 = vrot.lane.b32.xlu0 %v190, 72
    %v995 = vpop.permute.xlu0 %994
    %996 = vrot.lane.b32.xlu0 %v191, 72
    %v997 = vpop.permute.xlu0 %996
    %998 = vrot.lane.b32.xlu0 %v268, 72
    %v999 = vpop.permute.xlu0 %998
    %1000 = vrot.lane.b32.xlu0 %v273, 72
    %v1001 = vpop.permute.xlu0 %1000
    %v1002 = vsel %vm360, %v995, 0
    %v1004 = vsel %vm360, %v997, 0
    %v1006 = vsel %vm360, %v999, 0
    %v1008 = vsel %vm360, %v1001, 0
    %1010 = vmatprep.subr.mxu0 0.0
    %1011 = vmatpush1.xpose.msra.mxu0 %v1006
    %1012 = vmatprep.subr.mxu0 0.0
    %1013 = vmatpush1.xpose.msra.mxu0 %v1008
    %1014 = vmatprep.subr.mxu0 0.0
    %1015 = vmatpush1.xpose.msra.mxu0 0.0
    %1016 = vmatprep.subr.mxu0 0.0
    %1017 = vmatpush1.xpose.msra.mxu0 0.0
    %1018 = vmatprep.subr.mxu0 0.0
    %1019 = vmatpush1.xpose.msra.mxu0 0.0
    %1020 = vmatprep.subr.mxu0 0.0
    %1021 = vmatpush1.xpose.msra.mxu0 0.0
    %1022 = vmatprep.subr.mxu0 0.0
    %1023 = vmatpush1.xpose.msra.mxu0 0.0
    %1024 = vmatprep.subr.mxu0 0.0
    %1025 = vmatpush1.xpose.msra.mxu0 0.0
    %1026 = vmatprep.subr.mxu0 0.0
    %1027 = vmatpush1.xpose.msra.mxu0 0.0
    %1028 = vmatprep.subr.mxu0 0.0
    %1029 = vmatpush1.xpose.msra.mxu0 0.0
    %1030 = vmatprep.subr.mxu0 0.0
    %1031 = vmatpush1.xpose.msra.mxu0 0.0
    %1032 = vmatprep.subr.mxu0 0.0
    %1033 = vmatpush1.xpose.msra.mxu0 0.0
    %1034 = vmatprep.subr.mxu0 0.0
    %1035 = vmatpush1.xpose.msra.mxu0 0.0
    %1036 = vmatprep.subr.mxu0 0.0
    %1037 = vmatpush1.xpose.msra.mxu0 0.0
    %1038 = vmatprep.subr.mxu0 0.0
    %1039 = vmatpush1.xpose.msra.mxu0 0.0
    %1040 = vmatprep.subr.mxu0 0.0
    %1041 = vmatpush1.xpose.msra.mxu0 0.0
    %1042 = vmatprep.subr.mxu0 0.0
    %1043 = vmatpush1.xpose.msra.mxu0 0.0
    %1044 = vmatprep.subr.mxu0 0.0
    %1045 = vmatpush1.xpose.msra.mxu0 0.0
    %1046 = vmatprep.subr.mxu0 0.0
    %1047 = vmatpush1.xpose.msra.mxu0 0.0
    %1048 = vmatprep.subr.mxu0 0.0
    %1049 = vmatpush1.xpose.msra.mxu0 0.0
    %1050 = vmatprep.subr.mxu0 0.0
    %1051 = vmatpush1.xpose.msra.mxu0 0.0
    %1052 = vmatprep.subr.mxu0 0.0
    %1053 = vmatpush1.xpose.msra.mxu0 0.0
    %1054 = vmatprep.subr.mxu0 0.0
    %1055 = vmatpush1.xpose.msra.mxu0 0.0
    %1056 = vmatprep.subr.mxu0 0.0
    %1057 = vmatpush1.xpose.msra.mxu0 0.0
    %1058 = vmatprep.subr.mxu0 0.0
    %1059 = vmatpush1.xpose.msra.mxu0 0.0
    %1060 = vmatprep.subr.mxu0 0.0
    %1061 = vmatpush1.xpose.msra.mxu0 0.0
    %1062 = vmatprep.subr.mxu0 0.0
    %1063 = vmatpush1.xpose.msra.mxu0 0.0
    %1064 = vmatprep.subr.mxu0 0.0
    %1065 = vmatpush1.xpose.msra.mxu0 0.0
    %1066 = vmatprep.subr.mxu0 0.0
    %1067 = vmatpush1.xpose.msra.mxu0 0.0
    %1068 = vmatprep.subr.mxu0 0.0
    %1069 = vmatpush1.xpose.msra.mxu0 0.0
    %1070 = vmatprep.subr.mxu0 0.0
    %1071 = vmatpush1.xpose.msra.mxu0 0.0
    %1072 = vmatprep.subr.mxu0 0.0
    %1073 = vmatpush1.xpose.msra.mxu0 0.0
    %1074 = vmatprep.mubr.f32.mxu0 0.0
    %1075 = vmatmul.mubr.f32.gmra.mrb[0].mxu0 %v1002
    %v1076 = vpop.f32.mrb[0].mxu0
    %v1077 = vadd.f32 0.0, %v1076
    %v1078 = vpop.f32.mrb[0].mxu0
    %1079 = vmatprep.mubr.f32.mxu0 0.0
    %1080 = vmatmul.mubr.f32.gmra.mrb[0].mxu0 %v1004
    %v1081 = vpop.f32.mrb[0].mxu0
    %v1082 = vadd.f32 0.0, %v1081
    %v1083 = vpop.f32.mrb[0].mxu0
    %1084 = vdwg.mxu0
    %v1085 = vadd.f32 %v440, %v82
    %v1086 = vadd.f32 %v445, %v83
    %v1087 = vadd.f32 %v531, %v84
    %v1088 = vadd.f32 %v536, %v85
    %v1089 = vadd.f32 %v622, %v86
    %v1090 = vadd.f32 %v627, %v87
    %v1091 = vadd.f32 %v713, %v88
    %v1092 = vadd.f32 %v718, %v89
    %v1093 = vadd.f32 %v804, %v90
    %v1094 = vadd.f32 %v809, %v91
    %v1095 = vadd.f32 %v895, %v92
    %v1096 = vadd.f32 %v900, %v93
    %v1097 = vadd.f32 %v986, %v94
    %v1098 = vadd.f32 %v991, %v95
    %v1099 = vadd.f32 %v1077, %v96
    %v1100 = vadd.f32 %v1082, %v97
    %vm1101 = vcmask 130048
    %v1102 = vsel %vm1101, %v1085, -inf
    %1103 = vmax.xlane.f32.xlu0 %v1102
    %v1104 = vpop.xlane.xlu0 %1103
    %v1105 = vsel %vm1101, %v1086, -inf
    %1106 = vmax.xlane.f32.xlu0 %v1105
    %v1107 = vpop.xlane.xlu0 %1106
    %v1108 = vsel %vm1101, %v1087, -inf
    %1109 = vmax.xlane.f32.xlu0 %v1108
    %v1110 = vpop.xlane.xlu0 %1109
    %v1111 = vsel %vm1101, %v1088, -inf
    %1112 = vmax.xlane.f32.xlu0 %v1111
    %v1113 = vpop.xlane.xlu0 %1112
    %v1114 = vsel %vm1101, %v1089, -inf
    %1115 = vmax.xlane.f32.xlu0 %v1114
    %v1116 = vpop.xlane.xlu0 %1115
    %v1117 = vsel %vm1101, %v1090, -inf
    %1118 = vmax.xlane.f32.xlu0 %v1117
    %v1119 = vpop.xlane.xlu0 %1118
    %v1120 = vsel %vm1101, %v1091, -inf
    %1121 = vmax.xlane.f32.xlu0 %v1120
    %v1122 = vpop.xlane.xlu0 %1121
    %v1123 = vsel %vm1101, %v1092, -inf
    %1124 = vmax.xlane.f32.xlu0 %v1123
    %v1125 = vpop.xlane.xlu0 %1124
    %v1126 = vsel %vm1101, %v1093, -inf
    %1127 = vmax.xlane.f32.xlu0 %v1126
    %v1128 = vpop.xlane.xlu0 %1127
    %v1129 = vsel %vm1101, %v1094, -inf
    %1130 = vmax.xlane.f32.xlu0 %v1129
    %v1131 = vpop.xlane.xlu0 %1130
    %v1132 = vsel %vm1101, %v1095, -inf
    %1133 = vmax.xlane.f32.xlu0 %v1132
    %v1134 = vpop.xlane.xlu0 %1133
    %v1135 = vsel %vm1101, %v1096, -inf
    %1136 = vmax.xlane.f32.xlu0 %v1135
    %v1137 = vpop.xlane.xlu0 %1136
    %v1138 = vsel %vm1101, %v1097, -inf
    %1139 = vmax.xlane.f32.xlu0 %v1138
    %v1140 = vpop.xlane.xlu0 %1139
    %v1141 = vsel %vm1101, %v1098, -inf
    %1142 = vmax.xlane.f32.xlu0 %v1141
    %v1143 = vpop.xlane.xlu0 %1142
    %v1144 = vsel %vm1101, %v1099, -inf
    %1145 = vmax.xlane.f32.xlu0 %v1144
    %v1146 = vpop.xlane.xlu0 %1145
    %v1147 = vsel %vm1101, %v1100, -inf
    %1148 = vmax.xlane.f32.xlu0 %v1147
    %v1149 = vpop.xlane.xlu0 %1148
    %v1150 = vsub.f32 %v1085, %v1104
    %v1151 = vsub.f32 %v1086, %v1107
    %v1152 = vsub.f32 %v1087, %v1110
    %v1153 = vsub.f32 %v1088, %v1113
    %v1154 = vsub.f32 %v1089, %v1116
    %v1155 = vsub.f32 %v1090, %v1119
    %v1156 = vsub.f32 %v1091, %v1122
    %v1157 = vsub.f32 %v1092, %v1125
    %v1158 = vsub.f32 %v1093, %v1128
    %v1159 = vsub.f32 %v1094, %v1131
    %v1160 = vsub.f32 %v1095, %v1134
    %v1161 = vsub.f32 %v1096, %v1137
    %v1162 = vsub.f32 %v1097, %v1140
    %v1163 = vsub.f32 %v1098, %v1143
    %v1164 = vsub.f32 %v1099, %v1146
    %v1165 = vsub.f32 %v1100, %v1149
    %v1166 = vmul.f32 %v1150, 1.442695
    %v1167 = vpow.pop %v1166
    %v1168 = vmul.f32 %v1151, 1.442695
    %v1169 = vpow.pop %v1168
    %v1170 = vmul.f32 %v1152, 1.442695
    %v1171 = vpow.pop %v1170
    %v1172 = vmul.f32 %v1153, 1.442695
    %v1173 = vpow.pop %v1172
    %v1174 = vmul.f32 %v1154, 1.442695
    %v1175 = vpow.pop %v1174
    %v1176 = vmul.f32 %v1155, 1.442695
    %v1177 = vpow.pop %v1176
    %v1178 = vmul.f32 %v1156, 1.442695
    %v1179 = vpow.pop %v1178
    %v1180 = vmul.f32 %v1157, 1.442695
    %v1181 = vpow.pop %v1180
    %v1182 = vmul.f32 %v1158, 1.442695
    %v1183 = vpow.pop %v1182
    %v1184 = vmul.f32 %v1159, 1.442695
    %v1185 = vpow.pop %v1184
    %v1186 = vmul.f32 %v1160, 1.442695
    %v1187 = vpow.pop %v1186
    %v1188 = vmul.f32 %v1161, 1.442695
    %v1189 = vpow.pop %v1188
    %v1190 = vmul.f32 %v1162, 1.442695
    %v1191 = vpow.pop %v1190
    %v1192 = vmul.f32 %v1163, 1.442695
    %v1193 = vpow.pop %v1192
    %v1194 = vmul.f32 %v1164, 1.442695
    %v1195 = vpow.pop %v1194
    %v1196 = vmul.f32 %v1165, 1.442695
    %v1197 = vpow.pop %v1196
    %v1198 = vsel %vm1101, %v1167, 0.0
    %1199 = vadd.xlane.f32.xlu0 %v1198
    %v1200 = vpop.xlane.xlu0 %1199
    %v1201 = vsel %vm1101, %v1169, 0.0
    %1202 = vadd.xlane.f32.xlu0 %v1201
    %v1203 = vpop.xlane.xlu0 %1202
    %v1204 = vsel %vm1101, %v1171, 0.0
    %1205 = vadd.xlane.f32.xlu0 %v1204
    %v1206 = vpop.xlane.xlu0 %1205
    %v1207 = vsel %vm1101, %v1173, 0.0
    %1208 = vadd.xlane.f32.xlu0 %v1207
    %v1209 = vpop.xlane.xlu0 %1208
    %v1210 = vsel %vm1101, %v1175, 0.0
    %1211 = vadd.xlane.f32.xlu0 %v1210
    %v1212 = vpop.xlane.xlu0 %1211
    %v1213 = vsel %vm1101, %v1177, 0.0
    %1214 = vadd.xlane.f32.xlu0 %v1213
    %v1215 = vpop.xlane.xlu0 %1214
    %v1216 = vsel %vm1101, %v1179, 0.0
    %1217 = vadd.xlane.f32.xlu0 %v1216
    %v1218 = vpop.xlane.xlu0 %1217
    %v1219 = vsel %vm1101, %v1181, 0.0
    %1220 = vadd.xlane.f32.xlu0 %v1219
    %v1221 = vpop.xlane.xlu0 %1220
    %v1222 = vsel %vm1101, %v1183, 0.0
    %1223 = vadd.xlane.f32.xlu0 %v1222
    %v1224 = vpop.xlane.xlu0 %1223
    %v1225 = vsel %vm1101, %v1185, 0.0
    %1226 = vadd.xlane.f32.xlu0 %v1225
    %v1227 = vpop.xlane.xlu0 %1226
    %v1228 = vsel %vm1101, %v1187, 0.0
    %1229 = vadd.xlane.f32.xlu0 %v1228
    %v1230 = vpop.xlane.xlu0 %1229
    %v1231 = vsel %vm1101, %v1189, 0.0
    %1232 = vadd.xlane.f32.xlu0 %v1231
    %v1233 = vpop.xlane.xlu0 %1232
    %v1234 = vsel %vm1101, %v1191, 0.0
    %1235 = vadd.xlane.f32.xlu0 %v1234
    %v1236 = vpop.xlane.xlu0 %1235
    %v1237 = vsel %vm1101, %v1193, 0.0
    %1238 = vadd.xlane.f32.xlu0 %v1237
    %v1239 = vpop.xlane.xlu0 %1238
    %v1240 = vsel %vm1101, %v1195, 0.0
    %1241 = vadd.xlane.f32.xlu0 %v1240
    %v1242 = vpop.xlane.xlu0 %1241
    %v1243 = vsel %vm1101, %v1197, 0.0
    %1244 = vadd.xlane.f32.xlu0 %v1243
    %v1245 = vpop.xlane.xlu0 %1244
    %v1246 = vrcp.pop %v1200
    %v1247 = vrcp.pop %v1203
    %v1248 = vrcp.pop %v1206
    %v1249 = vrcp.pop %v1209
    %v1250 = vrcp.pop %v1212
    %v1251 = vrcp.pop %v1215
    %v1252 = vrcp.pop %v1218
    %v1253 = vrcp.pop %v1221
    %v1254 = vrcp.pop %v1224
    %v1255 = vrcp.pop %v1227
    %v1256 = vrcp.pop %v1230
    %v1257 = vrcp.pop %v1233
    %v1258 = vrcp.pop %v1236
    %v1259 = vrcp.pop %v1239
    %v1260 = vrcp.pop %v1242
    %v1261 = vrcp.pop %v1245
    %v1262 = vmul.f32 %v1167, %v1246
    %v1263 = vmul.f32 %v1169, %v1247
    %v1264 = vmul.f32 %v1171, %v1248
    %v1265 = vmul.f32 %v1173, %v1249
    %v1266 = vmul.f32 %v1175, %v1250
    %v1267 = vmul.f32 %v1177, %v1251
    %v1268 = vmul.f32 %v1179, %v1252
    %v1269 = vmul.f32 %v1181, %v1253
    %v1270 = vmul.f32 %v1183, %v1254
    %v1271 = vmul.f32 %v1185, %v1255
    %v1272 = vmul.f32 %v1187, %v1256
    %v1273 = vmul.f32 %v1189, %v1257
    %v1274 = vmul.f32 %v1191, %v1258
    %v1275 = vmul.f32 %v1193, %v1259
    %v1276 = vmul.f32 %v1195, %v1260
    %v1277 = vmul.f32 %v1197, %v1261
    %v1279 = vsel %vm1101, %v1262, 0
    %v1282 = vsel %vm1101, %v1263, 0
    %1284 = vmatprep.subr.mxu0 0.0
    %1285 = vmatpush1.msra.mxu0 %v352
    %1286 = vmatprep.subr.mxu0 0.0
    %1287 = vmatpush1.msra.mxu0 %v357
    %1288 = vmatprep.subr.mxu0 0.0
    %1289 = vmatpush1.msra.mxu0 0.0
    %1290 = vmatprep.subr.mxu0 0.0
    %1291 = vmatpush1.msra.mxu0 0.0
    %1292 = vmatprep.subr.mxu0 0.0
    %1293 = vmatpush1.msra.mxu0 0.0
    %1294 = vmatprep.subr.mxu0 0.0
    %1295 = vmatpush1.msra.mxu0 0.0
    %1296 = vmatprep.subr.mxu0 0.0
    %1297 = vmatpush1.msra.mxu0 0.0
    %1298 = vmatprep.subr.mxu0 0.0
    %1299 = vmatpush1.msra.mxu0 0.0
    %1300 = vmatprep.subr.mxu0 0.0
    %1301 = vmatpush1.msra.mxu0 0.0
    %1302 = vmatprep.subr.mxu0 0.0
    %1303 = vmatpush1.msra.mxu0 0.0
    %1304 = vmatprep.subr.mxu0 0.0
    %1305 = vmatpush1.msra.mxu0 0.0
    %1306 = vmatprep.subr.mxu0 0.0
    %1307 = vmatpush1.msra.mxu0 0.0
    %1308 = vmatprep.subr.mxu0 0.0
    %1309 = vmatpush1.msra.mxu0 0.0
    %1310 = vmatprep.subr.mxu0 0.0
    %1311 = vmatpush1.msra.mxu0 0.0
    %1312 = vmatprep.subr.mxu0 0.0
    %1313 = vmatpush1.msra.mxu0 0.0
    %1314 = vmatprep.subr.mxu0 0.0
    %1315 = vmatpush1.msra.mxu0 0.0
    %1316 = vmatprep.subr.mxu0 0.0
    %1317 = vmatpush1.msra.mxu0 0.0
    %1318 = vmatprep.subr.mxu0 0.0
    %1319 = vmatpush1.msra.mxu0 0.0
    %1320 = vmatprep.subr.mxu0 0.0
    %1321 = vmatpush1.msra.mxu0 0.0
    %1322 = vmatprep.subr.mxu0 0.0
    %1323 = vmatpush1.msra.mxu0 0.0
    %1324 = vmatprep.subr.mxu0 0.0
    %1325 = vmatpush1.msra.mxu0 0.0
    %1326 = vmatprep.subr.mxu0 0.0
    %1327 = vmatpush1.msra.mxu0 0.0
    %1328 = vmatprep.subr.mxu0 0.0
    %1329 = vmatpush1.msra.mxu0 0.0
    %1330 = vmatprep.subr.mxu0 0.0
    %1331 = vmatpush1.msra.mxu0 0.0
    %1332 = vmatprep.subr.mxu0 0.0
    %1333 = vmatpush1.msra.mxu0 0.0
    %1334 = vmatprep.subr.mxu0 0.0
    %1335 = vmatpush1.msra.mxu0 0.0
    %1336 = vmatprep.subr.mxu0 0.0
    %1337 = vmatpush1.msra.mxu0 0.0
    %1338 = vmatprep.subr.mxu0 0.0
    %1339 = vmatpush1.msra.mxu0 0.0
    %1340 = vmatprep.subr.mxu0 0.0
    %1341 = vmatpush1.msra.mxu0 0.0
    %1342 = vmatprep.subr.mxu0 0.0
    %1343 = vmatpush1.msra.mxu0 0.0
    %1344 = vmatprep.subr.mxu0 0.0
    %1345 = vmatpush1.msra.mxu0 0.0
    %1346 = vmatprep.subr.mxu0 0.0
    %1347 = vmatpush1.msra.mxu0 0.0
    %1348 = vmatprep.mubr.f32.mxu0 0.0
    %1349 = vmatmul.mubr.f32.gmra.mrb[0].mxu0 %v1279
    %v1350 = vpop.f32.mrb[0].mxu0
    %v1351 = vadd.f32 0.0, %v1350
    %v1352 = vpop.f32.mrb[0].mxu0
    %1353 = vmatprep.mubr.f32.mxu0 0.0
    %1354 = vmatmul.mubr.f32.gmra.mrb[0].mxu0 %v1282
    %v1355 = vpop.f32.mrb[0].mxu0
    %v1356 = vadd.f32 0.0, %v1355
    %v1357 = vpop.f32.mrb[0].mxu0
    %1358 = vdwg.mxu0
    %1361 = vrot.lane.b32.xlu0 %v352, 120
    %v1362 = vpop.permute.xlu0 %1361
    %1363 = vrot.lane.b32.xlu0 %v357, 120
    %v1364 = vpop.permute.xlu0 %1363
    %v1368 = vsel %vm1101, %v1264, 0
    %v1371 = vsel %vm1101, %v1265, 0
    %1373 = vmatprep.subr.mxu0 0.0
    %1374 = vmatpush1.msra.mxu0 %v1362
    %1375 = vmatprep.subr.mxu0 0.0
    %1376 = vmatpush1.msra.mxu0 %v1364
    %1377 = vmatprep.subr.mxu0 0.0
    %1378 = vmatpush1.msra.mxu0 0.0
    %1379 = vmatprep.subr.mxu0 0.0
    %1380 = vmatpush1.msra.mxu0 0.0
    %1381 = vmatprep.subr.mxu0 0.0
    %1382 = vmatpush1.msra.mxu0 0.0
    %1383 = vmatprep.subr.mxu0 0.0
    %1384 = vmatpush1.msra.mxu0 0.0
    %1385 = vmatprep.subr.mxu0 0.0
    %1386 = vmatpush1.msra.mxu0 0.0
    %1387 = vmatprep.subr.mxu0 0.0
    %1388 = vmatpush1.msra.mxu0 0.0
    %1389 = vmatprep.subr.mxu0 0.0
    %1390 = vmatpush1.msra.mxu0 0.0
    %1391 = vmatprep.subr.mxu0 0.0
    %1392 = vmatpush1.msra.mxu0 0.0
    %1393 = vmatprep.subr.mxu0 0.0
    %1394 = vmatpush1.msra.mxu0 0.0
    %1395 = vmatprep.subr.mxu0 0.0
    %1396 = vmatpush1.msra.mxu0 0.0
    %1397 = vmatprep.subr.mxu0 0.0
    %1398 = vmatpush1.msra.mxu0 0.0
    %1399 = vmatprep.subr.mxu0 0.0
    %1400 = vmatpush1.msra.mxu0 0.0
    %1401 = vmatprep.subr.mxu0 0.0
    %1402 = vmatpush1.msra.mxu0 0.0
    %1403 = vmatprep.subr.mxu0 0.0
    %1404 = vmatpush1.msra.mxu0 0.0
    %1405 = vmatprep.subr.mxu0 0.0
    %1406 = vmatpush1.msra.mxu0 0.0
    %1407 = vmatprep.subr.mxu0 0.0
    %1408 = vmatpush1.msra.mxu0 0.0
    %1409 = vmatprep.subr.mxu0 0.0
    %1410 = vmatpush1.msra.mxu0 0.0
    %1411 = vmatprep.subr.mxu0 0.0
    %1412 = vmatpush1.msra.mxu0 0.0
    %1413 = vmatprep.subr.mxu0 0.0
    %1414 = vmatpush1.msra.mxu0 0.0
    %1415 = vmatprep.subr.mxu0 0.0
    %1416 = vmatpush1.msra.mxu0 0.0
    %1417 = vmatprep.subr.mxu0 0.0
    %1418 = vmatpush1.msra.mxu0 0.0
    %1419 = vmatprep.subr.mxu0 0.0
    %1420 = vmatpush1.msra.mxu0 0.0
    %1421 = vmatprep.subr.mxu0 0.0
    %1422 = vmatpush1.msra.mxu0 0.0
    %1423 = vmatprep.subr.mxu0 0.0
    %1424 = vmatpush1.msra.mxu0 0.0
    %1425 = vmatprep.subr.mxu0 0.0
    %1426 = vmatpush1.msra.mxu0 0.0
    %1427 = vmatprep.subr.mxu0 0.0
    %1428 = vmatpush1.msra.mxu0 0.0
    %1429 = vmatprep.subr.mxu0 0.0
    %1430 = vmatpush1.msra.mxu0 0.0
    %1431 = vmatprep.subr.mxu0 0.0
    %1432 = vmatpush1.msra.mxu0 0.0
    %1433 = vmatprep.subr.mxu0 0.0
    %1434 = vmatpush1.msra.mxu0 0.0
    %1435 = vmatprep.subr.mxu0 0.0
    %1436 = vmatpush1.msra.mxu0 0.0
    %1437 = vmatprep.mubr.f32.mxu0 0.0
    %1438 = vmatmul.mubr.f32.gmra.mrb[0].mxu0 %v1368
    %v1439 = vpop.f32.mrb[0].mxu0
    %v1440 = vadd.f32 0.0, %v1439
    %v1441 = vpop.f32.mrb[0].mxu0
    %1442 = vmatprep.mubr.f32.mxu0 0.0
    %1443 = vmatmul.mubr.f32.gmra.mrb[0].mxu0 %v1371
    %v1444 = vpop.f32.mrb[0].mxu0
    %v1445 = vadd.f32 0.0, %v1444
    %v1446 = vpop.f32.mrb[0].mxu0
    %1447 = vdwg.mxu0
    %1448 = vrot.lane.b32.xlu0 %v352, 112
    %v1449 = vpop.permute.xlu0 %1448
    %1450 = vrot.lane.b32.xlu0 %v357, 112
    %v1451 = vpop.permute.xlu0 %1450
    %v1455 = vsel %vm1101, %v1266, 0
    %v1458 = vsel %vm1101, %v1267, 0
    %1460 = vmatprep.subr.mxu0 0.0
    %1461 = vmatpush1.msra.mxu0 %v1449
    %1462 = vmatprep.subr.mxu0 0.0
    %1463 = vmatpush1.msra.mxu0 %v1451
    %1464 = vmatprep.subr.mxu0 0.0
    %1465 = vmatpush1.msra.mxu0 0.0
    %1466 = vmatprep.subr.mxu0 0.0
    %1467 = vmatpush1.msra.mxu0 0.0
    %1468 = vmatprep.subr.mxu0 0.0
    %1469 = vmatpush1.msra.mxu0 0.0
    %1470 = vmatprep.subr.mxu0 0.0
    %1471 = vmatpush1.msra.mxu0 0.0
    %1472 = vmatprep.subr.mxu0 0.0
    %1473 = vmatpush1.msra.mxu0 0.0
    %1474 = vmatprep.subr.mxu0 0.0
    %1475 = vmatpush1.msra.mxu0 0.0
    %1476 = vmatprep.subr.mxu0 0.0
    %1477 = vmatpush1.msra.mxu0 0.0
    %1478 = vmatprep.subr.mxu0 0.0
    %1479 = vmatpush1.msra.mxu0 0.0
    %1480 = vmatprep.subr.mxu0 0.0
    %1481 = vmatpush1.msra.mxu0 0.0
    %1482 = vmatprep.subr.mxu0 0.0
    %1483 = vmatpush1.msra.mxu0 0.0
    %1484 = vmatprep.subr.mxu0 0.0
    %1485 = vmatpush1.msra.mxu0 0.0
    %1486 = vmatprep.subr.mxu0 0.0
    %1487 = vmatpush1.msra.mxu0 0.0
    %1488 = vmatprep.subr.mxu0 0.0
    %1489 = vmatpush1.msra.mxu0 0.0
    %1490 = vmatprep.subr.mxu0 0.0
    %1491 = vmatpush1.msra.mxu0 0.0
    %1492 = vmatprep.subr.mxu0 0.0
    %1493 = vmatpush1.msra.mxu0 0.0
    %1494 = vmatprep.subr.mxu0 0.0
    %1495 = vmatpush1.msra.mxu0 0.0
    %1496 = vmatprep.subr.mxu0 0.0
    %1497 = vmatpush1.msra.mxu0 0.0
    %1498 = vmatprep.subr.mxu0 0.0
    %1499 = vmatpush1.msra.mxu0 0.0
    %1500 = vmatprep.subr.mxu0 0.0
    %1501 = vmatpush1.msra.mxu0 0.0
    %1502 = vmatprep.subr.mxu0 0.0
    %1503 = vmatpush1.msra.mxu0 0.0
    %1504 = vmatprep.subr.mxu0 0.0
    %1505 = vmatpush1.msra.mxu0 0.0
    %1506 = vmatprep.subr.mxu0 0.0
    %1507 = vmatpush1.msra.mxu0 0.0
    %1508 = vmatprep.subr.mxu0 0.0
    %1509 = vmatpush1.msra.mxu0 0.0
    %1510 = vmatprep.subr.mxu0 0.0
    %1511 = vmatpush1.msra.mxu0 0.0
    %1512 = vmatprep.subr.mxu0 0.0
    %1513 = vmatpush1.msra.mxu0 0.0
    %1514 = vmatprep.subr.mxu0 0.0
    %1515 = vmatpush1.msra.mxu0 0.0
    %1516 = vmatprep.subr.mxu0 0.0
    %1517 = vmatpush1.msra.mxu0 0.0
    %1518 = vmatprep.subr.mxu0 0.0
    %1519 = vmatpush1.msra.mxu0 0.0
    %1520 = vmatprep.subr.mxu0 0.0
    %1521 = vmatpush1.msra.mxu0 0.0
    %1522 = vmatprep.subr.mxu0 0.0
    %1523 = vmatpush1.msra.mxu0 0.0
    %1524 = vmatprep.mubr.f32.mxu0 0.0
    %1525 = vmatmul.mubr.f32.gmra.mrb[0].mxu0 %v1455
    %v1526 = vpop.f32.mrb[0].mxu0
    %v1527 = vadd.f32 0.0, %v1526
    %v1528 = vpop.f32.mrb[0].mxu0
    %1529 = vmatprep.mubr.f32.mxu0 0.0
    %1530 = vmatmul.mubr.f32.gmra.mrb[0].mxu0 %v1458
    %v1531 = vpop.f32.mrb[0].mxu0
    %v1532 = vadd.f32 0.0, %v1531
    %v1533 = vpop.f32.mrb[0].mxu0
    %1534 = vdwg.mxu0
    %1535 = vrot.lane.b32.xlu0 %v352, 104
    %v1536 = vpop.permute.xlu0 %1535
    %1537 = vrot.lane.b32.xlu0 %v357, 104
    %v1538 = vpop.permute.xlu0 %1537
    %v1542 = vsel %vm1101, %v1268, 0
    %v1545 = vsel %vm1101, %v1269, 0
    %1547 = vmatprep.subr.mxu0 0.0
    %1548 = vmatpush1.msra.mxu0 %v1536
    %1549 = vmatprep.subr.mxu0 0.0
    %1550 = vmatpush1.msra.mxu0 %v1538
    %1551 = vmatprep.subr.mxu0 0.0
    %1552 = vmatpush1.msra.mxu0 0.0
    %1553 = vmatprep.subr.mxu0 0.0
    %1554 = vmatpush1.msra.mxu0 0.0
    %1555 = vmatprep.subr.mxu0 0.0
    %1556 = vmatpush1.msra.mxu0 0.0
    %1557 = vmatprep.subr.mxu0 0.0
    %1558 = vmatpush1.msra.mxu0 0.0
    %1559 = vmatprep.subr.mxu0 0.0
    %1560 = vmatpush1.msra.mxu0 0.0
    %1561 = vmatprep.subr.mxu0 0.0
    %1562 = vmatpush1.msra.mxu0 0.0
    %1563 = vmatprep.subr.mxu0 0.0
    %1564 = vmatpush1.msra.mxu0 0.0
    %1565 = vmatprep.subr.mxu0 0.0
    %1566 = vmatpush1.msra.mxu0 0.0
    %1567 = vmatprep.subr.mxu0 0.0
    %1568 = vmatpush1.msra.mxu0 0.0
    %1569 = vmatprep.subr.mxu0 0.0
    %1570 = vmatpush1.msra.mxu0 0.0
    %1571 = vmatprep.subr.mxu0 0.0
    %1572 = vmatpush1.msra.mxu0 0.0
    %1573 = vmatprep.subr.mxu0 0.0
    %1574 = vmatpush1.msra.mxu0 0.0
    %1575 = vmatprep.subr.mxu0 0.0
    %1576 = vmatpush1.msra.mxu0 0.0
    %1577 = vmatprep.subr.mxu0 0.0
    %1578 = vmatpush1.msra.mxu0 0.0
    %1579 = vmatprep.subr.mxu0 0.0
    %1580 = vmatpush1.msra.mxu0 0.0
    %1581 = vmatprep.subr.mxu0 0.0
    %1582 = vmatpush1.msra.mxu0 0.0
    %1583 = vmatprep.subr.mxu0 0.0
    %1584 = vmatpush1.msra.mxu0 0.0
    %1585 = vmatprep.subr.mxu0 0.0
    %1586 = vmatpush1.msra.mxu0 0.0
    %1587 = vmatprep.subr.mxu0 0.0
    %1588 = vmatpush1.msra.mxu0 0.0
    %1589 = vmatprep.subr.mxu0 0.0
    %1590 = vmatpush1.msra.mxu0 0.0
    %1591 = vmatprep.subr.mxu0 0.0
    %1592 = vmatpush1.msra.mxu0 0.0
    %1593 = vmatprep.subr.mxu0 0.0
    %1594 = vmatpush1.msra.mxu0 0.0
    %1595 = vmatprep.subr.mxu0 0.0
    %1596 = vmatpush1.msra.mxu0 0.0
    %1597 = vmatprep.subr.mxu0 0.0
    %1598 = vmatpush1.msra.mxu0 0.0
    %1599 = vmatprep.subr.mxu0 0.0
    %1600 = vmatpush1.msra.mxu0 0.0
    %1601 = vmatprep.subr.mxu0 0.0
    %1602 = vmatpush1.msra.mxu0 0.0
    %1603 = vmatprep.subr.mxu0 0.0
    %1604 = vmatpush1.msra.mxu0 0.0
    %1605 = vmatprep.subr.mxu0 0.0
    %1606 = vmatpush1.msra.mxu0 0.0
    %1607 = vmatprep.subr.mxu0 0.0
    %1608 = vmatpush1.msra.mxu0 0.0
    %1609 = vmatprep.subr.mxu0 0.0
    %1610 = vmatpush1.msra.mxu0 0.0
    %1611 = vmatprep.mubr.f32.mxu0 0.0
    %1612 = vmatmul.mubr.f32.gmra.mrb[0].mxu0 %v1542
    %v1613 = vpop.f32.mrb[0].mxu0
    %v1614 = vadd.f32 0.0, %v1613
    %v1615 = vpop.f32.mrb[0].mxu0
    %1616 = vmatprep.mubr.f32.mxu0 0.0
    %1617 = vmatmul.mubr.f32.gmra.mrb[0].mxu0 %v1545
    %v1618 = vpop.f32.mrb[0].mxu0
    %v1619 = vadd.f32 0.0, %v1618
    %v1620 = vpop.f32.mrb[0].mxu0
    %1621 = vdwg.mxu0
    %1622 = vrot.lane.b32.xlu0 %v352, 96
    %v1623 = vpop.permute.xlu0 %1622
    %1624 = vrot.lane.b32.xlu0 %v357, 96
    %v1625 = vpop.permute.xlu0 %1624
    %v1629 = vsel %vm1101, %v1270, 0
    %v1632 = vsel %vm1101, %v1271, 0
    %1634 = vmatprep.subr.mxu0 0.0
    %1635 = vmatpush1.msra.mxu0 %v1623
    %1636 = vmatprep.subr.mxu0 0.0
    %1637 = vmatpush1.msra.mxu0 %v1625
    %1638 = vmatprep.subr.mxu0 0.0
    %1639 = vmatpush1.msra.mxu0 0.0
    %1640 = vmatprep.subr.mxu0 0.0
    %1641 = vmatpush1.msra.mxu0 0.0
    %1642 = vmatprep.subr.mxu0 0.0
    %1643 = vmatpush1.msra.mxu0 0.0
    %1644 = vmatprep.subr.mxu0 0.0
    %1645 = vmatpush1.msra.mxu0 0.0
    %1646 = vmatprep.subr.mxu0 0.0
    %1647 = vmatpush1.msra.mxu0 0.0
    %1648 = vmatprep.subr.mxu0 0.0
    %1649 = vmatpush1.msra.mxu0 0.0
    %1650 = vmatprep.subr.mxu0 0.0
    %1651 = vmatpush1.msra.mxu0 0.0
    %1652 = vmatprep.subr.mxu0 0.0
    %1653 = vmatpush1.msra.mxu0 0.0
    %1654 = vmatprep.subr.mxu0 0.0
    %1655 = vmatpush1.msra.mxu0 0.0
    %1656 = vmatprep.subr.mxu0 0.0
    %1657 = vmatpush1.msra.mxu0 0.0
    %1658 = vmatprep.subr.mxu0 0.0
    %1659 = vmatpush1.msra.mxu0 0.0
    %1660 = vmatprep.subr.mxu0 0.0
    %1661 = vmatpush1.msra.mxu0 0.0
    %1662 = vmatprep.subr.mxu0 0.0
    %1663 = vmatpush1.msra.mxu0 0.0
    %1664 = vmatprep.subr.mxu0 0.0
    %1665 = vmatpush1.msra.mxu0 0.0
    %1666 = vmatprep.subr.mxu0 0.0
    %1667 = vmatpush1.msra.mxu0 0.0
    %1668 = vmatprep.subr.mxu0 0.0
    %1669 = vmatpush1.msra.mxu0 0.0
    %1670 = vmatprep.subr.mxu0 0.0
    %1671 = vmatpush1.msra.mxu0 0.0
    %1672 = vmatprep.subr.mxu0 0.0
    %1673 = vmatpush1.msra.mxu0 0.0
    %1674 = vmatprep.subr.mxu0 0.0
    %1675 = vmatpush1.msra.mxu0 0.0
    %1676 = vmatprep.subr.mxu0 0.0
    %1677 = vmatpush1.msra.mxu0 0.0
    %1678 = vmatprep.subr.mxu0 0.0
    %1679 = vmatpush1.msra.mxu0 0.0
    %1680 = vmatprep.subr.mxu0 0.0
    %1681 = vmatpush1.msra.mxu0 0.0
    %1682 = vmatprep.subr.mxu0 0.0
    %1683 = vmatpush1.msra.mxu0 0.0
    %1684 = vmatprep.subr.mxu0 0.0
    %1685 = vmatpush1.msra.mxu0 0.0
    %1686 = vmatprep.subr.mxu0 0.0
    %1687 = vmatpush1.msra.mxu0 0.0
    %1688 = vmatprep.subr.mxu0 0.0
    %1689 = vmatpush1.msra.mxu0 0.0
    %1690 = vmatprep.subr.mxu0 0.0
    %1691 = vmatpush1.msra.mxu0 0.0
    %1692 = vmatprep.subr.mxu0 0.0
    %1693 = vmatpush1.msra.mxu0 0.0
    %1694 = vmatprep.subr.mxu0 0.0
    %1695 = vmatpush1.msra.mxu0 0.0
    %1696 = vmatprep.subr.mxu0 0.0
    %1697 = vmatpush1.msra.mxu0 0.0
    %1698 = vmatprep.mubr.f32.mxu0 0.0
    %1699 = vmatmul.mubr.f32.gmra.mrb[0].mxu0 %v1629
    %v1700 = vpop.f32.mrb[0].mxu0
    %v1701 = vadd.f32 0.0, %v1700
    %v1702 = vpop.f32.mrb[0].mxu0
    %1703 = vmatprep.mubr.f32.mxu0 0.0
    %1704 = vmatmul.mubr.f32.gmra.mrb[0].mxu0 %v1632
    %v1705 = vpop.f32.mrb[0].mxu0
    %v1706 = vadd.f32 0.0, %v1705
    %v1707 = vpop.f32.mrb[0].mxu0
    %1708 = vdwg.mxu0
    %1709 = vrot.lane.b32.xlu0 %v352, 88
    %v1710 = vpop.permute.xlu0 %1709
    %1711 = vrot.lane.b32.xlu0 %v357, 88
    %v1712 = vpop.permute.xlu0 %1711
    %v1716 = vsel %vm1101, %v1272, 0
    %v1719 = vsel %vm1101, %v1273, 0
    %1721 = vmatprep.subr.mxu0 0.0
    %1722 = vmatpush1.msra.mxu0 %v1710
    %1723 = vmatprep.subr.mxu0 0.0
    %1724 = vmatpush1.msra.mxu0 %v1712
    %1725 = vmatprep.subr.mxu0 0.0
    %1726 = vmatpush1.msra.mxu0 0.0
    %1727 = vmatprep.subr.mxu0 0.0
    %1728 = vmatpush1.msra.mxu0 0.0
    %1729 = vmatprep.subr.mxu0 0.0
    %1730 = vmatpush1.msra.mxu0 0.0
    %1731 = vmatprep.subr.mxu0 0.0
    %1732 = vmatpush1.msra.mxu0 0.0
    %1733 = vmatprep.subr.mxu0 0.0
    %1734 = vmatpush1.msra.mxu0 0.0
    %1735 = vmatprep.subr.mxu0 0.0
    %1736 = vmatpush1.msra.mxu0 0.0
    %1737 = vmatprep.subr.mxu0 0.0
    %1738 = vmatpush1.msra.mxu0 0.0
    %1739 = vmatprep.subr.mxu0 0.0
    %1740 = vmatpush1.msra.mxu0 0.0
    %1741 = vmatprep.subr.mxu0 0.0
    %1742 = vmatpush1.msra.mxu0 0.0
    %1743 = vmatprep.subr.mxu0 0.0
    %1744 = vmatpush1.msra.mxu0 0.0
    %1745 = vmatprep.subr.mxu0 0.0
    %1746 = vmatpush1.msra.mxu0 0.0
    %1747 = vmatprep.subr.mxu0 0.0
    %1748 = vmatpush1.msra.mxu0 0.0
    %1749 = vmatprep.subr.mxu0 0.0
    %1750 = vmatpush1.msra.mxu0 0.0
    %1751 = vmatprep.subr.mxu0 0.0
    %1752 = vmatpush1.msra.mxu0 0.0
    %1753 = vmatprep.subr.mxu0 0.0
    %1754 = vmatpush1.msra.mxu0 0.0
    %1755 = vmatprep.subr.mxu0 0.0
    %1756 = vmatpush1.msra.mxu0 0.0
    %1757 = vmatprep.subr.mxu0 0.0
    %1758 = vmatpush1.msra.mxu0 0.0
    %1759 = vmatprep.subr.mxu0 0.0
    %1760 = vmatpush1.msra.mxu0 0.0
    %1761 = vmatprep.subr.mxu0 0.0
    %1762 = vmatpush1.msra.mxu0 0.0
    %1763 = vmatprep.subr.mxu0 0.0
    %1764 = vmatpush1.msra.mxu0 0.0
    %1765 = vmatprep.subr.mxu0 0.0
    %1766 = vmatpush1.msra.mxu0 0.0
    %1767 = vmatprep.subr.mxu0 0.0
    %1768 = vmatpush1.msra.mxu0 0.0
    %1769 = vmatprep.subr.mxu0 0.0
    %1770 = vmatpush1.msra.mxu0 0.0
    %1771 = vmatprep.subr.mxu0 0.0
    %1772 = vmatpush1.msra.mxu0 0.0
    %1773 = vmatprep.subr.mxu0 0.0
    %1774 = vmatpush1.msra.mxu0 0.0
    %1775 = vmatprep.subr.mxu0 0.0
    %1776 = vmatpush1.msra.mxu0 0.0
    %1777 = vmatprep.subr.mxu0 0.0
    %1778 = vmatpush1.msra.mxu0 0.0
    %1779 = vmatprep.subr.mxu0 0.0
    %1780 = vmatpush1.msra.mxu0 0.0
    %1781 = vmatprep.subr.mxu0 0.0
    %1782 = vmatpush1.msra.mxu0 0.0
    %1783 = vmatprep.subr.mxu0 0.0
    %1784 = vmatpush1.msra.mxu0 0.0
    %1785 = vmatprep.mubr.f32.mxu0 0.0
    %1786 = vmatmul.mubr.f32.gmra.mrb[0].mxu0 %v1716
    %v1787 = vpop.f32.mrb[0].mxu0
    %v1788 = vadd.f32 0.0, %v1787
    %v1789 = vpop.f32.mrb[0].mxu0
    %1790 = vmatprep.mubr.f32.mxu0 0.0
    %1791 = vmatmul.mubr.f32.gmra.mrb[0].mxu0 %v1719
    %v1792 = vpop.f32.mrb[0].mxu0
    %v1793 = vadd.f32 0.0, %v1792
    %v1794 = vpop.f32.mrb[0].mxu0
    %1795 = vdwg.mxu0
    %1796 = vrot.lane.b32.xlu0 %v352, 80
    %v1797 = vpop.permute.xlu0 %1796
    %1798 = vrot.lane.b32.xlu0 %v357, 80
    %v1799 = vpop.permute.xlu0 %1798
    %v1803 = vsel %vm1101, %v1274, 0
    %v1806 = vsel %vm1101, %v1275, 0
    %1808 = vmatprep.subr.mxu0 0.0
    %1809 = vmatpush1.msra.mxu0 %v1797
    %1810 = vmatprep.subr.mxu0 0.0
    %1811 = vmatpush1.msra.mxu0 %v1799
    %1812 = vmatprep.subr.mxu0 0.0
    %1813 = vmatpush1.msra.mxu0 0.0
    %1814 = vmatprep.subr.mxu0 0.0
    %1815 = vmatpush1.msra.mxu0 0.0
    %1816 = vmatprep.subr.mxu0 0.0
    %1817 = vmatpush1.msra.mxu0 0.0
    %1818 = vmatprep.subr.mxu0 0.0
    %1819 = vmatpush1.msra.mxu0 0.0
    %1820 = vmatprep.subr.mxu0 0.0
    %1821 = vmatpush1.msra.mxu0 0.0
    %1822 = vmatprep.subr.mxu0 0.0
    %1823 = vmatpush1.msra.mxu0 0.0
    %1824 = vmatprep.subr.mxu0 0.0
    %1825 = vmatpush1.msra.mxu0 0.0
    %1826 = vmatprep.subr.mxu0 0.0
    %1827 = vmatpush1.msra.mxu0 0.0
    %1828 = vmatprep.subr.mxu0 0.0
    %1829 = vmatpush1.msra.mxu0 0.0
    %1830 = vmatprep.subr.mxu0 0.0
    %1831 = vmatpush1.msra.mxu0 0.0
    %1832 = vmatprep.subr.mxu0 0.0
    %1833 = vmatpush1.msra.mxu0 0.0
    %1834 = vmatprep.subr.mxu0 0.0
    %1835 = vmatpush1.msra.mxu0 0.0
    %1836 = vmatprep.subr.mxu0 0.0
    %1837 = vmatpush1.msra.mxu0 0.0
    %1838 = vmatprep.subr.mxu0 0.0
    %1839 = vmatpush1.msra.mxu0 0.0
    %1840 = vmatprep.subr.mxu0 0.0
    %1841 = vmatpush1.msra.mxu0 0.0
    %1842 = vmatprep.subr.mxu0 0.0
    %1843 = vmatpush1.msra.mxu0 0.0
    %1844 = vmatprep.subr.mxu0 0.0
    %1845 = vmatpush1.msra.mxu0 0.0
    %1846 = vmatprep.subr.mxu0 0.0
    %1847 = vmatpush1.msra.mxu0 0.0
    %1848 = vmatprep.subr.mxu0 0.0
    %1849 = vmatpush1.msra.mxu0 0.0
    %1850 = vmatprep.subr.mxu0 0.0
    %1851 = vmatpush1.msra.mxu0 0.0
    %1852 = vmatprep.subr.mxu0 0.0
    %1853 = vmatpush1.msra.mxu0 0.0
    %1854 = vmatprep.subr.mxu0 0.0
    %1855 = vmatpush1.msra.mxu0 0.0
    %1856 = vmatprep.subr.mxu0 0.0
    %1857 = vmatpush1.msra.mxu0 0.0
    %1858 = vmatprep.subr.mxu0 0.0
    %1859 = vmatpush1.msra.mxu0 0.0
    %1860 = vmatprep.subr.mxu0 0.0
    %1861 = vmatpush1.msra.mxu0 0.0
    %1862 = vmatprep.subr.mxu0 0.0
    %1863 = vmatpush1.msra.mxu0 0.0
    %1864 = vmatprep.subr.mxu0 0.0
    %1865 = vmatpush1.msra.mxu0 0.0
    %1866 = vmatprep.subr.mxu0 0.0
    %1867 = vmatpush1.msra.mxu0 0.0
    %1868 = vmatprep.subr.mxu0 0.0
    %1869 = vmatpush1.msra.mxu0 0.0
    %1870 = vmatprep.subr.mxu0 0.0
    %1871 = vmatpush1.msra.mxu0 0.0
    %1872 = vmatprep.mubr.f32.mxu0 0.0
    %1873 = vmatmul.mubr.f32.gmra.mrb[0].mxu0 %v1803
    %v1874 = vpop.f32.mrb[0].mxu0
    %v1875 = vadd.f32 0.0, %v1874
    %v1876 = vpop.f32.mrb[0].mxu0
    %1877 = vmatprep.mubr.f32.mxu0 0.0
    %1878 = vmatmul.mubr.f32.gmra.mrb[0].mxu0 %v1806
    %v1879 = vpop.f32.mrb[0].mxu0
    %v1880 = vadd.f32 0.0, %v1879
    %v1881 = vpop.f32.mrb[0].mxu0
    %1882 = vdwg.mxu0
    %1883 = vrot.lane.b32.xlu0 %v352, 72
    %v1884 = vpop.permute.xlu0 %1883
    %1885 = vrot.lane.b32.xlu0 %v357, 72
    %v1886 = vpop.permute.xlu0 %1885
    %v1890 = vsel %vm1101, %v1276, 0
    %v1893 = vsel %vm1101, %v1277, 0
    %1895 = vmatprep.subr.mxu0 0.0
    %1896 = vmatpush1.msra.mxu0 %v1884
    %1897 = vmatprep.subr.mxu0 0.0
    %1898 = vmatpush1.msra.mxu0 %v1886
    %1899 = vmatprep.subr.mxu0 0.0
    %1900 = vmatpush1.msra.mxu0 0.0
    %1901 = vmatprep.subr.mxu0 0.0
    %1902 = vmatpush1.msra.mxu0 0.0
    %1903 = vmatprep.subr.mxu0 0.0
    %1904 = vmatpush1.msra.mxu0 0.0
    %1905 = vmatprep.subr.mxu0 0.0
    %1906 = vmatpush1.msra.mxu0 0.0
    %1907 = vmatprep.subr.mxu0 0.0
    %1908 = vmatpush1.msra.mxu0 0.0
    %1909 = vmatprep.subr.mxu0 0.0
    %1910 = vmatpush1.msra.mxu0 0.0
    %1911 = vmatprep.subr.mxu0 0.0
    %1912 = vmatpush1.msra.mxu0 0.0
    %1913 = vmatprep.subr.mxu0 0.0
    %1914 = vmatpush1.msra.mxu0 0.0
    %1915 = vmatprep.subr.mxu0 0.0
    %1916 = vmatpush1.msra.mxu0 0.0
    %1917 = vmatprep.subr.mxu0 0.0
    %1918 = vmatpush1.msra.mxu0 0.0
    %1919 = vmatprep.subr.mxu0 0.0
    %1920 = vmatpush1.msra.mxu0 0.0
    %1921 = vmatprep.subr.mxu0 0.0
    %1922 = vmatpush1.msra.mxu0 0.0
    %1923 = vmatprep.subr.mxu0 0.0
    %1924 = vmatpush1.msra.mxu0 0.0
    %1925 = vmatprep.subr.mxu0 0.0
    %1926 = vmatpush1.msra.mxu0 0.0
    %1927 = vmatprep.subr.mxu0 0.0
    %1928 = vmatpush1.msra.mxu0 0.0
    %1929 = vmatprep.subr.mxu0 0.0
    %1930 = vmatpush1.msra.mxu0 0.0
    %1931 = vmatprep.subr.mxu0 0.0
    %1932 = vmatpush1.msra.mxu0 0.0
    %1933 = vmatprep.subr.mxu0 0.0
    %1934 = vmatpush1.msra.mxu0 0.0
    %1935 = vmatprep.subr.mxu0 0.0
    %1936 = vmatpush1.msra.mxu0 0.0
    %1937 = vmatprep.subr.mxu0 0.0
    %1938 = vmatpush1.msra.mxu0 0.0
    %1939 = vmatprep.subr.mxu0 0.0
    %1940 = vmatpush1.msra.mxu0 0.0
    %1941 = vmatprep.subr.mxu0 0.0
    %1942 = vmatpush1.msra.mxu0 0.0
    %1943 = vmatprep.subr.mxu0 0.0
    %1944 = vmatpush1.msra.mxu0 0.0
    %1945 = vmatprep.subr.mxu0 0.0
    %1946 = vmatpush1.msra.mxu0 0.0
    %1947 = vmatprep.subr.mxu0 0.0
    %1948 = vmatpush1.msra.mxu0 0.0
    %1949 = vmatprep.subr.mxu0 0.0
    %1950 = vmatpush1.msra.mxu0 0.0
    %1951 = vmatprep.subr.mxu0 0.0
    %1952 = vmatpush1.msra.mxu0 0.0
    %1953 = vmatprep.subr.mxu0 0.0
    %1954 = vmatpush1.msra.mxu0 0.0
    %1955 = vmatprep.subr.mxu0 0.0
    %1956 = vmatpush1.msra.mxu0 0.0
    %1957 = vmatprep.subr.mxu0 0.0
    %1958 = vmatpush1.msra.mxu0 0.0
    %1959 = vmatprep.mubr.f32.mxu0 0.0
    %1960 = vmatmul.mubr.f32.gmra.mrb[0].mxu0 %v1890
    %v1961 = vpop.f32.mrb[0].mxu0
    %v1962 = vadd.f32 0.0, %v1961
    %v1963 = vpop.f32.mrb[0].mxu0
    %1964 = vmatprep.mubr.f32.mxu0 0.0
    %1965 = vmatmul.mubr.f32.gmra.mrb[0].mxu0 %v1893
    %v1966 = vpop.f32.mrb[0].mxu0
    %v1967 = vadd.f32 0.0, %v1966
    %v1968 = vpop.f32.mrb[0].mxu0
    %1969 = vdwg.mxu0
    %1972 = vrot.lane.b32.xlu0 %v1440, 8
    %v1973 = vpop.permute.xlu0 %1972
    %1974 = vrot.lane.b32.xlu0 %v1445, 8
    %v1975 = vpop.permute.xlu0 %1974
    %1980 = vrot.lane.b32.xlu0 %v1527, 16
    %v1981 = vpop.permute.xlu0 %1980
    %1982 = vrot.lane.b32.xlu0 %v1532, 16
    %v1983 = vpop.permute.xlu0 %1982
    %1988 = vrot.lane.b32.xlu0 %v1614, 24
    %v1989 = vpop.permute.xlu0 %1988
    %1990 = vrot.lane.b32.xlu0 %v1619, 24
    %v1991 = vpop.permute.xlu0 %1990
    %1996 = vrot.lane.b32.xlu0 %v1701, 32
    %v1997 = vpop.permute.xlu0 %1996
    %1998 = vrot.lane.b32.xlu0 %v1706, 32
    %v1999 = vpop.permute.xlu0 %1998
    %2004 = vrot.lane.b32.xlu0 %v1788, 40
    %v2005 = vpop.permute.xlu0 %2004
    %2006 = vrot.lane.b32.xlu0 %v1793, 40
    %v2007 = vpop.permute.xlu0 %2006
    %2012 = vrot.lane.b32.xlu0 %v1875, 48
    %v2013 = vpop.permute.xlu0 %2012
    %2014 = vrot.lane.b32.xlu0 %v1880, 48
    %v2015 = vpop.permute.xlu0 %2014
    %2020 = vrot.lane.b32.xlu0 %v1962, 56
    %v2021 = vpop.permute.xlu0 %2020
    %2022 = vrot.lane.b32.xlu0 %v1967, 56
    %v2023 = vpop.permute.xlu0 %2022
    %v2026 = vsel %vm360, %v1351, %v1973
    %v2027 = vsel %vm360, %v1356, %v1975
    %v2028 = vsel %vm1101, %v2026, %v1981
    %v2029 = vsel %vm1101, %v2027, %v1983
    %vm2030 = vcmask 195584
    %v2031 = vsel %vm2030, %v2028, %v1989
    %v2032 = vsel %vm2030, %v2029, %v1991
    %vm2033 = vcmask 261120
    %v2034 = vsel %vm2033, %v2031, %v1997
    %v2035 = vsel %vm2033, %v2032, %v1999
    %vm2036 = vcmask 326656
    %v2037 = vsel %vm2036, %v2034, %v2005
    %v2038 = vsel %vm2036, %v2035, %v2007
    %vm2039 = vcmask 392192
    %v2040 = vsel %vm2039, %v2037, %v2013
    %v2041 = vsel %vm2039, %v2038, %v2015
    %vm2042 = vcmask 457728
    %v2043 = vsel %vm2042, %v2040, %v2021
    %v2044 = vsel %vm2042, %v2041, %v2023
    %s2045 = scalar_lea.vmem [#allocation5], 192
    %v2046 = vld [vmem:[%s2045] sm:$0xff]
    %v2047 = vld [vmem:[%s2045 + $0x8] sm:$0xff]
    %v2048 = vld [vmem:[%s2045 + $0x10] sm:$0xff]
    %v2049 = vld [vmem:[%s2045 + $0x18] sm:$0xff]
    %v2050 = vld [vmem:[%s2045 + $0x20] sm:$0xff]
    %v2051 = vld [vmem:[%s2045 + $0x28] sm:$0xff]
    %v2052 = vld [vmem:[%s2045 + $0x30] sm:$0xff]
    %v2053 = vld [vmem:[%s2045 + $0x38] sm:$0xff]
    %v2054 = vld [vmem:[#allocation8] sm:$0x1]
    %v2055 = vlaneseq
    %v2056 = vshrl.u32 %v2055, 7
    %v2057 = vsub.s32 0, %v2056
    %v2058 = vrot.slane %v2054, %v2057
    %v2060 = vsel %vm108, %v2043, 0
    %v2063 = vsel %vm108, %v2044, 0
    %2065 = vmatprep.subr.mxu0 0.0
    %2066 = vmatpush1.msra.mxu0 %v2046
    %2067 = vmatprep.subr.mxu0 0.0
    %2068 = vmatpush1.msra.mxu0 %v2047
    %2069 = vmatprep.subr.mxu0 0.0
    %2070 = vmatpush1.msra.mxu0 %v2048
    %2071 = vmatprep.subr.mxu0 0.0
    %2072 = vmatpush1.msra.mxu0 %v2049
    %2073 = vmatprep.subr.mxu0 0.0
    %2074 = vmatpush1.msra.mxu0 %v2050
    %2075 = vmatprep.subr.mxu0 0.0
    %2076 = vmatpush1.msra.mxu0 %v2051
    %2077 = vmatprep.subr.mxu0 0.0
    %2078 = vmatpush1.msra.mxu0 %v2052
    %2079 = vmatprep.subr.mxu0 0.0
    %2080 = vmatpush1.msra.mxu0 %v2053
    %2081 = vmatprep.subr.mxu0 0.0
    %2082 = vmatpush1.msra.mxu0 0.0
    %2083 = vmatprep.subr.mxu0 0.0
    %2084 = vmatpush1.msra.mxu0 0.0
    %2085 = vmatprep.subr.mxu0 0.0
    %2086 = vmatpush1.msra.mxu0 0.0
    %2087 = vmatprep.subr.mxu0 0.0
    %2088 = vmatpush1.msra.mxu0 0.0
    %2089 = vmatprep.subr.mxu0 0.0
    %2090 = vmatpush1.msra.mxu0 0.0
    %2091 = vmatprep.subr.mxu0 0.0
    %2092 = vmatpush1.msra.mxu0 0.0
    %2093 = vmatprep.subr.mxu0 0.0
    %2094 = vmatpush1.msra.mxu0 0.0
    %2095 = vmatprep.subr.mxu0 0.0
    %2096 = vmatpush1.msra.mxu0 0.0
    %2097 = vmatprep.subr.mxu0 0.0
    %2098 = vmatpush1.msra.mxu0 0.0
    %2099 = vmatprep.subr.mxu0 0.0
    %2100 = vmatpush1.msra.mxu0 0.0
    %2101 = vmatprep.subr.mxu0 0.0
    %2102 = vmatpush1.msra.mxu0 0.0
    %2103 = vmatprep.subr.mxu0 0.0
    %2104 = vmatpush1.msra.mxu0 0.0
    %2105 = vmatprep.subr.mxu0 0.0
    %2106 = vmatpush1.msra.mxu0 0.0
    %2107 = vmatprep.subr.mxu0 0.0
    %2108 = vmatpush1.msra.mxu0 0.0
    %2109 = vmatprep.subr.mxu0 0.0
    %2110 = vmatpush1.msra.mxu0 0.0
    %2111 = vmatprep.subr.mxu0 0.0
    %2112 = vmatpush1.msra.mxu0 0.0
    %2113 = vmatprep.subr.mxu0 0.0
    %2114 = vmatpush1.msra.mxu0 0.0
    %2115 = vmatprep.subr.mxu0 0.0
    %2116 = vmatpush1.msra.mxu0 0.0
    %2117 = vmatprep.subr.mxu0 0.0
    %2118 = vmatpush1.msra.mxu0 0.0
    %2119 = vmatprep.subr.mxu0 0.0
    %2120 = vmatpush1.msra.mxu0 0.0
    %2121 = vmatprep.subr.mxu0 0.0
    %2122 = vmatpush1.msra.mxu0 0.0
    %2123 = vmatprep.subr.mxu0 0.0
    %2124 = vmatpush1.msra.mxu0 0.0
    %2125 = vmatprep.subr.mxu0 0.0
    %2126 = vmatpush1.msra.mxu0 0.0
    %2127 = vmatprep.subr.mxu0 0.0
    %2128 = vmatpush1.msra.mxu0 0.0
    %2129 = vmatprep.mubr.f32.mxu0 0.0
    %2130 = vmatmul.mubr.f32.gmra.mrb[0].mxu0 %v2060
    %v2131 = vpop.f32.mrb[0].mxu0
    %v2132 = vadd.f32 %v2058, %v2131
    %v2133 = vpop.f32.mrb[0].mxu0
    %2134 = vmatprep.mubr.f32.mxu0 0.0
    %2135 = vmatmul.mubr.f32.gmra.mrb[0].mxu0 %v2063
    %v2136 = vpop.f32.mrb[0].mxu0
    %v2137 = vadd.f32 %v2058, %v2136
    %v2138 = vpop.f32.mrb[0].mxu0
    %2139 = vdwg.mxu0
    %v2140 = vadd.f32 %v98, %v2132
    %v2141 = vadd.f32 %v99, %v2137
    %v2142 = vsel %vm2033, %v2140, 0.0
    %2143 = vadd.xlane.f32.xlu0 %v2142
    %v2144 = vpop.xlane.xlu0 %2143
    %v2145 = vsel %vm2033, %v2141, 0.0
    %2146 = vadd.xlane.f32.xlu0 %v2145
    %v2147 = vpop.xlane.xlu0 %2146
    %v2148 = vrcp.pop 32.0
    %v2149 = vmul.f32 %v2144, %v2148
    %v2150 = vmul.f32 %v2147, %v2148
    %v2151 = vsub.f32 %v2140, %v2149
    %v2152 = vsub.f32 %v2141, %v2150
    %v2153 = vmul.f32 %v2151, %v2151
    %v2154 = vmul.f32 %v2152, %v2152
    %v2155 = vsel %vm2033, %v2153, 0.0
    %2156 = vadd.xlane.f32.xlu0 %v2155
    %v2157 = vpop.xlane.xlu0 %2156
    %v2158 = vsel %vm2033, %v2154, 0.0
    %2159 = vadd.xlane.f32.xlu0 %v2158
    %v2160 = vpop.xlane.xlu0 %2159
    %v2161 = vmul.f32 %v2157, %v2148
    %v2162 = vmul.f32 %v2160, %v2148
    %v2163 = vadd.f32 %v2161, 1e-05
    %v2164 = vadd.f32 %v2162, 1e-05
    %v2165 = vrsqrt.pop %v2163
    %v2166 = vrsqrt.pop %v2164
    %v2167 = vmul.f32 %v2151, %v2165
    %v2168 = vmul.f32 %v2152, %v2166
    %2171 = vrot.lane.b32.xlu0 %v2140, 96
    %v2172 = vpop.permute.xlu0 %2171
    %2173 = vrot.lane.b32.xlu0 %v2141, 96
    %v2174 = vpop.permute.xlu0 %2173
    %v2177 = vsel %vm2033, %v2172, 0.0
    %2178 = vadd.xlane.f32.xlu0 %v2177
    %v2179 = vpop.xlane.xlu0 %2178
    %v2180 = vsel %vm2033, %v2174, 0.0
    %2181 = vadd.xlane.f32.xlu0 %v2180
    %v2182 = vpop.xlane.xlu0 %2181
    %v2183 = vmul.f32 %v2179, %v2148
    %v2184 = vmul.f32 %v2182, %v2148
    %v2185 = vsub.f32 %v2140, %v2183
    %v2186 = vsub.f32 %v2141, %v2184
    %v2187 = vmul.f32 %v2185, %v2185
    %v2188 = vmul.f32 %v2186, %v2186
    %2191 = vrot.lane.b32.xlu0 %v2187, 96
    %v2192 = vpop.permute.xlu0 %2191
    %2193 = vrot.lane.b32.xlu0 %v2188, 96
    %v2194 = vpop.permute.xlu0 %2193
    %v2197 = vsel %vm2033, %v2192, 0.0
    %2198 = vadd.xlane.f32.xlu0 %v2197
    %v2199 = vpop.xlane.xlu0 %2198
    %v2200 = vsel %vm2033, %v2194, 0.0
    %2201 = vadd.xlane.f32.xlu0 %v2200
    %v2202 = vpop.xlane.xlu0 %2201
    %v2203 = vmul.f32 %v2199, %v2148
    %v2204 = vmul.f32 %v2202, %v2148
    %v2205 = vadd.f32 %v2203, 1e-05
    %v2206 = vadd.f32 %v2204, 1e-05
    %v2207 = vrsqrt.pop %v2205
    %v2208 = vrsqrt.pop %v2206
    %v2209 = vmul.f32 %v2185, %v2207
    %v2210 = vmul.f32 %v2186, %v2208
    %v2211 = vsel %vm2033, %v2167, %v2209
    %v2212 = vsel %vm2033, %v2168, %v2210
    %v2213 = vld [vmem:[#allocation8 + $0x4] sm:$0x1]
    %v2214 = vlaneseq
    %v2215 = vshrl.u32 %v2214, 7
    %v2216 = vsub.s32 0, %v2215
    %v2217 = vrot.slane %v2213, %v2216
    %v2218 = vmul.f32 %v2211, %v2217
    %v2219 = vmul.f32 %v2212, %v2217
    %v2220 = vld [vmem:[#allocation8 + $0x7] sm:$0x1]
    %v2221 = vlaneseq
    %v2222 = vshrl.u32 %v2221, 7
    %v2223 = vsub.s32 0, %v2222
    %v2224 = vrot.slane %v2220, %v2223
    %v2225 = vadd.f32 %v2218, %v2224
    %v2226 = vadd.f32 %v2219, %v2224
    %2229 = vrot.lane.b32.xlu0 %v2225, 96
    %v2230 = vpop.permute.xlu0 %2229
    %2231 = vrot.lane.b32.xlu0 %v2226, 96
    %v2232 = vpop.permute.xlu0 %2231
    %2235 = vrot.lane.b32.xlu0 %v2225, 32
    %v2236 = vpop.permute.xlu0 %2235
    %2237 = vrot.lane.b32.xlu0 %v2226, 32
    %v2238 = vpop.permute.xlu0 %2237
    %v2241 = vsel %vm2033, %v2230, %v2236
    %v2242 = vsel %vm2033, %v2232, %v2238
    %s2243 = scalar_lea.vmem [#allocation5], 256
    %v2244 = vld [vmem:[%s2243] sm:$0xff]
    %v2245 = vld [vmem:[%s2243 + $0x8] sm:$0xff]
    %v2246 = vld [vmem:[%s2243 + $0x10] sm:$0xff]
    %v2247 = vld [vmem:[%s2243 + $0x18] sm:$0xff]
    %v2248 = vld [vmem:[%s2243 + $0x20] sm:$0xff]
    %v2249 = vld [vmem:[%s2243 + $0x28] sm:$0xff]
    %v2250 = vld [vmem:[%s2243 + $0x30] sm:$0xff]
    %v2251 = vld [vmem:[%s2243 + $0x38] sm:$0xff]
    %v2252 = vsel %vm108, %v2225, 0
    %v2254 = vsel %vm108, %v2226, 0
    %2256 = vmatprep.subr.mxu0 0.0
    %2257 = vmatpush1.msra.mxu0 %v2244
    %2258 = vmatprep.subr.mxu0 0.0
    %2259 = vmatpush1.msra.mxu0 %v2245
    %2260 = vmatprep.subr.mxu0 0.0
    %2261 = vmatpush1.msra.mxu0 %v2246
    %2262 = vmatprep.subr.mxu0 0.0
    %2263 = vmatpush1.msra.mxu0 %v2247
    %2264 = vmatprep.subr.mxu0 0.0
    %2265 = vmatpush1.msra.mxu0 %v2248
    %2266 = vmatprep.subr.mxu0 0.0
    %2267 = vmatpush1.msra.mxu0 %v2249
    %2268 = vmatprep.subr.mxu0 0.0
    %2269 = vmatpush1.msra.mxu0 %v2250
    %2270 = vmatprep.subr.mxu0 0.0
    %2271 = vmatpush1.msra.mxu0 %v2251
    %2272 = vmatprep.subr.mxu0 0.0
    %2273 = vmatpush1.msra.mxu0 0.0
    %2274 = vmatprep.subr.mxu0 0.0
    %2275 = vmatpush1.msra.mxu0 0.0
    %2276 = vmatprep.subr.mxu0 0.0
    %2277 = vmatpush1.msra.mxu0 0.0
    %2278 = vmatprep.subr.mxu0 0.0
    %2279 = vmatpush1.msra.mxu0 0.0
    %2280 = vmatprep.subr.mxu0 0.0
    %2281 = vmatpush1.msra.mxu0 0.0
    %2282 = vmatprep.subr.mxu0 0.0
    %2283 = vmatpush1.msra.mxu0 0.0
    %2284 = vmatprep.subr.mxu0 0.0
    %2285 = vmatpush1.msra.mxu0 0.0
    %2286 = vmatprep.subr.mxu0 0.0
    %2287 = vmatpush1.msra.mxu0 0.0
    %2288 = vmatprep.subr.mxu0 0.0
    %2289 = vmatpush1.msra.mxu0 0.0
    %2290 = vmatprep.subr.mxu0 0.0
    %2291 = vmatpush1.msra.mxu0 0.0
    %2292 = vmatprep.subr.mxu0 0.0
    %2293 = vmatpush1.msra.mxu0 0.0
    %2294 = vmatprep.subr.mxu0 0.0
    %2295 = vmatpush1.msra.mxu0 0.0
    %2296 = vmatprep.subr.mxu0 0.0
    %2297 = vmatpush1.msra.mxu0 0.0
    %2298 = vmatprep.subr.mxu0 0.0
    %2299 = vmatpush1.msra.mxu0 0.0
    %2300 = vmatprep.subr.mxu0 0.0
    %2301 = vmatpush1.msra.mxu0 0.0
    %2302 = vmatprep.subr.mxu0 0.0
    %2303 = vmatpush1.msra.mxu0 0.0
    %2304 = vmatprep.subr.mxu0 0.0
    %2305 = vmatpush1.msra.mxu0 0.0
    %2306 = vmatprep.subr.mxu0 0.0
    %2307 = vmatpush1.msra.mxu0 0.0
    %2308 = vmatprep.subr.mxu0 0.0
    %2309 = vmatpush1.msra.mxu0 0.0
    %2310 = vmatprep.subr.mxu0 0.0
    %2311 = vmatpush1.msra.mxu0 0.0
    %2312 = vmatprep.subr.mxu0 0.0
    %2313 = vmatpush1.msra.mxu0 0.0
    %2314 = vmatprep.subr.mxu0 0.0
    %2315 = vmatpush1.msra.mxu0 0.0
    %2316 = vmatprep.subr.mxu0 0.0
    %2317 = vmatpush1.msra.mxu0 0.0
    %2318 = vmatprep.subr.mxu0 0.0
    %2319 = vmatpush1.msra.mxu0 0.0
    %2320 = vmatprep.mubr.f32.mxu0 0.0
    %2321 = vmatmul.mubr.f32.gmra.mrb[0].mxu0 %v2252
    %v2322 = vpop.f32.mrb[0].mxu0
    %v2323 = vadd.f32 0.0, %v2322
    %v2324 = vpop.f32.mrb[0].mxu0
    %2325 = vmatprep.mubr.f32.mxu0 0.0
    %2326 = vmatmul.mubr.f32.gmra.mrb[0].mxu0 %v2254
    %v2327 = vpop.f32.mrb[0].mxu0
    %v2328 = vadd.f32 0.0, %v2327
    %v2329 = vpop.f32.mrb[0].mxu0
    %2330 = vdwg.mxu0
    %v2331 = vmul.f32 %v2323, 0.35355338
    %v2332 = vmul.f32 %v2328, 0.35355338
    %s2333 = scalar_lea.vmem [#allocation5], 320
    %v2334 = vld [vmem:[%s2333] sm:$0xff]
    %v2335 = vld [vmem:[%s2333 + $0x8] sm:$0xff]
    %v2336 = vld [vmem:[%s2333 + $0x10] sm:$0xff]
    %v2337 = vld [vmem:[%s2333 + $0x18] sm:$0xff]
    %v2338 = vld [vmem:[%s2333 + $0x20] sm:$0xff]
    %v2339 = vld [vmem:[%s2333 + $0x28] sm:$0xff]
    %v2340 = vld [vmem:[%s2333 + $0x30] sm:$0xff]
    %v2341 = vld [vmem:[%s2333 + $0x38] sm:$0xff]
    %v2343 = vsel %vm108, %v2241, 0
    %v2346 = vsel %vm108, %v2242, 0
    %2348 = vmatprep.subr.mxu0 0.0
    %2349 = vmatpush1.msra.mxu0 %v2334
    %2350 = vmatprep.subr.mxu0 0.0
    %2351 = vmatpush1.msra.mxu0 %v2335
    %2352 = vmatprep.subr.mxu0 0.0
    %2353 = vmatpush1.msra.mxu0 %v2336
    %2354 = vmatprep.subr.mxu0 0.0
    %2355 = vmatpush1.msra.mxu0 %v2337
    %2356 = vmatprep.subr.mxu0 0.0
    %2357 = vmatpush1.msra.mxu0 %v2338
    %2358 = vmatprep.subr.mxu0 0.0
    %2359 = vmatpush1.msra.mxu0 %v2339
    %2360 = vmatprep.subr.mxu0 0.0
    %2361 = vmatpush1.msra.mxu0 %v2340
    %2362 = vmatprep.subr.mxu0 0.0
    %2363 = vmatpush1.msra.mxu0 %v2341
    %2364 = vmatprep.subr.mxu0 0.0
    %2365 = vmatpush1.msra.mxu0 0.0
    %2366 = vmatprep.subr.mxu0 0.0
    %2367 = vmatpush1.msra.mxu0 0.0
    %2368 = vmatprep.subr.mxu0 0.0
    %2369 = vmatpush1.msra.mxu0 0.0
    %2370 = vmatprep.subr.mxu0 0.0
    %2371 = vmatpush1.msra.mxu0 0.0
    %2372 = vmatprep.subr.mxu0 0.0
    %2373 = vmatpush1.msra.mxu0 0.0
    %2374 = vmatprep.subr.mxu0 0.0
    %2375 = vmatpush1.msra.mxu0 0.0
    %2376 = vmatprep.subr.mxu0 0.0
    %2377 = vmatpush1.msra.mxu0 0.0
    %2378 = vmatprep.subr.mxu0 0.0
    %2379 = vmatpush1.msra.mxu0 0.0
    %2380 = vmatprep.subr.mxu0 0.0
    %2381 = vmatpush1.msra.mxu0 0.0
    %2382 = vmatprep.subr.mxu0 0.0
    %2383 = vmatpush1.msra.mxu0 0.0
    %2384 = vmatprep.subr.mxu0 0.0
    %2385 = vmatpush1.msra.mxu0 0.0
    %2386 = vmatprep.subr.mxu0 0.0
    %2387 = vmatpush1.msra.mxu0 0.0
    %2388 = vmatprep.subr.mxu0 0.0
    %2389 = vmatpush1.msra.mxu0 0.0
    %2390 = vmatprep.subr.mxu0 0.0
    %2391 = vmatpush1.msra.mxu0 0.0
    %2392 = vmatprep.subr.mxu0 0.0
    %2393 = vmatpush1.msra.mxu0 0.0
    %2394 = vmatprep.subr.mxu0 0.0
    %2395 = vmatpush1.msra.mxu0 0.0
    %2396 = vmatprep.subr.mxu0 0.0
    %2397 = vmatpush1.msra.mxu0 0.0
    %2398 = vmatprep.subr.mxu0 0.0
    %2399 = vmatpush1.msra.mxu0 0.0
    %2400 = vmatprep.subr.mxu0 0.0
    %2401 = vmatpush1.msra.mxu0 0.0
    %2402 = vmatprep.subr.mxu0 0.0
    %2403 = vmatpush1.msra.mxu0 0.0
    %2404 = vmatprep.subr.mxu0 0.0
    %2405 = vmatpush1.msra.mxu0 0.0
    %2406 = vmatprep.subr.mxu0 0.0
    %2407 = vmatpush1.msra.mxu0 0.0
    %2408 = vmatprep.subr.mxu0 0.0
    %2409 = vmatpush1.msra.mxu0 0.0
    %2410 = vmatprep.subr.mxu0 0.0
    %2411 = vmatpush1.msra.mxu0 0.0
    %2412 = vmatprep.mubr.f32.mxu0 0.0
    %2413 = vmatmul.mubr.f32.gmra.mrb[0].mxu0 %v2343
    %v2414 = vpop.f32.mrb[0].mxu0
    %v2415 = vadd.f32 0.0, %v2414
    %v2416 = vpop.f32.mrb[0].mxu0
    %2417 = vmatprep.mubr.f32.mxu0 0.0
    %2418 = vmatmul.mubr.f32.gmra.mrb[0].mxu0 %v2346
    %v2419 = vpop.f32.mrb[0].mxu0
    %v2420 = vadd.f32 0.0, %v2419
    %v2421 = vpop.f32.mrb[0].mxu0
    %2422 = vdwg.mxu0
    %s2423 = scalar_lea.vmem [#allocation5], 384
    %v2424 = vld [vmem:[%s2423] sm:$0xff]
    %v2425 = vld [vmem:[%s2423 + $0x8] sm:$0xff]
    %v2426 = vld [vmem:[%s2423 + $0x10] sm:$0xff]
    %v2427 = vld [vmem:[%s2423 + $0x18] sm:$0xff]
    %v2428 = vld [vmem:[%s2423 + $0x20] sm:$0xff]
    %v2429 = vld [vmem:[%s2423 + $0x28] sm:$0xff]
    %v2430 = vld [vmem:[%s2423 + $0x30] sm:$0xff]
    %v2431 = vld [vmem:[%s2423 + $0x38] sm:$0xff]
    %2432 = vmatprep.subr.mxu0 0.0
    %2433 = vmatpush1.msra.mxu0 %v2424
    %2434 = vmatprep.subr.mxu0 0.0
    %2435 = vmatpush1.msra.mxu0 %v2425
    %2436 = vmatprep.subr.mxu0 0.0
    %2437 = vmatpush1.msra.mxu0 %v2426
    %2438 = vmatprep.subr.mxu0 0.0
    %2439 = vmatpush1.msra.mxu0 %v2427
    %2440 = vmatprep.subr.mxu0 0.0
    %2441 = vmatpush1.msra.mxu0 %v2428
    %2442 = vmatprep.subr.mxu0 0.0
    %2443 = vmatpush1.msra.mxu0 %v2429
    %2444 = vmatprep.subr.mxu0 0.0
    %2445 = vmatpush1.msra.mxu0 %v2430
    %2446 = vmatprep.subr.mxu0 0.0
    %2447 = vmatpush1.msra.mxu0 %v2431
    %2448 = vmatprep.subr.mxu0 0.0
    %2449 = vmatpush1.msra.mxu0 0.0
    %2450 = vmatprep.subr.mxu0 0.0
    %2451 = vmatpush1.msra.mxu0 0.0
    %2452 = vmatprep.subr.mxu0 0.0
    %2453 = vmatpush1.msra.mxu0 0.0
    %2454 = vmatprep.subr.mxu0 0.0
    %2455 = vmatpush1.msra.mxu0 0.0
    %2456 = vmatprep.subr.mxu0 0.0
    %2457 = vmatpush1.msra.mxu0 0.0
    %2458 = vmatprep.subr.mxu0 0.0
    %2459 = vmatpush1.msra.mxu0 0.0
    %2460 = vmatprep.subr.mxu0 0.0
    %2461 = vmatpush1.msra.mxu0 0.0
    %2462 = vmatprep.subr.mxu0 0.0
    %2463 = vmatpush1.msra.mxu0 0.0
    %2464 = vmatprep.subr.mxu0 0.0
    %2465 = vmatpush1.msra.mxu0 0.0
    %2466 = vmatprep.subr.mxu0 0.0
    %2467 = vmatpush1.msra.mxu0 0.0
    %2468 = vmatprep.subr.mxu0 0.0
    %2469 = vmatpush1.msra.mxu0 0.0
    %2470 = vmatprep.subr.mxu0 0.0
    %2471 = vmatpush1.msra.mxu0 0.0
    %2472 = vmatprep.subr.mxu0 0.0
    %2473 = vmatpush1.msra.mxu0 0.0
    %2474 = vmatprep.subr.mxu0 0.0
    %2475 = vmatpush1.msra.mxu0 0.0
    %2476 = vmatprep.subr.mxu0 0.0
    %2477 = vmatpush1.msra.mxu0 0.0
    %2478 = vmatprep.subr.mxu0 0.0
    %2479 = vmatpush1.msra.mxu0 0.0
    %2480 = vmatprep.subr.mxu0 0.0
    %2481 = vmatpush1.msra.mxu0 0.0
    %2482 = vmatprep.subr.mxu0 0.0
    %2483 = vmatpush1.msra.mxu0 0.0
    %2484 = vmatprep.subr.mxu0 0.0
    %2485 = vmatpush1.msra.mxu0 0.0
    %2486 = vmatprep.subr.mxu0 0.0
    %2487 = vmatpush1.msra.mxu0 0.0
    %2488 = vmatprep.subr.mxu0 0.0
    %2489 = vmatpush1.msra.mxu0 0.0
    %2490 = vmatprep.subr.mxu0 0.0
    %2491 = vmatpush1.msra.mxu0 0.0
    %2492 = vmatprep.subr.mxu0 0.0
    %2493 = vmatpush1.msra.mxu0 0.0
    %2494 = vmatprep.subr.mxu0 0.0
    %2495 = vmatpush1.msra.mxu0 0.0
    %2496 = vmatprep.mubr.f32.mxu0 0.0
    %2497 = vmatmul.mubr.f32.gmra.mrb[0].mxu0 %v2343
    %v2498 = vpop.f32.mrb[0].mxu0
    %v2499 = vadd.f32 0.0, %v2498
    %v2500 = vpop.f32.mrb[0].mxu0
    %2501 = vmatprep.mubr.f32.mxu0 0.0
    %2502 = vmatmul.mubr.f32.gmra.mrb[0].mxu0 %v2346
    %v2503 = vpop.f32.mrb[0].mxu0
    %v2504 = vadd.f32 0.0, %v2503
    %v2505 = vpop.f32.mrb[0].mxu0
    %2506 = vdwg.mxu0
    %v2508 = vsel %vm360, %v2331, 0
    %v2511 = vsel %vm360, %v2332, 0
    %v2514 = vsel %vm360, %v2415, 0
    %v2517 = vsel %vm360, %v2420, 0
    %2519 = vmatprep.subr.mxu0 0.0
    %2520 = vmatpush1.xpose.msra.mxu0 %v2514
    %2521 = vmatprep.subr.mxu0 0.0
    %2522 = vmatpush1.xpose.msra.mxu0 %v2517
    %2523 = vmatprep.subr.mxu0 0.0
    %2524 = vmatpush1.xpose.msra.mxu0 0.0
    %2525 = vmatprep.subr.mxu0 0.0
    %2526 = vmatpush1.xpose.msra.mxu0 0.0
    %2527 = vmatprep.subr.mxu0 0.0
    %2528 = vmatpush1.xpose.msra.mxu0 0.0
    %2529 = vmatprep.subr.mxu0 0.0
    %2530 = vmatpush1.xpose.msra.mxu0 0.0
    %2531 = vmatprep.subr.mxu0 0.0
    %2532 = vmatpush1.xpose.msra.mxu0 0.0
    %2533 = vmatprep.subr.mxu0 0.0
    %2534 = vmatpush1.xpose.msra.mxu0 0.0
    %2535 = vmatprep.subr.mxu0 0.0
    %2536 = vmatpush1.xpose.msra.mxu0 0.0
    %2537 = vmatprep.subr.mxu0 0.0
    %2538 = vmatpush1.xpose.msra.mxu0 0.0
    %2539 = vmatprep.subr.mxu0 0.0
    %2540 = vmatpush1.xpose.msra.mxu0 0.0
    %2541 = vmatprep.subr.mxu0 0.0
    %2542 = vmatpush1.xpose.msra.mxu0 0.0
    %2543 = vmatprep.subr.mxu0 0.0
    %2544 = vmatpush1.xpose.msra.mxu0 0.0
    %2545 = vmatprep.subr.mxu0 0.0
    %2546 = vmatpush1.xpose.msra.mxu0 0.0
    %2547 = vmatprep.subr.mxu0 0.0
    %2548 = vmatpush1.xpose.msra.mxu0 0.0
    %2549 = vmatprep.subr.mxu0 0.0
    %2550 = vmatpush1.xpose.msra.mxu0 0.0
    %2551 = vmatprep.subr.mxu0 0.0
    %2552 = vmatpush1.xpose.msra.mxu0 0.0
    %2553 = vmatprep.subr.mxu0 0.0
    %2554 = vmatpush1.xpose.msra.mxu0 0.0
    %2555 = vmatprep.subr.mxu0 0.0
    %2556 = vmatpush1.xpose.msra.mxu0 0.0
    %2557 = vmatprep.subr.mxu0 0.0
    %2558 = vmatpush1.xpose.msra.mxu0 0.0
    %2559 = vmatprep.subr.mxu0 0.0
    %2560 = vmatpush1.xpose.msra.mxu0 0.0
    %2561 = vmatprep.subr.mxu0 0.0
    %2562 = vmatpush1.xpose.msra.mxu0 0.0
    %2563 = vmatprep.subr.mxu0 0.0
    %2564 = vmatpush1.xpose.msra.mxu0 0.0
    %2565 = vmatprep.subr.mxu0 0.0
    %2566 = vmatpush1.xpose.msra.mxu0 0.0
    %2567 = vmatprep.subr.mxu0 0.0
    %2568 = vmatpush1.xpose.msra.mxu0 0.0
    %2569 = vmatprep.subr.mxu0 0.0
    %2570 = vmatpush1.xpose.msra.mxu0 0.0
    %2571 = vmatprep.subr.mxu0 0.0
    %2572 = vmatpush1.xpose.msra.mxu0 0.0
    %2573 = vmatprep.subr.mxu0 0.0
    %2574 = vmatpush1.xpose.msra.mxu0 0.0
    %2575 = vmatprep.subr.mxu0 0.0
    %2576 = vmatpush1.xpose.msra.mxu0 0.0
    %2577 = vmatprep.subr.mxu0 0.0
    %2578 = vmatpush1.xpose.msra.mxu0 0.0
    %2579 = vmatprep.subr.mxu0 0.0
    %2580 = vmatpush1.xpose.msra.mxu0 0.0
    %2581 = vmatprep.subr.mxu0 0.0
    %2582 = vmatpush1.xpose.msra.mxu0 0.0
    %2583 = vmatprep.mubr.f32.mxu0 0.0
    %2584 = vmatmul.mubr.f32.gmra.mrb[0].mxu0 %v2508
    %v2585 = vpop.f32.mrb[0].mxu0
    %v2586 = vadd.f32 0.0, %v2585
    %v2587 = vpop.f32.mrb[0].mxu0
    %2588 = vmatprep.mubr.f32.mxu0 0.0
    %2589 = vmatmul.mubr.f32.gmra.mrb[0].mxu0 %v2511
    %v2590 = vpop.f32.mrb[0].mxu0
    %v2591 = vadd.f32 0.0, %v2590
    %v2592 = vpop.f32.mrb[0].mxu0
    %2593 = vdwg.mxu0
    %2594 = vrot.lane.b32.xlu0 %v2331, 120
    %v2595 = vpop.permute.xlu0 %2594
    %2596 = vrot.lane.b32.xlu0 %v2332, 120
    %v2597 = vpop.permute.xlu0 %2596
    %2598 = vrot.lane.b32.xlu0 %v2415, 120
    %v2599 = vpop.permute.xlu0 %2598
    %2600 = vrot.lane.b32.xlu0 %v2420, 120
    %v2601 = vpop.permute.xlu0 %2600
    %v2602 = vsel %vm360, %v2595, 0
    %v2604 = vsel %vm360, %v2597, 0
    %v2606 = vsel %vm360, %v2599, 0
    %v2608 = vsel %vm360, %v2601, 0
    %2610 = vmatprep.subr.mxu0 0.0
    %2611 = vmatpush1.xpose.msra.mxu0 %v2606
    %2612 = vmatprep.subr.mxu0 0.0
    %2613 = vmatpush1.xpose.msra.mxu0 %v2608
    %2614 = vmatprep.subr.mxu0 0.0
    %2615 = vmatpush1.xpose.msra.mxu0 0.0
    %2616 = vmatprep.subr.mxu0 0.0
    %2617 = vmatpush1.xpose.msra.mxu0 0.0
    %2618 = vmatprep.subr.mxu0 0.0
    %2619 = vmatpush1.xpose.msra.mxu0 0.0
    %2620 = vmatprep.subr.mxu0 0.0
    %2621 = vmatpush1.xpose.msra.mxu0 0.0
    %2622 = vmatprep.subr.mxu0 0.0
    %2623 = vmatpush1.xpose.msra.mxu0 0.0
    %2624 = vmatprep.subr.mxu0 0.0
    %2625 = vmatpush1.xpose.msra.mxu0 0.0
    %2626 = vmatprep.subr.mxu0 0.0
    %2627 = vmatpush1.xpose.msra.mxu0 0.0
    %2628 = vmatprep.subr.mxu0 0.0
    %2629 = vmatpush1.xpose.msra.mxu0 0.0
    %2630 = vmatprep.subr.mxu0 0.0
    %2631 = vmatpush1.xpose.msra.mxu0 0.0
    %2632 = vmatprep.subr.mxu0 0.0
    %2633 = vmatpush1.xpose.msra.mxu0 0.0
    %2634 = vmatprep.subr.mxu0 0.0
    %2635 = vmatpush1.xpose.msra.mxu0 0.0
    %2636 = vmatprep.subr.mxu0 0.0
    %2637 = vmatpush1.xpose.msra.mxu0 0.0
    %2638 = vmatprep.subr.mxu0 0.0
    %2639 = vmatpush1.xpose.msra.mxu0 0.0
    %2640 = vmatprep.subr.mxu0 0.0
    %2641 = vmatpush1.xpose.msra.mxu0 0.0
    %2642 = vmatprep.subr.mxu0 0.0
    %2643 = vmatpush1.xpose.msra.mxu0 0.0
    %2644 = vmatprep.subr.mxu0 0.0
    %2645 = vmatpush1.xpose.msra.mxu0 0.0
    %2646 = vmatprep.subr.mxu0 0.0
    %2647 = vmatpush1.xpose.msra.mxu0 0.0
    %2648 = vmatprep.subr.mxu0 0.0
    %2649 = vmatpush1.xpose.msra.mxu0 0.0
    %2650 = vmatprep.subr.mxu0 0.0
    %2651 = vmatpush1.xpose.msra.mxu0 0.0
    %2652 = vmatprep.subr.mxu0 0.0
    %2653 = vmatpush1.xpose.msra.mxu0 0.0
    %2654 = vmatprep.subr.mxu0 0.0
    %2655 = vmatpush1.xpose.msra.mxu0 0.0
    %2656 = vmatprep.subr.mxu0 0.0
    %2657 = vmatpush1.xpose.msra.mxu0 0.0
    %2658 = vmatprep.subr.mxu0 0.0
    %2659 = vmatpush1.xpose.msra.mxu0 0.0
    %2660 = vmatprep.subr.mxu0 0.0
    %2661 = vmatpush1.xpose.msra.mxu0 0.0
    %2662 = vmatprep.subr.mxu0 0.0
    %2663 = vmatpush1.xpose.msra.mxu0 0.0
    %2664 = vmatprep.subr.mxu0 0.0
    %2665 = vmatpush1.xpose.msra.mxu0 0.0
    %2666 = vmatprep.subr.mxu0 0.0
    %2667 = vmatpush1.xpose.msra.mxu0 0.0
    %2668 = vmatprep.subr.mxu0 0.0
    %2669 = vmatpush1.xpose.msra.mxu0 0.0
    %2670 = vmatprep.subr.mxu0 0.0
    %2671 = vmatpush1.xpose.msra.mxu0 0.0
    %2672 = vmatprep.subr.mxu0 0.0
    %2673 = vmatpush1.xpose.msra.mxu0 0.0
    %2674 = vmatprep.mubr.f32.mxu0 0.0
    %2675 = vmatmul.mubr.f32.gmra.mrb[0].mxu0 %v2602
    %v2676 = vpop.f32.mrb[0].mxu0
    %v2677 = vadd.f32 0.0, %v2676
    %v2678 = vpop.f32.mrb[0].mxu0
    %2679 = vmatprep.mubr.f32.mxu0 0.0
    %2680 = vmatmul.mubr.f32.gmra.mrb[0].mxu0 %v2604
    %v2681 = vpop.f32.mrb[0].mxu0
    %v2682 = vadd.f32 0.0, %v2681
    %v2683 = vpop.f32.mrb[0].mxu0
    %2684 = vdwg.mxu0
    %2685 = vrot.lane.b32.xlu0 %v2331, 112
    %v2686 = vpop.permute.xlu0 %2685
    %2687 = vrot.lane.b32.xlu0 %v2332, 112
    %v2688 = vpop.permute.xlu0 %2687
    %2689 = vrot.lane.b32.xlu0 %v2415, 112
    %v2690 = vpop.permute.xlu0 %2689
    %2691 = vrot.lane.b32.xlu0 %v2420, 112
    %v2692 = vpop.permute.xlu0 %2691
    %v2693 = vsel %vm360, %v2686, 0
    %v2695 = vsel %vm360, %v2688, 0
    %v2697 = vsel %vm360, %v2690, 0
    %v2699 = vsel %vm360, %v2692, 0
    %2701 = vmatprep.subr.mxu0 0.0
    %2702 = vmatpush1.xpose.msra.mxu0 %v2697
    %2703 = vmatprep.subr.mxu0 0.0
    %2704 = vmatpush1.xpose.msra.mxu0 %v2699
    %2705 = vmatprep.subr.mxu0 0.0
    %2706 = vmatpush1.xpose.msra.mxu0 0.0
    %2707 = vmatprep.subr.mxu0 0.0
    %2708 = vmatpush1.xpose.msra.mxu0 0.0
    %2709 = vmatprep.subr.mxu0 0.0
    %2710 = vmatpush1.xpose.msra.mxu0 0.0
    %2711 = vmatprep.subr.mxu0 0.0
    %2712 = vmatpush1.xpose.msra.mxu0 0.0
    %2713 = vmatprep.subr.mxu0 0.0
    %2714 = vmatpush1.xpose.msra.mxu0 0.0
    %2715 = vmatprep.subr.mxu0 0.0
    %2716 = vmatpush1.xpose.msra.mxu0 0.0
    %2717 = vmatprep.subr.mxu0 0.0
    %2718 = vmatpush1.xpose.msra.mxu0 0.0
    %2719 = vmatprep.subr.mxu0 0.0
    %2720 = vmatpush1.xpose.msra.mxu0 0.0
    %2721 = vmatprep.subr.mxu0 0.0
    %2722 = vmatpush1.xpose.msra.mxu0 0.0
    %2723 = vmatprep.subr.mxu0 0.0
    %2724 = vmatpush1.xpose.msra.mxu0 0.0
    %2725 = vmatprep.subr.mxu0 0.0
    %2726 = vmatpush1.xpose.msra.mxu0 0.0
    %2727 = vmatprep.subr.mxu0 0.0
    %2728 = vmatpush1.xpose.msra.mxu0 0.0
    %2729 = vmatprep.subr.mxu0 0.0
    %2730 = vmatpush1.xpose.msra.mxu0 0.0
    %2731 = vmatprep.subr.mxu0 0.0
    %2732 = vmatpush1.xpose.msra.mxu0 0.0
    %2733 = vmatprep.subr.mxu0 0.0
    %2734 = vmatpush1.xpose.msra.mxu0 0.0
    %2735 = vmatprep.subr.mxu0 0.0
    %2736 = vmatpush1.xpose.msra.mxu0 0.0
    %2737 = vmatprep.subr.mxu0 0.0
    %2738 = vmatpush1.xpose.msra.mxu0 0.0
    %2739 = vmatprep.subr.mxu0 0.0
    %2740 = vmatpush1.xpose.msra.mxu0 0.0
    %2741 = vmatprep.subr.mxu0 0.0
    %2742 = vmatpush1.xpose.msra.mxu0 0.0
    %2743 = vmatprep.subr.mxu0 0.0
    %2744 = vmatpush1.xpose.msra.mxu0 0.0
    %2745 = vmatprep.subr.mxu0 0.0
    %2746 = vmatpush1.xpose.msra.mxu0 0.0
    %2747 = vmatprep.subr.mxu0 0.0
    %2748 = vmatpush1.xpose.msra.mxu0 0.0
    %2749 = vmatprep.subr.mxu0 0.0
    %2750 = vmatpush1.xpose.msra.mxu0 0.0
    %2751 = vmatprep.subr.mxu0 0.0
    %2752 = vmatpush1.xpose.msra.mxu0 0.0
    %2753 = vmatprep.subr.mxu0 0.0
    %2754 = vmatpush1.xpose.msra.mxu0 0.0
    %2755 = vmatprep.subr.mxu0 0.0
    %2756 = vmatpush1.xpose.msra.mxu0 0.0
    %2757 = vmatprep.subr.mxu0 0.0
    %2758 = vmatpush1.xpose.msra.mxu0 0.0
    %2759 = vmatprep.subr.mxu0 0.0
    %2760 = vmatpush1.xpose.msra.mxu0 0.0
    %2761 = vmatprep.subr.mxu0 0.0
    %2762 = vmatpush1.xpose.msra.mxu0 0.0
    %2763 = vmatprep.subr.mxu0 0.0
    %2764 = vmatpush1.xpose.msra.mxu0 0.0
    %2765 = vmatprep.mubr.f32.mxu0 0.0
    %2766 = vmatmul.mubr.f32.gmra.mrb[0].mxu0 %v2693
    %v2767 = vpop.f32.mrb[0].mxu0
    %v2768 = vadd.f32 0.0, %v2767
    %v2769 = vpop.f32.mrb[0].mxu0
    %2770 = vmatprep.mubr.f32.mxu0 0.0
    %2771 = vmatmul.mubr.f32.gmra.mrb[0].mxu0 %v2695
    %v2772 = vpop.f32.mrb[0].mxu0
    %v2773 = vadd.f32 0.0, %v2772
    %v2774 = vpop.f32.mrb[0].mxu0
    %2775 = vdwg.mxu0
    %2776 = vrot.lane.b32.xlu0 %v2331, 104
    %v2777 = vpop.permute.xlu0 %2776
    %2778 = vrot.lane.b32.xlu0 %v2332, 104
    %v2779 = vpop.permute.xlu0 %2778
    %2780 = vrot.lane.b32.xlu0 %v2415, 104
    %v2781 = vpop.permute.xlu0 %2780
    %2782 = vrot.lane.b32.xlu0 %v2420, 104
    %v2783 = vpop.permute.xlu0 %2782
    %v2784 = vsel %vm360, %v2777, 0
    %v2786 = vsel %vm360, %v2779, 0
    %v2788 = vsel %vm360, %v2781, 0
    %v2790 = vsel %vm360, %v2783, 0
    %2792 = vmatprep.subr.mxu0 0.0
    %2793 = vmatpush1.xpose.msra.mxu0 %v2788
    %2794 = vmatprep.subr.mxu0 0.0
    %2795 = vmatpush1.xpose.msra.mxu0 %v2790
    %2796 = vmatprep.subr.mxu0 0.0
    %2797 = vmatpush1.xpose.msra.mxu0 0.0
    %2798 = vmatprep.subr.mxu0 0.0
    %2799 = vmatpush1.xpose.msra.mxu0 0.0
    %2800 = vmatprep.subr.mxu0 0.0
    %2801 = vmatpush1.xpose.msra.mxu0 0.0
    %2802 = vmatprep.subr.mxu0 0.0
    %2803 = vmatpush1.xpose.msra.mxu0 0.0
    %2804 = vmatprep.subr.mxu0 0.0
    %2805 = vmatpush1.xpose.msra.mxu0 0.0
    %2806 = vmatprep.subr.mxu0 0.0
    %2807 = vmatpush1.xpose.msra.mxu0 0.0
    %2808 = vmatprep.subr.mxu0 0.0
    %2809 = vmatpush1.xpose.msra.mxu0 0.0
    %2810 = vmatprep.subr.mxu0 0.0
    %2811 = vmatpush1.xpose.msra.mxu0 0.0
    %2812 = vmatprep.subr.mxu0 0.0
    %2813 = vmatpush1.xpose.msra.mxu0 0.0
    %2814 = vmatprep.subr.mxu0 0.0
    %2815 = vmatpush1.xpose.msra.mxu0 0.0
    %2816 = vmatprep.subr.mxu0 0.0
    %2817 = vmatpush1.xpose.msra.mxu0 0.0
    %2818 = vmatprep.subr.mxu0 0.0
    %2819 = vmatpush1.xpose.msra.mxu0 0.0
    %2820 = vmatprep.subr.mxu0 0.0
    %2821 = vmatpush1.xpose.msra.mxu0 0.0
    %2822 = vmatprep.subr.mxu0 0.0
    %2823 = vmatpush1.xpose.msra.mxu0 0.0
    %2824 = vmatprep.subr.mxu0 0.0
    %2825 = vmatpush1.xpose.msra.mxu0 0.0
    %2826 = vmatprep.subr.mxu0 0.0
    %2827 = vmatpush1.xpose.msra.mxu0 0.0
    %2828 = vmatprep.subr.mxu0 0.0
    %2829 = vmatpush1.xpose.msra.mxu0 0.0
    %2830 = vmatprep.subr.mxu0 0.0
    %2831 = vmatpush1.xpose.msra.mxu0 0.0
    %2832 = vmatprep.subr.mxu0 0.0
    %2833 = vmatpush1.xpose.msra.mxu0 0.0
    %2834 = vmatprep.subr.mxu0 0.0
    %2835 = vmatpush1.xpose.msra.mxu0 0.0
    %2836 = vmatprep.subr.mxu0 0.0
    %2837 = vmatpush1.xpose.msra.mxu0 0.0
    %2838 = vmatprep.subr.mxu0 0.0
    %2839 = vmatpush1.xpose.msra.mxu0 0.0
    %2840 = vmatprep.subr.mxu0 0.0
    %2841 = vmatpush1.xpose.msra.mxu0 0.0
    %2842 = vmatprep.subr.mxu0 0.0
    %2843 = vmatpush1.xpose.msra.mxu0 0.0
    %2844 = vmatprep.subr.mxu0 0.0
    %2845 = vmatpush1.xpose.msra.mxu0 0.0
    %2846 = vmatprep.subr.mxu0 0.0
    %2847 = vmatpush1.xpose.msra.mxu0 0.0
    %2848 = vmatprep.subr.mxu0 0.0
    %2849 = vmatpush1.xpose.msra.mxu0 0.0
    %2850 = vmatprep.subr.mxu0 0.0
    %2851 = vmatpush1.xpose.msra.mxu0 0.0
    %2852 = vmatprep.subr.mxu0 0.0
    %2853 = vmatpush1.xpose.msra.mxu0 0.0
    %2854 = vmatprep.subr.mxu0 0.0
    %2855 = vmatpush1.xpose.msra.mxu0 0.0
    %2856 = vmatprep.mubr.f32.mxu0 0.0
    %2857 = vmatmul.mubr.f32.gmra.mrb[0].mxu0 %v2784
    %v2858 = vpop.f32.mrb[0].mxu0
    %v2859 = vadd.f32 0.0, %v2858
    %v2860 = vpop.f32.mrb[0].mxu0
    %2861 = vmatprep.mubr.f32.mxu0 0.0
    %2862 = vmatmul.mubr.f32.gmra.mrb[0].mxu0 %v2786
    %v2863 = vpop.f32.mrb[0].mxu0
    %v2864 = vadd.f32 0.0, %v2863
    %v2865 = vpop.f32.mrb[0].mxu0
    %2866 = vdwg.mxu0
    %2867 = vrot.lane.b32.xlu0 %v2331, 96
    %v2868 = vpop.permute.xlu0 %2867
    %2869 = vrot.lane.b32.xlu0 %v2332, 96
    %v2870 = vpop.permute.xlu0 %2869
    %2871 = vrot.lane.b32.xlu0 %v2415, 96
    %v2872 = vpop.permute.xlu0 %2871
    %2873 = vrot.lane.b32.xlu0 %v2420, 96
    %v2874 = vpop.permute.xlu0 %2873
    %v2875 = vsel %vm360, %v2868, 0
    %v2877 = vsel %vm360, %v2870, 0
    %v2879 = vsel %vm360, %v2872, 0
    %v2881 = vsel %vm360, %v2874, 0
    %2883 = vmatprep.subr.mxu0 0.0
    %2884 = vmatpush1.xpose.msra.mxu0 %v2879
    %2885 = vmatprep.subr.mxu0 0.0
    %2886 = vmatpush1.xpose.msra.mxu0 %v2881
    %2887 = vmatprep.subr.mxu0 0.0
    %2888 = vmatpush1.xpose.msra.mxu0 0.0
    %2889 = vmatprep.subr.mxu0 0.0
    %2890 = vmatpush1.xpose.msra.mxu0 0.0
    %2891 = vmatprep.subr.mxu0 0.0
    %2892 = vmatpush1.xpose.msra.mxu0 0.0
    %2893 = vmatprep.subr.mxu0 0.0
    %2894 = vmatpush1.xpose.msra.mxu0 0.0
    %2895 = vmatprep.subr.mxu0 0.0
    %2896 = vmatpush1.xpose.msra.mxu0 0.0
    %2897 = vmatprep.subr.mxu0 0.0
    %2898 = vmatpush1.xpose.msra.mxu0 0.0
    %2899 = vmatprep.subr.mxu0 0.0
    %2900 = vmatpush1.xpose.msra.mxu0 0.0
    %2901 = vmatprep.subr.mxu0 0.0
    %2902 = vmatpush1.xpose.msra.mxu0 0.0
    %2903 = vmatprep.subr.mxu0 0.0
    %2904 = vmatpush1.xpose.msra.mxu0 0.0
    %2905 = vmatprep.subr.mxu0 0.0
    %2906 = vmatpush1.xpose.msra.mxu0 0.0
    %2907 = vmatprep.subr.mxu0 0.0
    %2908 = vmatpush1.xpose.msra.mxu0 0.0
    %2909 = vmatprep.subr.mxu0 0.0
    %2910 = vmatpush1.xpose.msra.mxu0 0.0
    %2911 = vmatprep.subr.mxu0 0.0
    %2912 = vmatpush1.xpose.msra.mxu0 0.0
    %2913 = vmatprep.subr.mxu0 0.0
    %2914 = vmatpush1.xpose.msra.mxu0 0.0
    %2915 = vmatprep.subr.mxu0 0.0
    %2916 = vmatpush1.xpose.msra.mxu0 0.0
    %2917 = vmatprep.subr.mxu0 0.0
    %2918 = vmatpush1.xpose.msra.mxu0 0.0
    %2919 = vmatprep.subr.mxu0 0.0
    %2920 = vmatpush1.xpose.msra.mxu0 0.0
    %2921 = vmatprep.subr.mxu0 0.0
    %2922 = vmatpush1.xpose.msra.mxu0 0.0
    %2923 = vmatprep.subr.mxu0 0.0
    %2924 = vmatpush1.xpose.msra.mxu0 0.0
    %2925 = vmatprep.subr.mxu0 0.0
    %2926 = vmatpush1.xpose.msra.mxu0 0.0
    %2927 = vmatprep.subr.mxu0 0.0
    %2928 = vmatpush1.xpose.msra.mxu0 0.0
    %2929 = vmatprep.subr.mxu0 0.0
    %2930 = vmatpush1.xpose.msra.mxu0 0.0
    %2931 = vmatprep.subr.mxu0 0.0
    %2932 = vmatpush1.xpose.msra.mxu0 0.0
    %2933 = vmatprep.subr.mxu0 0.0
    %2934 = vmatpush1.xpose.msra.mxu0 0.0
    %2935 = vmatprep.subr.mxu0 0.0
    %2936 = vmatpush1.xpose.msra.mxu0 0.0
    %2937 = vmatprep.subr.mxu0 0.0
    %2938 = vmatpush1.xpose.msra.mxu0 0.0
    %2939 = vmatprep.subr.mxu0 0.0
    %2940 = vmatpush1.xpose.msra.mxu0 0.0
    %2941 = vmatprep.subr.mxu0 0.0
    %2942 = vmatpush1.xpose.msra.mxu0 0.0
    %2943 = vmatprep.subr.mxu0 0.0
    %2944 = vmatpush1.xpose.msra.mxu0 0.0
    %2945 = vmatprep.subr.mxu0 0.0
    %2946 = vmatpush1.xpose.msra.mxu0 0.0
    %2947 = vmatprep.mubr.f32.mxu0 0.0
    %2948 = vmatmul.mubr.f32.gmra.mrb[0].mxu0 %v2875
    %v2949 = vpop.f32.mrb[0].mxu0
    %v2950 = vadd.f32 0.0, %v2949
    %v2951 = vpop.f32.mrb[0].mxu0
    %2952 = vmatprep.mubr.f32.mxu0 0.0
    %2953 = vmatmul.mubr.f32.gmra.mrb[0].mxu0 %v2877
    %v2954 = vpop.f32.mrb[0].mxu0
    %v2955 = vadd.f32 0.0, %v2954
    %v2956 = vpop.f32.mrb[0].mxu0
    %2957 = vdwg.mxu0
    %2958 = vrot.lane.b32.xlu0 %v2331, 88
    %v2959 = vpop.permute.xlu0 %2958
    %2960 = vrot.lane.b32.xlu0 %v2332, 88
    %v2961 = vpop.permute.xlu0 %2960
    %2962 = vrot.lane.b32.xlu0 %v2415, 88
    %v2963 = vpop.permute.xlu0 %2962
    %2964 = vrot.lane.b32.xlu0 %v2420, 88
    %v2965 = vpop.permute.xlu0 %2964
    %v2966 = vsel %vm360, %v2959, 0
    %v2968 = vsel %vm360, %v2961, 0
    %v2970 = vsel %vm360, %v2963, 0
    %v2972 = vsel %vm360, %v2965, 0
    %2974 = vmatprep.subr.mxu0 0.0
    %2975 = vmatpush1.xpose.msra.mxu0 %v2970
    %2976 = vmatprep.subr.mxu0 0.0
    %2977 = vmatpush1.xpose.msra.mxu0 %v2972
    %2978 = vmatprep.subr.mxu0 0.0
    %2979 = vmatpush1.xpose.msra.mxu0 0.0
    %2980 = vmatprep.subr.mxu0 0.0
    %2981 = vmatpush1.xpose.msra.mxu0 0.0
    %2982 = vmatprep.subr.mxu0 0.0
    %2983 = vmatpush1.xpose.msra.mxu0 0.0
    %2984 = vmatprep.subr.mxu0 0.0
    %2985 = vmatpush1.xpose.msra.mxu0 0.0
    %2986 = vmatprep.subr.mxu0 0.0
    %2987 = vmatpush1.xpose.msra.mxu0 0.0
    %2988 = vmatprep.subr.mxu0 0.0
    %2989 = vmatpush1.xpose.msra.mxu0 0.0
    %2990 = vmatprep.subr.mxu0 0.0
    %2991 = vmatpush1.xpose.msra.mxu0 0.0
    %2992 = vmatprep.subr.mxu0 0.0
    %2993 = vmatpush1.xpose.msra.mxu0 0.0
    %2994 = vmatprep.subr.mxu0 0.0
    %2995 = vmatpush1.xpose.msra.mxu0 0.0
    %2996 = vmatprep.subr.mxu0 0.0
    %2997 = vmatpush1.xpose.msra.mxu0 0.0
    %2998 = vmatprep.subr.mxu0 0.0
    %2999 = vmatpush1.xpose.msra.mxu0 0.0
    %3000 = vmatprep.subr.mxu0 0.0
    %3001 = vmatpush1.xpose.msra.mxu0 0.0
    %3002 = vmatprep.subr.mxu0 0.0
    %3003 = vmatpush1.xpose.msra.mxu0 0.0
    %3004 = vmatprep.subr.mxu0 0.0
    %3005 = vmatpush1.xpose.msra.mxu0 0.0
    %3006 = vmatprep.subr.mxu0 0.0
    %3007 = vmatpush1.xpose.msra.mxu0 0.0
    %3008 = vmatprep.subr.mxu0 0.0
    %3009 = vmatpush1.xpose.msra.mxu0 0.0
    %3010 = vmatprep.subr.mxu0 0.0
    %3011 = vmatpush1.xpose.msra.mxu0 0.0
    %3012 = vmatprep.subr.mxu0 0.0
    %3013 = vmatpush1.xpose.msra.mxu0 0.0
    %3014 = vmatprep.subr.mxu0 0.0
    %3015 = vmatpush1.xpose.msra.mxu0 0.0
    %3016 = vmatprep.subr.mxu0 0.0
    %3017 = vmatpush1.xpose.msra.mxu0 0.0
    %3018 = vmatprep.subr.mxu0 0.0
    %3019 = vmatpush1.xpose.msra.mxu0 0.0
    %3020 = vmatprep.subr.mxu0 0.0
    %3021 = vmatpush1.xpose.msra.mxu0 0.0
    %3022 = vmatprep.subr.mxu0 0.0
    %3023 = vmatpush1.xpose.msra.mxu0 0.0
    %3024 = vmatprep.subr.mxu0 0.0
    %3025 = vmatpush1.xpose.msra.mxu0 0.0
    %3026 = vmatprep.subr.mxu0 0.0
    %3027 = vmatpush1.xpose.msra.mxu0 0.0
    %3028 = vmatprep.subr.mxu0 0.0
    %3029 = vmatpush1.xpose.msra.mxu0 0.0
    %3030 = vmatprep.subr.mxu0 0.0
    %3031 = vmatpush1.xpose.msra.mxu0 0.0
    %3032 = vmatprep.subr.mxu0 0.0
    %3033 = vmatpush1.xpose.msra.mxu0 0.0
    %3034 = vmatprep.subr.mxu0 0.0
    %3035 = vmatpush1.xpose.msra.mxu0 0.0
    %3036 = vmatprep.subr.mxu0 0.0
    %3037 = vmatpush1.xpose.msra.mxu0 0.0
    %3038 = vmatprep.mubr.f32.mxu0 0.0
    %3039 = vmatmul.mubr.f32.gmra.mrb[0].mxu0 %v2966
    %v3040 = vpop.f32.mrb[0].mxu0
    %v3041 = vadd.f32 0.0, %v3040
    %v3042 = vpop.f32.mrb[0].mxu0
    %3043 = vmatprep.mubr.f32.mxu0 0.0
    %3044 = vmatmul.mubr.f32.gmra.mrb[0].mxu0 %v2968
    %v3045 = vpop.f32.mrb[0].mxu0
    %v3046 = vadd.f32 0.0, %v3045
    %v3047 = vpop.f32.mrb[0].mxu0
    %3048 = vdwg.mxu0
    %3049 = vrot.lane.b32.xlu0 %v2331, 80
    %v3050 = vpop.permute.xlu0 %3049
    %3051 = vrot.lane.b32.xlu0 %v2332, 80
    %v3052 = vpop.permute.xlu0 %3051
    %3053 = vrot.lane.b32.xlu0 %v2415, 80
    %v3054 = vpop.permute.xlu0 %3053
    %3055 = vrot.lane.b32.xlu0 %v2420, 80
    %v3056 = vpop.permute.xlu0 %3055
    %v3057 = vsel %vm360, %v3050, 0
    %v3059 = vsel %vm360, %v3052, 0
    %v3061 = vsel %vm360, %v3054, 0
    %v3063 = vsel %vm360, %v3056, 0
    %3065 = vmatprep.subr.mxu0 0.0
    %3066 = vmatpush1.xpose.msra.mxu0 %v3061
    %3067 = vmatprep.subr.mxu0 0.0
    %3068 = vmatpush1.xpose.msra.mxu0 %v3063
    %3069 = vmatprep.subr.mxu0 0.0
    %3070 = vmatpush1.xpose.msra.mxu0 0.0
    %3071 = vmatprep.subr.mxu0 0.0
    %3072 = vmatpush1.xpose.msra.mxu0 0.0
    %3073 = vmatprep.subr.mxu0 0.0
    %3074 = vmatpush1.xpose.msra.mxu0 0.0
    %3075 = vmatprep.subr.mxu0 0.0
    %3076 = vmatpush1.xpose.msra.mxu0 0.0
    %3077 = vmatprep.subr.mxu0 0.0
    %3078 = vmatpush1.xpose.msra.mxu0 0.0
    %3079 = vmatprep.subr.mxu0 0.0
    %3080 = vmatpush1.xpose.msra.mxu0 0.0
    %3081 = vmatprep.subr.mxu0 0.0
    %3082 = vmatpush1.xpose.msra.mxu0 0.0
    %3083 = vmatprep.subr.mxu0 0.0
    %3084 = vmatpush1.xpose.msra.mxu0 0.0
    %3085 = vmatprep.subr.mxu0 0.0
    %3086 = vmatpush1.xpose.msra.mxu0 0.0
    %3087 = vmatprep.subr.mxu0 0.0
    %3088 = vmatpush1.xpose.msra.mxu0 0.0
    %3089 = vmatprep.subr.mxu0 0.0
    %3090 = vmatpush1.xpose.msra.mxu0 0.0
    %3091 = vmatprep.subr.mxu0 0.0
    %3092 = vmatpush1.xpose.msra.mxu0 0.0
    %3093 = vmatprep.subr.mxu0 0.0
    %3094 = vmatpush1.xpose.msra.mxu0 0.0
    %3095 = vmatprep.subr.mxu0 0.0
    %3096 = vmatpush1.xpose.msra.mxu0 0.0
    %3097 = vmatprep.subr.mxu0 0.0
    %3098 = vmatpush1.xpose.msra.mxu0 0.0
    %3099 = vmatprep.subr.mxu0 0.0
    %3100 = vmatpush1.xpose.msra.mxu0 0.0
    %3101 = vmatprep.subr.mxu0 0.0
    %3102 = vmatpush1.xpose.msra.mxu0 0.0
    %3103 = vmatprep.subr.mxu0 0.0
    %3104 = vmatpush1.xpose.msra.mxu0 0.0
    %3105 = vmatprep.subr.mxu0 0.0
    %3106 = vmatpush1.xpose.msra.mxu0 0.0
    %3107 = vmatprep.subr.mxu0 0.0
    %3108 = vmatpush1.xpose.msra.mxu0 0.0
    %3109 = vmatprep.subr.mxu0 0.0
    %3110 = vmatpush1.xpose.msra.mxu0 0.0
    %3111 = vmatprep.subr.mxu0 0.0
    %3112 = vmatpush1.xpose.msra.mxu0 0.0
    %3113 = vmatprep.subr.mxu0 0.0
    %3114 = vmatpush1.xpose.msra.mxu0 0.0
    %3115 = vmatprep.subr.mxu0 0.0
    %3116 = vmatpush1.xpose.msra.mxu0 0.0
    %3117 = vmatprep.subr.mxu0 0.0
    %3118 = vmatpush1.xpose.msra.mxu0 0.0
    %3119 = vmatprep.subr.mxu0 0.0
    %3120 = vmatpush1.xpose.msra.mxu0 0.0
    %3121 = vmatprep.subr.mxu0 0.0
    %3122 = vmatpush1.xpose.msra.mxu0 0.0
    %3123 = vmatprep.subr.mxu0 0.0
    %3124 = vmatpush1.xpose.msra.mxu0 0.0
    %3125 = vmatprep.subr.mxu0 0.0
    %3126 = vmatpush1.xpose.msra.mxu0 0.0
    %3127 = vmatprep.subr.mxu0 0.0
    %3128 = vmatpush1.xpose.msra.mxu0 0.0
    %3129 = vmatprep.mubr.f32.mxu0 0.0
    %3130 = vmatmul.mubr.f32.gmra.mrb[0].mxu0 %v3057
    %v3131 = vpop.f32.mrb[0].mxu0
    %v3132 = vadd.f32 0.0, %v3131
    %v3133 = vpop.f32.mrb[0].mxu0
    %3134 = vmatprep.mubr.f32.mxu0 0.0
    %3135 = vmatmul.mubr.f32.gmra.mrb[0].mxu0 %v3059
    %v3136 = vpop.f32.mrb[0].mxu0
    %v3137 = vadd.f32 0.0, %v3136
    %v3138 = vpop.f32.mrb[0].mxu0
    %3139 = vdwg.mxu0
    %3140 = vrot.lane.b32.xlu0 %v2331, 72
    %v3141 = vpop.permute.xlu0 %3140
    %3142 = vrot.lane.b32.xlu0 %v2332, 72
    %v3143 = vpop.permute.xlu0 %3142
    %3144 = vrot.lane.b32.xlu0 %v2415, 72
    %v3145 = vpop.permute.xlu0 %3144
    %3146 = vrot.lane.b32.xlu0 %v2420, 72
    %v3147 = vpop.permute.xlu0 %3146
    %v3148 = vsel %vm360, %v3141, 0
    %v3150 = vsel %vm360, %v3143, 0
    %v3152 = vsel %vm360, %v3145, 0
    %v3154 = vsel %vm360, %v3147, 0
    %3156 = vmatprep.subr.mxu0 0.0
    %3157 = vmatpush1.xpose.msra.mxu0 %v3152
    %3158 = vmatprep.subr.mxu0 0.0
    %3159 = vmatpush1.xpose.msra.mxu0 %v3154
    %3160 = vmatprep.subr.mxu0 0.0
    %3161 = vmatpush1.xpose.msra.mxu0 0.0
    %3162 = vmatprep.subr.mxu0 0.0
    %3163 = vmatpush1.xpose.msra.mxu0 0.0
    %3164 = vmatprep.subr.mxu0 0.0
    %3165 = vmatpush1.xpose.msra.mxu0 0.0
    %3166 = vmatprep.subr.mxu0 0.0
    %3167 = vmatpush1.xpose.msra.mxu0 0.0
    %3168 = vmatprep.subr.mxu0 0.0
    %3169 = vmatpush1.xpose.msra.mxu0 0.0
    %3170 = vmatprep.subr.mxu0 0.0
    %3171 = vmatpush1.xpose.msra.mxu0 0.0
    %3172 = vmatprep.subr.mxu0 0.0
    %3173 = vmatpush1.xpose.msra.mxu0 0.0
    %3174 = vmatprep.subr.mxu0 0.0
    %3175 = vmatpush1.xpose.msra.mxu0 0.0
    %3176 = vmatprep.subr.mxu0 0.0
    %3177 = vmatpush1.xpose.msra.mxu0 0.0
    %3178 = vmatprep.subr.mxu0 0.0
    %3179 = vmatpush1.xpose.msra.mxu0 0.0
    %3180 = vmatprep.subr.mxu0 0.0
    %3181 = vmatpush1.xpose.msra.mxu0 0.0
    %3182 = vmatprep.subr.mxu0 0.0
    %3183 = vmatpush1.xpose.msra.mxu0 0.0
    %3184 = vmatprep.subr.mxu0 0.0
    %3185 = vmatpush1.xpose.msra.mxu0 0.0
    %3186 = vmatprep.subr.mxu0 0.0
    %3187 = vmatpush1.xpose.msra.mxu0 0.0
    %3188 = vmatprep.subr.mxu0 0.0
    %3189 = vmatpush1.xpose.msra.mxu0 0.0
    %3190 = vmatprep.subr.mxu0 0.0
    %3191 = vmatpush1.xpose.msra.mxu0 0.0
    %3192 = vmatprep.subr.mxu0 0.0
    %3193 = vmatpush1.xpose.msra.mxu0 0.0
    %3194 = vmatprep.subr.mxu0 0.0
    %3195 = vmatpush1.xpose.msra.mxu0 0.0
    %3196 = vmatprep.subr.mxu0 0.0
    %3197 = vmatpush1.xpose.msra.mxu0 0.0
    %3198 = vmatprep.subr.mxu0 0.0
    %3199 = vmatpush1.xpose.msra.mxu0 0.0
    %3200 = vmatprep.subr.mxu0 0.0
    %3201 = vmatpush1.xpose.msra.mxu0 0.0
    %3202 = vmatprep.subr.mxu0 0.0
    %3203 = vmatpush1.xpose.msra.mxu0 0.0
    %3204 = vmatprep.subr.mxu0 0.0
    %3205 = vmatpush1.xpose.msra.mxu0 0.0
    %3206 = vmatprep.subr.mxu0 0.0
    %3207 = vmatpush1.xpose.msra.mxu0 0.0
    %3208 = vmatprep.subr.mxu0 0.0
    %3209 = vmatpush1.xpose.msra.mxu0 0.0
    %3210 = vmatprep.subr.mxu0 0.0
    %3211 = vmatpush1.xpose.msra.mxu0 0.0
    %3212 = vmatprep.subr.mxu0 0.0
    %3213 = vmatpush1.xpose.msra.mxu0 0.0
    %3214 = vmatprep.subr.mxu0 0.0
    %3215 = vmatpush1.xpose.msra.mxu0 0.0
    %3216 = vmatprep.subr.mxu0 0.0
    %3217 = vmatpush1.xpose.msra.mxu0 0.0
    %3218 = vmatprep.subr.mxu0 0.0
    %3219 = vmatpush1.xpose.msra.mxu0 0.0
    %3220 = vmatprep.mubr.f32.mxu0 0.0
    %3221 = vmatmul.mubr.f32.gmra.mrb[0].mxu0 %v3148
    %v3222 = vpop.f32.mrb[0].mxu0
    %v3223 = vadd.f32 0.0, %v3222
    %v3224 = vpop.f32.mrb[0].mxu0
    %3225 = vmatprep.mubr.f32.mxu0 0.0
    %3226 = vmatmul.mubr.f32.gmra.mrb[0].mxu0 %v3150
    %v3227 = vpop.f32.mrb[0].mxu0
    %v3228 = vadd.f32 0.0, %v3227
    %v3229 = vpop.f32.mrb[0].mxu0
    %3230 = vdwg.mxu0
    %v3231 = vadd.f32 %v2586, %v82
    %v3232 = vadd.f32 %v2591, %v83
    %v3233 = vadd.f32 %v2677, %v84
    %v3234 = vadd.f32 %v2682, %v85
    %v3235 = vadd.f32 %v2768, %v86
    %v3236 = vadd.f32 %v2773, %v87
    %v3237 = vadd.f32 %v2859, %v88
    %v3238 = vadd.f32 %v2864, %v89
    %v3239 = vadd.f32 %v2950, %v90
    %v3240 = vadd.f32 %v2955, %v91
    %v3241 = vadd.f32 %v3041, %v92
    %v3242 = vadd.f32 %v3046, %v93
    %v3243 = vadd.f32 %v3132, %v94
    %v3244 = vadd.f32 %v3137, %v95
    %v3245 = vadd.f32 %v3223, %v96
    %v3246 = vadd.f32 %v3228, %v97
    %v3247 = vsel %vm1101, %v3231, -inf
    %3248 = vmax.xlane.f32.xlu0 %v3247
    %v3249 = vpop.xlane.xlu0 %3248
    %v3250 = vsel %vm1101, %v3232, -inf
    %3251 = vmax.xlane.f32.xlu0 %v3250
    %v3252 = vpop.xlane.xlu0 %3251
    %v3253 = vsel %vm1101, %v3233, -inf
    %3254 = vmax.xlane.f32.xlu0 %v3253
    %v3255 = vpop.xlane.xlu0 %3254
    %v3256 = vsel %vm1101, %v3234, -inf
    %3257 = vmax.xlane.f32.xlu0 %v3256
    %v3258 = vpop.xlane.xlu0 %3257
    %v3259 = vsel %vm1101, %v3235, -inf
    %3260 = vmax.xlane.f32.xlu0 %v3259
    %v3261 = vpop.xlane.xlu0 %3260
    %v3262 = vsel %vm1101, %v3236, -inf
    %3263 = vmax.xlane.f32.xlu0 %v3262
    %v3264 = vpop.xlane.xlu0 %3263
    %v3265 = vsel %vm1101, %v3237, -inf
    %3266 = vmax.xlane.f32.xlu0 %v3265
    %v3267 = vpop.xlane.xlu0 %3266
    %v3268 = vsel %vm1101, %v3238, -inf
    %3269 = vmax.xlane.f32.xlu0 %v3268
    %v3270 = vpop.xlane.xlu0 %3269
    %v3271 = vsel %vm1101, %v3239, -inf
    %3272 = vmax.xlane.f32.xlu0 %v3271
    %v3273 = vpop.xlane.xlu0 %3272
    %v3274 = vsel %vm1101, %v3240, -inf
    %3275 = vmax.xlane.f32.xlu0 %v3274
    %v3276 = vpop.xlane.xlu0 %3275
    %v3277 = vsel %vm1101, %v3241, -inf
    %3278 = vmax.xlane.f32.xlu0 %v3277
    %v3279 = vpop.xlane.xlu0 %3278
    %v3280 = vsel %vm1101, %v3242, -inf
    %3281 = vmax.xlane.f32.xlu0 %v3280
    %v3282 = vpop.xlane.xlu0 %3281
    %v3283 = vsel %vm1101, %v3243, -inf
    %3284 = vmax.xlane.f32.xlu0 %v3283
    %v3285 = vpop.xlane.xlu0 %3284
    %v3286 = vsel %vm1101, %v3244, -inf
    %3287 = vmax.xlane.f32.xlu0 %v3286
    %v3288 = vpop.xlane.xlu0 %3287
    %v3289 = vsel %vm1101, %v3245, -inf
    %3290 = vmax.xlane.f32.xlu0 %v3289
    %v3291 = vpop.xlane.xlu0 %3290
    %v3292 = vsel %vm1101, %v3246, -inf
    %3293 = vmax.xlane.f32.xlu0 %v3292
    %v3294 = vpop.xlane.xlu0 %3293
    %v3295 = vsub.f32 %v3231, %v3249
    %v3296 = vsub.f32 %v3232, %v3252
    %v3297 = vsub.f32 %v3233, %v3255
    %v3298 = vsub.f32 %v3234, %v3258
    %v3299 = vsub.f32 %v3235, %v3261
    %v3300 = vsub.f32 %v3236, %v3264
    %v3301 = vsub.f32 %v3237, %v3267
    %v3302 = vsub.f32 %v3238, %v3270
    %v3303 = vsub.f32 %v3239, %v3273
    %v3304 = vsub.f32 %v3240, %v3276
    %v3305 = vsub.f32 %v3241, %v3279
    %v3306 = vsub.f32 %v3242, %v3282
    %v3307 = vsub.f32 %v3243, %v3285
    %v3308 = vsub.f32 %v3244, %v3288
    %v3309 = vsub.f32 %v3245, %v3291
    %v3310 = vsub.f32 %v3246, %v3294
    %v3311 = vmul.f32 %v3295, 1.442695
    %v3312 = vpow.pop %v3311
    %v3313 = vmul.f32 %v3296, 1.442695
    %v3314 = vpow.pop %v3313
    %v3315 = vmul.f32 %v3297, 1.442695
    %v3316 = vpow.pop %v3315
    %v3317 = vmul.f32 %v3298, 1.442695
    %v3318 = vpow.pop %v3317
    %v3319 = vmul.f32 %v3299, 1.442695
    %v3320 = vpow.pop %v3319
    %v3321 = vmul.f32 %v3300, 1.442695
    %v3322 = vpow.pop %v3321
    %v3323 = vmul.f32 %v3301, 1.442695
    %v3324 = vpow.pop %v3323
    %v3325 = vmul.f32 %v3302, 1.442695
    %v3326 = vpow.pop %v3325
    %v3327 = vmul.f32 %v3303, 1.442695
    %v3328 = vpow.pop %v3327
    %v3329 = vmul.f32 %v3304, 1.442695
    %v3330 = vpow.pop %v3329
    %v3331 = vmul.f32 %v3305, 1.442695
    %v3332 = vpow.pop %v3331
    %v3333 = vmul.f32 %v3306, 1.442695
    %v3334 = vpow.pop %v3333
    %v3335 = vmul.f32 %v3307, 1.442695
    %v3336 = vpow.pop %v3335
    %v3337 = vmul.f32 %v3308, 1.442695
    %v3338 = vpow.pop %v3337
    %v3339 = vmul.f32 %v3309, 1.442695
    %v3340 = vpow.pop %v3339
    %v3341 = vmul.f32 %v3310, 1.442695
    %v3342 = vpow.pop %v3341
    %v3343 = vsel %vm1101, %v3312, 0.0
    %3344 = vadd.xlane.f32.xlu0 %v3343
    %v3345 = vpop.xlane.xlu0 %3344
    %v3346 = vsel %vm1101, %v3314, 0.0
    %3347 = vadd.xlane.f32.xlu0 %v3346
    %v3348 = vpop.xlane.xlu0 %3347
    %v3349 = vsel %vm1101, %v3316, 0.0
    %3350 = vadd.xlane.f32.xlu0 %v3349
    %v3351 = vpop.xlane.xlu0 %3350
    %v3352 = vsel %vm1101, %v3318, 0.0
    %3353 = vadd.xlane.f32.xlu0 %v3352
    %v3354 = vpop.xlane.xlu0 %3353
    %v3355 = vsel %vm1101, %v3320, 0.0
    %3356 = vadd.xlane.f32.xlu0 %v3355
    %v3357 = vpop.xlane.xlu0 %3356
    %v3358 = vsel %vm1101, %v3322, 0.0
    %3359 = vadd.xlane.f32.xlu0 %v3358
    %v3360 = vpop.xlane.xlu0 %3359
    %v3361 = vsel %vm1101, %v3324, 0.0
    %3362 = vadd.xlane.f32.xlu0 %v3361
    %v3363 = vpop.xlane.xlu0 %3362
    %v3364 = vsel %vm1101, %v3326, 0.0
    %3365 = vadd.xlane.f32.xlu0 %v3364
    %v3366 = vpop.xlane.xlu0 %3365
    %v3367 = vsel %vm1101, %v3328, 0.0
    %3368 = vadd.xlane.f32.xlu0 %v3367
    %v3369 = vpop.xlane.xlu0 %3368
    %v3370 = vsel %vm1101, %v3330, 0.0
    %3371 = vadd.xlane.f32.xlu0 %v3370
    %v3372 = vpop.xlane.xlu0 %3371
    %v3373 = vsel %vm1101, %v3332, 0.0
    %3374 = vadd.xlane.f32.xlu0 %v3373
    %v3375 = vpop.xlane.xlu0 %3374
    %v3376 = vsel %vm1101, %v3334, 0.0
    %3377 = vadd.xlane.f32.xlu0 %v3376
    %v3378 = vpop.xlane.xlu0 %3377
    %v3379 = vsel %vm1101, %v3336, 0.0
    %3380 = vadd.xlane.f32.xlu0 %v3379
    %v3381 = vpop.xlane.xlu0 %3380
    %v3382 = vsel %vm1101, %v3338, 0.0
    %3383 = vadd.xlane.f32.xlu0 %v3382
    %v3384 = vpop.xlane.xlu0 %3383
    %v3385 = vsel %vm1101, %v3340, 0.0
    %3386 = vadd.xlane.f32.xlu0 %v3385
    %v3387 = vpop.xlane.xlu0 %3386
    %v3388 = vsel %vm1101, %v3342, 0.0
    %3389 = vadd.xlane.f32.xlu0 %v3388
    %v3390 = vpop.xlane.xlu0 %3389
    %v3391 = vrcp.pop %v3345
    %v3392 = vrcp.pop %v3348
    %v3393 = vrcp.pop %v3351
    %v3394 = vrcp.pop %v3354
    %v3395 = vrcp.pop %v3357
    %v3396 = vrcp.pop %v3360
    %v3397 = vrcp.pop %v3363
    %v3398 = vrcp.pop %v3366
    %v3399 = vrcp.pop %v3369
    %v3400 = vrcp.pop %v3372
    %v3401 = vrcp.pop %v3375
    %v3402 = vrcp.pop %v3378
    %v3403 = vrcp.pop %v3381
    %v3404 = vrcp.pop %v3384
    %v3405 = vrcp.pop %v3387
    %v3406 = vrcp.pop %v3390
    %v3407 = vmul.f32 %v3312, %v3391
    %v3408 = vmul.f32 %v3314, %v3392
    %v3409 = vmul.f32 %v3316, %v3393
    %v3410 = vmul.f32 %v3318, %v3394
    %v3411 = vmul.f32 %v3320, %v3395
    %v3412 = vmul.f32 %v3322, %v3396
    %v3413 = vmul.f32 %v3324, %v3397
    %v3414 = vmul.f32 %v3326, %v3398
    %v3415 = vmul.f32 %v3328, %v3399
    %v3416 = vmul.f32 %v3330, %v3400
    %v3417 = vmul.f32 %v3332, %v3401
    %v3418 = vmul.f32 %v3334, %v3402
    %v3419 = vmul.f32 %v3336, %v3403
    %v3420 = vmul.f32 %v3338, %v3404
    %v3421 = vmul.f32 %v3340, %v3405
    %v3422 = vmul.f32 %v3342, %v3406
    %v3424 = vsel %vm1101, %v3407, 0
    %v3427 = vsel %vm1101, %v3408, 0
    %3429 = vmatprep.subr.mxu0 0.0
    %3430 = vmatpush1.msra.mxu0 %v2499
    %3431 = vmatprep.subr.mxu0 0.0
    %3432 = vmatpush1.msra.mxu0 %v2504
    %3433 = vmatprep.subr.mxu0 0.0
    %3434 = vmatpush1.msra.mxu0 0.0
    %3435 = vmatprep.subr.mxu0 0.0
    %3436 = vmatpush1.msra.mxu0 0.0
    %3437 = vmatprep.subr.mxu0 0.0
    %3438 = vmatpush1.msra.mxu0 0.0
    %3439 = vmatprep.subr.mxu0 0.0
    %3440 = vmatpush1.msra.mxu0 0.0
    %3441 = vmatprep.subr.mxu0 0.0
    %3442 = vmatpush1.msra.mxu0 0.0
    %3443 = vmatprep.subr.mxu0 0.0
    %3444 = vmatpush1.msra.mxu0 0.0
    %3445 = vmatprep.subr.mxu0 0.0
    %3446 = vmatpush1.msra.mxu0 0.0
    %3447 = vmatprep.subr.mxu0 0.0
    %3448 = vmatpush1.msra.mxu0 0.0
    %3449 = vmatprep.subr.mxu0 0.0
    %3450 = vmatpush1.msra.mxu0 0.0
    %3451 = vmatprep.subr.mxu0 0.0
    %3452 = vmatpush1.msra.mxu0 0.0
    %3453 = vmatprep.subr.mxu0 0.0
    %3454 = vmatpush1.msra.mxu0 0.0
    %3455 = vmatprep.subr.mxu0 0.0
    %3456 = vmatpush1.msra.mxu0 0.0
    %3457 = vmatprep.subr.mxu0 0.0
    %3458 = vmatpush1.msra.mxu0 0.0
    %3459 = vmatprep.subr.mxu0 0.0
    %3460 = vmatpush1.msra.mxu0 0.0
    %3461 = vmatprep.subr.mxu0 0.0
    %3462 = vmatpush1.msra.mxu0 0.0
    %3463 = vmatprep.subr.mxu0 0.0
    %3464 = vmatpush1.msra.mxu0 0.0
    %3465 = vmatprep.subr.mxu0 0.0
    %3466 = vmatpush1.msra.mxu0 0.0
    %3467 = vmatprep.subr.mxu0 0.0
    %3468 = vmatpush1.msra.mxu0 0.0
    %3469 = vmatprep.subr.mxu0 0.0
    %3470 = vmatpush1.msra.mxu0 0.0
    %3471 = vmatprep.subr.mxu0 0.0
    %3472 = vmatpush1.msra.mxu0 0.0
    %3473 = vmatprep.subr.mxu0 0.0
    %3474 = vmatpush1.msra.mxu0 0.0
    %3475 = vmatprep.subr.mxu0 0.0
    %3476 = vmatpush1.msra.mxu0 0.0
    %3477 = vmatprep.subr.mxu0 0.0
    %3478 = vmatpush1.msra.mxu0 0.0
    %3479 = vmatprep.subr.mxu0 0.0
    %3480 = vmatpush1.msra.mxu0 0.0
    %3481 = vmatprep.subr.mxu0 0.0
    %3482 = vmatpush1.msra.mxu0 0.0
    %3483 = vmatprep.subr.mxu0 0.0
    %3484 = vmatpush1.msra.mxu0 0.0
    %3485 = vmatprep.subr.mxu0 0.0
    %3486 = vmatpush1.msra.mxu0 0.0
    %3487 = vmatprep.subr.mxu0 0.0
    %3488 = vmatpush1.msra.mxu0 0.0
    %3489 = vmatprep.subr.mxu0 0.0
    %3490 = vmatpush1.msra.mxu0 0.0
    %3491 = vmatprep.subr.mxu0 0.0
    %3492 = vmatpush1.msra.mxu0 0.0
    %3493 = vmatprep.mubr.f32.mxu0 0.0
    %3494 = vmatmul.mubr.f32.gmra.mrb[0].mxu0 %v3424
    %v3495 = vpop.f32.mrb[0].mxu0
    %v3496 = vadd.f32 0.0, %v3495
    %v3497 = vpop.f32.mrb[0].mxu0
    %3498 = vmatprep.mubr.f32.mxu0 0.0
    %3499 = vmatmul.mubr.f32.gmra.mrb[0].mxu0 %v3427
    %v3500 = vpop.f32.mrb[0].mxu0
    %v3501 = vadd.f32 0.0, %v3500
    %v3502 = vpop.f32.mrb[0].mxu0
    %3503 = vdwg.mxu0
    %3506 = vrot.lane.b32.xlu0 %v2499, 120
    %v3507 = vpop.permute.xlu0 %3506
    %3508 = vrot.lane.b32.xlu0 %v2504, 120
    %v3509 = vpop.permute.xlu0 %3508
    %v3513 = vsel %vm1101, %v3409, 0
    %v3516 = vsel %vm1101, %v3410, 0
    %3518 = vmatprep.subr.mxu0 0.0
    %3519 = vmatpush1.msra.mxu0 %v3507
    %3520 = vmatprep.subr.mxu0 0.0
    %3521 = vmatpush1.msra.mxu0 %v3509
    %3522 = vmatprep.subr.mxu0 0.0
    %3523 = vmatpush1.msra.mxu0 0.0
    %3524 = vmatprep.subr.mxu0 0.0
    %3525 = vmatpush1.msra.mxu0 0.0
    %3526 = vmatprep.subr.mxu0 0.0
    %3527 = vmatpush1.msra.mxu0 0.0
    %3528 = vmatprep.subr.mxu0 0.0
    %3529 = vmatpush1.msra.mxu0 0.0
    %3530 = vmatprep.subr.mxu0 0.0
    %3531 = vmatpush1.msra.mxu0 0.0
    %3532 = vmatprep.subr.mxu0 0.0
    %3533 = vmatpush1.msra.mxu0 0.0
    %3534 = vmatprep.subr.mxu0 0.0
    %3535 = vmatpush1.msra.mxu0 0.0
    %3536 = vmatprep.subr.mxu0 0.0
    %3537 = vmatpush1.msra.mxu0 0.0
    %3538 = vmatprep.subr.mxu0 0.0
    %3539 = vmatpush1.msra.mxu0 0.0
    %3540 = vmatprep.subr.mxu0 0.0
    %3541 = vmatpush1.msra.mxu0 0.0
    %3542 = vmatprep.subr.mxu0 0.0
    %3543 = vmatpush1.msra.mxu0 0.0
    %3544 = vmatprep.subr.mxu0 0.0
    %3545 = vmatpush1.msra.mxu0 0.0
    %3546 = vmatprep.subr.mxu0 0.0
    %3547 = vmatpush1.msra.mxu0 0.0
    %3548 = vmatprep.subr.mxu0 0.0
    %3549 = vmatpush1.msra.mxu0 0.0
    %3550 = vmatprep.subr.mxu0 0.0
    %3551 = vmatpush1.msra.mxu0 0.0
    %3552 = vmatprep.subr.mxu0 0.0
    %3553 = vmatpush1.msra.mxu0 0.0
    %3554 = vmatprep.subr.mxu0 0.0
    %3555 = vmatpush1.msra.mxu0 0.0
    %3556 = vmatprep.subr.mxu0 0.0
    %3557 = vmatpush1.msra.mxu0 0.0
    %3558 = vmatprep.subr.mxu0 0.0
    %3559 = vmatpush1.msra.mxu0 0.0
    %3560 = vmatprep.subr.mxu0 0.0
    %3561 = vmatpush1.msra.mxu0 0.0
    %3562 = vmatprep.subr.mxu0 0.0
    %3563 = vmatpush1.msra.mxu0 0.0
    %3564 = vmatprep.subr.mxu0 0.0
    %3565 = vmatpush1.msra.mxu0 0.0
    %3566 = vmatprep.subr.mxu0 0.0
    %3567 = vmatpush1.msra.mxu0 0.0
    %3568 = vmatprep.subr.mxu0 0.0
    %3569 = vmatpush1.msra.mxu0 0.0
    %3570 = vmatprep.subr.mxu0 0.0
    %3571 = vmatpush1.msra.mxu0 0.0
    %3572 = vmatprep.subr.mxu0 0.0
    %3573 = vmatpush1.msra.mxu0 0.0
    %3574 = vmatprep.subr.mxu0 0.0
    %3575 = vmatpush1.msra.mxu0 0.0
    %3576 = vmatprep.subr.mxu0 0.0
    %3577 = vmatpush1.msra.mxu0 0.0
    %3578 = vmatprep.subr.mxu0 0.0
    %3579 = vmatpush1.msra.mxu0 0.0
    %3580 = vmatprep.subr.mxu0 0.0
    %3581 = vmatpush1.msra.mxu0 0.0
    %3582 = vmatprep.mubr.f32.mxu0 0.0
    %3583 = vmatmul.mubr.f32.gmra.mrb[0].mxu0 %v3513
    %v3584 = vpop.f32.mrb[0].mxu0
    %v3585 = vadd.f32 0.0, %v3584
    %v3586 = vpop.f32.mrb[0].mxu0
    %3587 = vmatprep.mubr.f32.mxu0 0.0
    %3588 = vmatmul.mubr.f32.gmra.mrb[0].mxu0 %v3516
    %v3589 = vpop.f32.mrb[0].mxu0
    %v3590 = vadd.f32 0.0, %v3589
    %v3591 = vpop.f32.mrb[0].mxu0
    %3592 = vdwg.mxu0
    %3593 = vrot.lane.b32.xlu0 %v2499, 112
    %v3594 = vpop.permute.xlu0 %3593
    %3595 = vrot.lane.b32.xlu0 %v2504, 112
    %v3596 = vpop.permute.xlu0 %3595
    %v3600 = vsel %vm1101, %v3411, 0
    %v3603 = vsel %vm1101, %v3412, 0
    %3605 = vmatprep.subr.mxu0 0.0
    %3606 = vmatpush1.msra.mxu0 %v3594
    %3607 = vmatprep.subr.mxu0 0.0
    %3608 = vmatpush1.msra.mxu0 %v3596
    %3609 = vmatprep.subr.mxu0 0.0
    %3610 = vmatpush1.msra.mxu0 0.0
    %3611 = vmatprep.subr.mxu0 0.0
    %3612 = vmatpush1.msra.mxu0 0.0
    %3613 = vmatprep.subr.mxu0 0.0
    %3614 = vmatpush1.msra.mxu0 0.0
    %3615 = vmatprep.subr.mxu0 0.0
    %3616 = vmatpush1.msra.mxu0 0.0
    %3617 = vmatprep.subr.mxu0 0.0
    %3618 = vmatpush1.msra.mxu0 0.0
    %3619 = vmatprep.subr.mxu0 0.0
    %3620 = vmatpush1.msra.mxu0 0.0
    %3621 = vmatprep.subr.mxu0 0.0
    %3622 = vmatpush1.msra.mxu0 0.0
    %3623 = vmatprep.subr.mxu0 0.0
    %3624 = vmatpush1.msra.mxu0 0.0
    %3625 = vmatprep.subr.mxu0 0.0
    %3626 = vmatpush1.msra.mxu0 0.0
    %3627 = vmatprep.subr.mxu0 0.0
    %3628 = vmatpush1.msra.mxu0 0.0
    %3629 = vmatprep.subr.mxu0 0.0
    %3630 = vmatpush1.msra.mxu0 0.0
    %3631 = vmatprep.subr.mxu0 0.0
    %3632 = vmatpush1.msra.mxu0 0.0
    %3633 = vmatprep.subr.mxu0 0.0
    %3634 = vmatpush1.msra.mxu0 0.0
    %3635 = vmatprep.subr.mxu0 0.0
    %3636 = vmatpush1.msra.mxu0 0.0
    %3637 = vmatprep.subr.mxu0 0.0
    %3638 = vmatpush1.msra.mxu0 0.0
    %3639 = vmatprep.subr.mxu0 0.0
    %3640 = vmatpush1.msra.mxu0 0.0
    %3641 = vmatprep.subr.mxu0 0.0
    %3642 = vmatpush1.msra.mxu0 0.0
    %3643 = vmatprep.subr.mxu0 0.0
    %3644 = vmatpush1.msra.mxu0 0.0
    %3645 = vmatprep.subr.mxu0 0.0
    %3646 = vmatpush1.msra.mxu0 0.0
    %3647 = vmatprep.subr.mxu0 0.0
    %3648 = vmatpush1.msra.mxu0 0.0
    %3649 = vmatprep.subr.mxu0 0.0
    %3650 = vmatpush1.msra.mxu0 0.0
    %3651 = vmatprep.subr.mxu0 0.0
    %3652 = vmatpush1.msra.mxu0 0.0
    %3653 = vmatprep.subr.mxu0 0.0
    %3654 = vmatpush1.msra.mxu0 0.0
    %3655 = vmatprep.subr.mxu0 0.0
    %3656 = vmatpush1.msra.mxu0 0.0
    %3657 = vmatprep.subr.mxu0 0.0
    %3658 = vmatpush1.msra.mxu0 0.0
    %3659 = vmatprep.subr.mxu0 0.0
    %3660 = vmatpush1.msra.mxu0 0.0
    %3661 = vmatprep.subr.mxu0 0.0
    %3662 = vmatpush1.msra.mxu0 0.0
    %3663 = vmatprep.subr.mxu0 0.0
    %3664 = vmatpush1.msra.mxu0 0.0
    %3665 = vmatprep.subr.mxu0 0.0
    %3666 = vmatpush1.msra.mxu0 0.0
    %3667 = vmatprep.subr.mxu0 0.0
    %3668 = vmatpush1.msra.mxu0 0.0
    %3669 = vmatprep.mubr.f32.mxu0 0.0
    %3670 = vmatmul.mubr.f32.gmra.mrb[0].mxu0 %v3600
    %v3671 = vpop.f32.mrb[0].mxu0
    %v3672 = vadd.f32 0.0, %v3671
    %v3673 = vpop.f32.mrb[0].mxu0
    %3674 = vmatprep.mubr.f32.mxu0 0.0
    %3675 = vmatmul.mubr.f32.gmra.mrb[0].mxu0 %v3603
    %v3676 = vpop.f32.mrb[0].mxu0
    %v3677 = vadd.f32 0.0, %v3676
    %v3678 = vpop.f32.mrb[0].mxu0
    %3679 = vdwg.mxu0
    %3680 = vrot.lane.b32.xlu0 %v2499, 104
    %v3681 = vpop.permute.xlu0 %3680
    %3682 = vrot.lane.b32.xlu0 %v2504, 104
    %v3683 = vpop.permute.xlu0 %3682
    %v3687 = vsel %vm1101, %v3413, 0
    %v3690 = vsel %vm1101, %v3414, 0
    %3692 = vmatprep.subr.mxu0 0.0
    %3693 = vmatpush1.msra.mxu0 %v3681
    %3694 = vmatprep.subr.mxu0 0.0
    %3695 = vmatpush1.msra.mxu0 %v3683
    %3696 = vmatprep.subr.mxu0 0.0
    %3697 = vmatpush1.msra.mxu0 0.0
    %3698 = vmatprep.subr.mxu0 0.0
    %3699 = vmatpush1.msra.mxu0 0.0
    %3700 = vmatprep.subr.mxu0 0.0
    %3701 = vmatpush1.msra.mxu0 0.0
    %3702 = vmatprep.subr.mxu0 0.0
    %3703 = vmatpush1.msra.mxu0 0.0
    %3704 = vmatprep.subr.mxu0 0.0
    %3705 = vmatpush1.msra.mxu0 0.0
    %3706 = vmatprep.subr.mxu0 0.0
    %3707 = vmatpush1.msra.mxu0 0.0
    %3708 = vmatprep.subr.mxu0 0.0
    %3709 = vmatpush1.msra.mxu0 0.0
    %3710 = vmatprep.subr.mxu0 0.0
    %3711 = vmatpush1.msra.mxu0 0.0
    %3712 = vmatprep.subr.mxu0 0.0
    %3713 = vmatpush1.msra.mxu0 0.0
    %3714 = vmatprep.subr.mxu0 0.0
    %3715 = vmatpush1.msra.mxu0 0.0
    %3716 = vmatprep.subr.mxu0 0.0
    %3717 = vmatpush1.msra.mxu0 0.0
    %3718 = vmatprep.subr.mxu0 0.0
    %3719 = vmatpush1.msra.mxu0 0.0
    %3720 = vmatprep.subr.mxu0 0.0
    %3721 = vmatpush1.msra.mxu0 0.0
    %3722 = vmatprep.subr.mxu0 0.0
    %3723 = vmatpush1.msra.mxu0 0.0
    %3724 = vmatprep.subr.mxu0 0.0
    %3725 = vmatpush1.msra.mxu0 0.0
    %3726 = vmatprep.subr.mxu0 0.0
    %3727 = vmatpush1.msra.mxu0 0.0
    %3728 = vmatprep.subr.mxu0 0.0
    %3729 = vmatpush1.msra.mxu0 0.0
    %3730 = vmatprep.subr.mxu0 0.0
    %3731 = vmatpush1.msra.mxu0 0.0
    %3732 = vmatprep.subr.mxu0 0.0
    %3733 = vmatpush1.msra.mxu0 0.0
    %3734 = vmatprep.subr.mxu0 0.0
    %3735 = vmatpush1.msra.mxu0 0.0
    %3736 = vmatprep.subr.mxu0 0.0
    %3737 = vmatpush1.msra.mxu0 0.0
    %3738 = vmatprep.subr.mxu0 0.0
    %3739 = vmatpush1.msra.mxu0 0.0
    %3740 = vmatprep.subr.mxu0 0.0
    %3741 = vmatpush1.msra.mxu0 0.0
    %3742 = vmatprep.subr.mxu0 0.0
    %3743 = vmatpush1.msra.mxu0 0.0
    %3744 = vmatprep.subr.mxu0 0.0
    %3745 = vmatpush1.msra.mxu0 0.0
    %3746 = vmatprep.subr.mxu0 0.0
    %3747 = vmatpush1.msra.mxu0 0.0
    %3748 = vmatprep.subr.mxu0 0.0
    %3749 = vmatpush1.msra.mxu0 0.0
    %3750 = vmatprep.subr.mxu0 0.0
    %3751 = vmatpush1.msra.mxu0 0.0
    %3752 = vmatprep.subr.mxu0 0.0
    %3753 = vmatpush1.msra.mxu0 0.0
    %3754 = vmatprep.subr.mxu0 0.0
    %3755 = vmatpush1.msra.mxu0 0.0
    %3756 = vmatprep.mubr.f32.mxu0 0.0
    %3757 = vmatmul.mubr.f32.gmra.mrb[0].mxu0 %v3687
    %v3758 = vpop.f32.mrb[0].mxu0
    %v3759 = vadd.f32 0.0, %v3758
    %v3760 = vpop.f32.mrb[0].mxu0
    %3761 = vmatprep.mubr.f32.mxu0 0.0
    %3762 = vmatmul.mubr.f32.gmra.mrb[0].mxu0 %v3690
    %v3763 = vpop.f32.mrb[0].mxu0
    %v3764 = vadd.f32 0.0, %v3763
    %v3765 = vpop.f32.mrb[0].mxu0
    %3766 = vdwg.mxu0
    %3767 = vrot.lane.b32.xlu0 %v2499, 96
    %v3768 = vpop.permute.xlu0 %3767
    %3769 = vrot.lane.b32.xlu0 %v2504, 96
    %v3770 = vpop.permute.xlu0 %3769
    %v3774 = vsel %vm1101, %v3415, 0
    %v3777 = vsel %vm1101, %v3416, 0
    %3779 = vmatprep.subr.mxu0 0.0
    %3780 = vmatpush1.msra.mxu0 %v3768
    %3781 = vmatprep.subr.mxu0 0.0
    %3782 = vmatpush1.msra.mxu0 %v3770
    %3783 = vmatprep.subr.mxu0 0.0
    %3784 = vmatpush1.msra.mxu0 0.0
    %3785 = vmatprep.subr.mxu0 0.0
    %3786 = vmatpush1.msra.mxu0 0.0
    %3787 = vmatprep.subr.mxu0 0.0
    %3788 = vmatpush1.msra.mxu0 0.0
    %3789 = vmatprep.subr.mxu0 0.0
    %3790 = vmatpush1.msra.mxu0 0.0
    %3791 = vmatprep.subr.mxu0 0.0
    %3792 = vmatpush1.msra.mxu0 0.0
    %3793 = vmatprep.subr.mxu0 0.0
    %3794 = vmatpush1.msra.mxu0 0.0
    %3795 = vmatprep.subr.mxu0 0.0
    %3796 = vmatpush1.msra.mxu0 0.0
    %3797 = vmatprep.subr.mxu0 0.0
    %3798 = vmatpush1.msra.mxu0 0.0
    %3799 = vmatprep.subr.mxu0 0.0
    %3800 = vmatpush1.msra.mxu0 0.0
    %3801 = vmatprep.subr.mxu0 0.0
    %3802 = vmatpush1.msra.mxu0 0.0
    %3803 = vmatprep.subr.mxu0 0.0
    %3804 = vmatpush1.msra.mxu0 0.0
    %3805 = vmatprep.subr.mxu0 0.0
    %3806 = vmatpush1.msra.mxu0 0.0
    %3807 = vmatprep.subr.mxu0 0.0
    %3808 = vmatpush1.msra.mxu0 0.0
    %3809 = vmatprep.subr.mxu0 0.0
    %3810 = vmatpush1.msra.mxu0 0.0
    %3811 = vmatprep.subr.mxu0 0.0
    %3812 = vmatpush1.msra.mxu0 0.0
    %3813 = vmatprep.subr.mxu0 0.0
    %3814 = vmatpush1.msra.mxu0 0.0
    %3815 = vmatprep.subr.mxu0 0.0
    %3816 = vmatpush1.msra.mxu0 0.0
    %3817 = vmatprep.subr.mxu0 0.0
    %3818 = vmatpush1.msra.mxu0 0.0
    %3819 = vmatprep.subr.mxu0 0.0
    %3820 = vmatpush1.msra.mxu0 0.0
    %3821 = vmatprep.subr.mxu0 0.0
    %3822 = vmatpush1.msra.mxu0 0.0
    %3823 = vmatprep.subr.mxu0 0.0
    %3824 = vmatpush1.msra.mxu0 0.0
    %3825 = vmatprep.subr.mxu0 0.0
    %3826 = vmatpush1.msra.mxu0 0.0
    %3827 = vmatprep.subr.mxu0 0.0
    %3828 = vmatpush1.msra.mxu0 0.0
    %3829 = vmatprep.subr.mxu0 0.0
    %3830 = vmatpush1.msra.mxu0 0.0
    %3831 = vmatprep.subr.mxu0 0.0
    %3832 = vmatpush1.msra.mxu0 0.0
    %3833 = vmatprep.subr.mxu0 0.0
    %3834 = vmatpush1.msra.mxu0 0.0
    %3835 = vmatprep.subr.mxu0 0.0
    %3836 = vmatpush1.msra.mxu0 0.0
    %3837 = vmatprep.subr.mxu0 0.0
    %3838 = vmatpush1.msra.mxu0 0.0
    %3839 = vmatprep.subr.mxu0 0.0
    %3840 = vmatpush1.msra.mxu0 0.0
    %3841 = vmatprep.subr.mxu0 0.0
    %3842 = vmatpush1.msra.mxu0 0.0
    %3843 = vmatprep.mubr.f32.mxu0 0.0
    %3844 = vmatmul.mubr.f32.gmra.mrb[0].mxu0 %v3774
    %v3845 = vpop.f32.mrb[0].mxu0
    %v3846 = vadd.f32 0.0, %v3845
    %v3847 = vpop.f32.mrb[0].mxu0
    %3848 = vmatprep.mubr.f32.mxu0 0.0
    %3849 = vmatmul.mubr.f32.gmra.mrb[0].mxu0 %v3777
    %v3850 = vpop.f32.mrb[0].mxu0
    %v3851 = vadd.f32 0.0, %v3850
    %v3852 = vpop.f32.mrb[0].mxu0
    %3853 = vdwg.mxu0
    %3854 = vrot.lane.b32.xlu0 %v2499, 88
    %v3855 = vpop.permute.xlu0 %3854
    %3856 = vrot.lane.b32.xlu0 %v2504, 88
    %v3857 = vpop.permute.xlu0 %3856
    %v3861 = vsel %vm1101, %v3417, 0
    %v3864 = vsel %vm1101, %v3418, 0
    %3866 = vmatprep.subr.mxu0 0.0
    %3867 = vmatpush1.msra.mxu0 %v3855
    %3868 = vmatprep.subr.mxu0 0.0
    %3869 = vmatpush1.msra.mxu0 %v3857
    %3870 = vmatprep.subr.mxu0 0.0
    %3871 = vmatpush1.msra.mxu0 0.0
    %3872 = vmatprep.subr.mxu0 0.0
    %3873 = vmatpush1.msra.mxu0 0.0
    %3874 = vmatprep.subr.mxu0 0.0
    %3875 = vmatpush1.msra.mxu0 0.0
    %3876 = vmatprep.subr.mxu0 0.0
    %3877 = vmatpush1.msra.mxu0 0.0
    %3878 = vmatprep.subr.mxu0 0.0
    %3879 = vmatpush1.msra.mxu0 0.0
    %3880 = vmatprep.subr.mxu0 0.0
    %3881 = vmatpush1.msra.mxu0 0.0
    %3882 = vmatprep.subr.mxu0 0.0
    %3883 = vmatpush1.msra.mxu0 0.0
    %3884 = vmatprep.subr.mxu0 0.0
    %3885 = vmatpush1.msra.mxu0 0.0
    %3886 = vmatprep.subr.mxu0 0.0
    %3887 = vmatpush1.msra.mxu0 0.0
    %3888 = vmatprep.subr.mxu0 0.0
    %3889 = vmatpush1.msra.mxu0 0.0
    %3890 = vmatprep.subr.mxu0 0.0
    %3891 = vmatpush1.msra.mxu0 0.0
    %3892 = vmatprep.subr.mxu0 0.0
    %3893 = vmatpush1.msra.mxu0 0.0
    %3894 = vmatprep.subr.mxu0 0.0
    %3895 = vmatpush1.msra.mxu0 0.0
    %3896 = vmatprep.subr.mxu0 0.0
    %3897 = vmatpush1.msra.mxu0 0.0
    %3898 = vmatprep.subr.mxu0 0.0
    %3899 = vmatpush1.msra.mxu0 0.0
    %3900 = vmatprep.subr.mxu0 0.0
    %3901 = vmatpush1.msra.mxu0 0.0
    %3902 = vmatprep.subr.mxu0 0.0
    %3903 = vmatpush1.msra.mxu0 0.0
    %3904 = vmatprep.subr.mxu0 0.0
    %3905 = vmatpush1.msra.mxu0 0.0
    %3906 = vmatprep.subr.mxu0 0.0
    %3907 = vmatpush1.msra.mxu0 0.0
    %3908 = vmatprep.subr.mxu0 0.0
    %3909 = vmatpush1.msra.mxu0 0.0
    %3910 = vmatprep.subr.mxu0 0.0
    %3911 = vmatpush1.msra.mxu0 0.0
    %3912 = vmatprep.subr.mxu0 0.0
    %3913 = vmatpush1.msra.mxu0 0.0
    %3914 = vmatprep.subr.mxu0 0.0
    %3915 = vmatpush1.msra.mxu0 0.0
    %3916 = vmatprep.subr.mxu0 0.0
    %3917 = vmatpush1.msra.mxu0 0.0
    %3918 = vmatprep.subr.mxu0 0.0
    %3919 = vmatpush1.msra.mxu0 0.0
    %3920 = vmatprep.subr.mxu0 0.0
    %3921 = vmatpush1.msra.mxu0 0.0
    %3922 = vmatprep.subr.mxu0 0.0
    %3923 = vmatpush1.msra.mxu0 0.0
    %3924 = vmatprep.subr.mxu0 0.0
    %3925 = vmatpush1.msra.mxu0 0.0
    %3926 = vmatprep.subr.mxu0 0.0
    %3927 = vmatpush1.msra.mxu0 0.0
    %3928 = vmatprep.subr.mxu0 0.0
    %3929 = vmatpush1.msra.mxu0 0.0
    %3930 = vmatprep.mubr.f32.mxu0 0.0
    %3931 = vmatmul.mubr.f32.gmra.mrb[0].mxu0 %v3861
    %v3932 = vpop.f32.mrb[0].mxu0
    %v3933 = vadd.f32 0.0, %v3932
    %v3934 = vpop.f32.mrb[0].mxu0
    %3935 = vmatprep.mubr.f32.mxu0 0.0
    %3936 = vmatmul.mubr.f32.gmra.mrb[0].mxu0 %v3864
    %v3937 = vpop.f32.mrb[0].mxu0
    %v3938 = vadd.f32 0.0, %v3937
    %v3939 = vpop.f32.mrb[0].mxu0
    %3940 = vdwg.mxu0
    %3941 = vrot.lane.b32.xlu0 %v2499, 80
    %v3942 = vpop.permute.xlu0 %3941
    %3943 = vrot.lane.b32.xlu0 %v2504, 80
    %v3944 = vpop.permute.xlu0 %3943
    %v3948 = vsel %vm1101, %v3419, 0
    %v3951 = vsel %vm1101, %v3420, 0
    %3953 = vmatprep.subr.mxu0 0.0
    %3954 = vmatpush1.msra.mxu0 %v3942
    %3955 = vmatprep.subr.mxu0 0.0
    %3956 = vmatpush1.msra.mxu0 %v3944
    %3957 = vmatprep.subr.mxu0 0.0
    %3958 = vmatpush1.msra.mxu0 0.0
    %3959 = vmatprep.subr.mxu0 0.0
    %3960 = vmatpush1.msra.mxu0 0.0
    %3961 = vmatprep.subr.mxu0 0.0
    %3962 = vmatpush1.msra.mxu0 0.0
    %3963 = vmatprep.subr.mxu0 0.0
    %3964 = vmatpush1.msra.mxu0 0.0
    %3965 = vmatprep.subr.mxu0 0.0
    %3966 = vmatpush1.msra.mxu0 0.0
    %3967 = vmatprep.subr.mxu0 0.0
    %3968 = vmatpush1.msra.mxu0 0.0
    %3969 = vmatprep.subr.mxu0 0.0
    %3970 = vmatpush1.msra.mxu0 0.0
    %3971 = vmatprep.subr.mxu0 0.0
    %3972 = vmatpush1.msra.mxu0 0.0
    %3973 = vmatprep.subr.mxu0 0.0
    %3974 = vmatpush1.msra.mxu0 0.0
    %3975 = vmatprep.subr.mxu0 0.0
    %3976 = vmatpush1.msra.mxu0 0.0
    %3977 = vmatprep.subr.mxu0 0.0
    %3978 = vmatpush1.msra.mxu0 0.0
    %3979 = vmatprep.subr.mxu0 0.0
    %3980 = vmatpush1.msra.mxu0 0.0
    %3981 = vmatprep.subr.mxu0 0.0
    %3982 = vmatpush1.msra.mxu0 0.0
    %3983 = vmatprep.subr.mxu0 0.0
    %3984 = vmatpush1.msra.mxu0 0.0
    %3985 = vmatprep.subr.mxu0 0.0
    %3986 = vmatpush1.msra.mxu0 0.0
    %3987 = vmatprep.subr.mxu0 0.0
    %3988 = vmatpush1.msra.mxu0 0.0
    %3989 = vmatprep.subr.mxu0 0.0
    %3990 = vmatpush1.msra.mxu0 0.0
    %3991 = vmatprep.subr.mxu0 0.0
    %3992 = vmatpush1.msra.mxu0 0.0
    %3993 = vmatprep.subr.mxu0 0.0
    %3994 = vmatpush1.msra.mxu0 0.0
    %3995 = vmatprep.subr.mxu0 0.0
    %3996 = vmatpush1.msra.mxu0 0.0
    %3997 = vmatprep.subr.mxu0 0.0
    %3998 = vmatpush1.msra.mxu0 0.0
    %3999 = vmatprep.subr.mxu0 0.0
    %4000 = vmatpush1.msra.mxu0 0.0
    %4001 = vmatprep.subr.mxu0 0.0
    %4002 = vmatpush1.msra.mxu0 0.0
    %4003 = vmatprep.subr.mxu0 0.0
    %4004 = vmatpush1.msra.mxu0 0.0
    %4005 = vmatprep.subr.mxu0 0.0
    %4006 = vmatpush1.msra.mxu0 0.0
    %4007 = vmatprep.subr.mxu0 0.0
    %4008 = vmatpush1.msra.mxu0 0.0
    %4009 = vmatprep.subr.mxu0 0.0
    %4010 = vmatpush1.msra.mxu0 0.0
    %4011 = vmatprep.subr.mxu0 0.0
    %4012 = vmatpush1.msra.mxu0 0.0
    %4013 = vmatprep.subr.mxu0 0.0
    %4014 = vmatpush1.msra.mxu0 0.0
    %4015 = vmatprep.subr.mxu0 0.0
    %4016 = vmatpush1.msra.mxu0 0.0
    %4017 = vmatprep.mubr.f32.mxu0 0.0
    %4018 = vmatmul.mubr.f32.gmra.mrb[0].mxu0 %v3948
    %v4019 = vpop.f32.mrb[0].mxu0
    %v4020 = vadd.f32 0.0, %v4019
    %v4021 = vpop.f32.mrb[0].mxu0
    %4022 = vmatprep.mubr.f32.mxu0 0.0
    %4023 = vmatmul.mubr.f32.gmra.mrb[0].mxu0 %v3951
    %v4024 = vpop.f32.mrb[0].mxu0
    %v4025 = vadd.f32 0.0, %v4024
    %v4026 = vpop.f32.mrb[0].mxu0
    %4027 = vdwg.mxu0
    %4028 = vrot.lane.b32.xlu0 %v2499, 72
    %v4029 = vpop.permute.xlu0 %4028
    %4030 = vrot.lane.b32.xlu0 %v2504, 72
    %v4031 = vpop.permute.xlu0 %4030
    %v4035 = vsel %vm1101, %v3421, 0
    %v4038 = vsel %vm1101, %v3422, 0
    %4040 = vmatprep.subr.mxu0 0.0
    %4041 = vmatpush1.msra.mxu0 %v4029
    %4042 = vmatprep.subr.mxu0 0.0
    %4043 = vmatpush1.msra.mxu0 %v4031
    %4044 = vmatprep.subr.mxu0 0.0
    %4045 = vmatpush1.msra.mxu0 0.0
    %4046 = vmatprep.subr.mxu0 0.0
    %4047 = vmatpush1.msra.mxu0 0.0
    %4048 = vmatprep.subr.mxu0 0.0
    %4049 = vmatpush1.msra.mxu0 0.0
    %4050 = vmatprep.subr.mxu0 0.0
    %4051 = vmatpush1.msra.mxu0 0.0
    %4052 = vmatprep.subr.mxu0 0.0
    %4053 = vmatpush1.msra.mxu0 0.0
    %4054 = vmatprep.subr.mxu0 0.0
    %4055 = vmatpush1.msra.mxu0 0.0
    %4056 = vmatprep.subr.mxu0 0.0
    %4057 = vmatpush1.msra.mxu0 0.0
    %4058 = vmatprep.subr.mxu0 0.0
    %4059 = vmatpush1.msra.mxu0 0.0
    %4060 = vmatprep.subr.mxu0 0.0
    %4061 = vmatpush1.msra.mxu0 0.0
    %4062 = vmatprep.subr.mxu0 0.0
    %4063 = vmatpush1.msra.mxu0 0.0
    %4064 = vmatprep.subr.mxu0 0.0
    %4065 = vmatpush1.msra.mxu0 0.0
    %4066 = vmatprep.subr.mxu0 0.0
    %4067 = vmatpush1.msra.mxu0 0.0
    %4068 = vmatprep.subr.mxu0 0.0
    %4069 = vmatpush1.msra.mxu0 0.0
    %4070 = vmatprep.subr.mxu0 0.0
    %4071 = vmatpush1.msra.mxu0 0.0
    %4072 = vmatprep.subr.mxu0 0.0
    %4073 = vmatpush1.msra.mxu0 0.0
    %4074 = vmatprep.subr.mxu0 0.0
    %4075 = vmatpush1.msra.mxu0 0.0
    %4076 = vmatprep.subr.mxu0 0.0
    %4077 = vmatpush1.msra.mxu0 0.0
    %4078 = vmatprep.subr.mxu0 0.0
    %4079 = vmatpush1.msra.mxu0 0.0
    %4080 = vmatprep.subr.mxu0 0.0
    %4081 = vmatpush1.msra.mxu0 0.0
    %4082 = vmatprep.subr.mxu0 0.0
    %4083 = vmatpush1.msra.mxu0 0.0
    %4084 = vmatprep.subr.mxu0 0.0
    %4085 = vmatpush1.msra.mxu0 0.0
    %4086 = vmatprep.subr.mxu0 0.0
    %4087 = vmatpush1.msra.mxu0 0.0
    %4088 = vmatprep.subr.mxu0 0.0
    %4089 = vmatpush1.msra.mxu0 0.0
    %4090 = vmatprep.subr.mxu0 0.0
    %4091 = vmatpush1.msra.mxu0 0.0
    %4092 = vmatprep.subr.mxu0 0.0
    %4093 = vmatpush1.msra.mxu0 0.0
    %4094 = vmatprep.subr.mxu0 0.0
    %4095 = vmatpush1.msra.mxu0 0.0
    %4096 = vmatprep.subr.mxu0 0.0
    %4097 = vmatpush1.msra.mxu0 0.0
    %4098 = vmatprep.subr.mxu0 0.0
    %4099 = vmatpush1.msra.mxu0 0.0
    %4100 = vmatprep.subr.mxu0 0.0
    %4101 = vmatpush1.msra.mxu0 0.0
    %4102 = vmatprep.subr.mxu0 0.0
    %4103 = vmatpush1.msra.mxu0 0.0
    %4104 = vmatprep.mubr.f32.mxu0 0.0
    %4105 = vmatmul.mubr.f32.gmra.mrb[0].mxu0 %v4035
    %v4106 = vpop.f32.mrb[0].mxu0
    %v4107 = vadd.f32 0.0, %v4106
    %v4108 = vpop.f32.mrb[0].mxu0
    %4109 = vmatprep.mubr.f32.mxu0 0.0
    %4110 = vmatmul.mubr.f32.gmra.mrb[0].mxu0 %v4038
    %v4111 = vpop.f32.mrb[0].mxu0
    %v4112 = vadd.f32 0.0, %v4111
    %v4113 = vpop.f32.mrb[0].mxu0
    %4114 = vdwg.mxu0
    %4117 = vrot.lane.b32.xlu0 %v3585, 8
    %v4118 = vpop.permute.xlu0 %4117
    %4119 = vrot.lane.b32.xlu0 %v3590, 8
    %v4120 = vpop.permute.xlu0 %4119
    %4125 = vrot.lane.b32.xlu0 %v3672, 16
    %v4126 = vpop.permute.xlu0 %4125
    %4127 = vrot.lane.b32.xlu0 %v3677, 16
    %v4128 = vpop.permute.xlu0 %4127
    %4133 = vrot.lane.b32.xlu0 %v3759, 24
    %v4134 = vpop.permute.xlu0 %4133
    %4135 = vrot.lane.b32.xlu0 %v3764, 24
    %v4136 = vpop.permute.xlu0 %4135
    %4141 = vrot.lane.b32.xlu0 %v3846, 32
    %v4142 = vpop.permute.xlu0 %4141
    %4143 = vrot.lane.b32.xlu0 %v3851, 32
    %v4144 = vpop.permute.xlu0 %4143
    %4149 = vrot.lane.b32.xlu0 %v3933, 40
    %v4150 = vpop.permute.xlu0 %4149
    %4151 = vrot.lane.b32.xlu0 %v3938, 40
    %v4152 = vpop.permute.xlu0 %4151
    %4157 = vrot.lane.b32.xlu0 %v4020, 48
    %v4158 = vpop.permute.xlu0 %4157
    %4159 = vrot.lane.b32.xlu0 %v4025, 48
    %v4160 = vpop.permute.xlu0 %4159
    %4165 = vrot.lane.b32.xlu0 %v4107, 56
    %v4166 = vpop.permute.xlu0 %4165
    %4167 = vrot.lane.b32.xlu0 %v4112, 56
    %v4168 = vpop.permute.xlu0 %4167
    %v4171 = vsel %vm360, %v3496, %v4118
    %v4172 = vsel %vm360, %v3501, %v4120
    %v4173 = vsel %vm1101, %v4171, %v4126
    %v4174 = vsel %vm1101, %v4172, %v4128
    %v4175 = vsel %vm2030, %v4173, %v4134
    %v4176 = vsel %vm2030, %v4174, %v4136
    %v4177 = vsel %vm2033, %v4175, %v4142
    %v4178 = vsel %vm2033, %v4176, %v4144
    %v4179 = vsel %vm2036, %v4177, %v4150
    %v4180 = vsel %vm2036, %v4178, %v4152
    %v4181 = vsel %vm2039, %v4179, %v4158
    %v4182 = vsel %vm2039, %v4180, %v4160
    %v4183 = vsel %vm2042, %v4181, %v4166
    %v4184 = vsel %vm2042, %v4182, %v4168
    %s4185 = scalar_lea.vmem [#allocation5], 448
    %v4186 = vld [vmem:[%s4185] sm:$0xff]
    %v4187 = vld [vmem:[%s4185 + $0x8] sm:$0xff]
    %v4188 = vld [vmem:[%s4185 + $0x10] sm:$0xff]
    %v4189 = vld [vmem:[%s4185 + $0x18] sm:$0xff]
    %v4190 = vld [vmem:[%s4185 + $0x20] sm:$0xff]
    %v4191 = vld [vmem:[%s4185 + $0x28] sm:$0xff]
    %v4192 = vld [vmem:[%s4185 + $0x30] sm:$0xff]
    %v4193 = vld [vmem:[%s4185 + $0x38] sm:$0xff]
    %v4194 = vld [vmem:[#allocation8 + $0x1] sm:$0x1]
    %v4195 = vlaneseq
    %v4196 = vshrl.u32 %v4195, 7
    %v4197 = vsub.s32 0, %v4196
    %v4198 = vrot.slane %v4194, %v4197
    %v4200 = vsel %vm108, %v4183, 0
    %v4203 = vsel %vm108, %v4184, 0
    %4205 = vmatprep.subr.mxu0 0.0
    %4206 = vmatpush1.msra.mxu0 %v4186
    %4207 = vmatprep.subr.mxu0 0.0
    %4208 = vmatpush1.msra.mxu0 %v4187
    %4209 = vmatprep.subr.mxu0 0.0
    %4210 = vmatpush1.msra.mxu0 %v4188
    %4211 = vmatprep.subr.mxu0 0.0
    %4212 = vmatpush1.msra.mxu0 %v4189
    %4213 = vmatprep.subr.mxu0 0.0
    %4214 = vmatpush1.msra.mxu0 %v4190
    %4215 = vmatprep.subr.mxu0 0.0
    %4216 = vmatpush1.msra.mxu0 %v4191
    %4217 = vmatprep.subr.mxu0 0.0
    %4218 = vmatpush1.msra.mxu0 %v4192
    %4219 = vmatprep.subr.mxu0 0.0
    %4220 = vmatpush1.msra.mxu0 %v4193
    %4221 = vmatprep.subr.mxu0 0.0
    %4222 = vmatpush1.msra.mxu0 0.0
    %4223 = vmatprep.subr.mxu0 0.0
    %4224 = vmatpush1.msra.mxu0 0.0
    %4225 = vmatprep.subr.mxu0 0.0
    %4226 = vmatpush1.msra.mxu0 0.0
    %4227 = vmatprep.subr.mxu0 0.0
    %4228 = vmatpush1.msra.mxu0 0.0
    %4229 = vmatprep.subr.mxu0 0.0
    %4230 = vmatpush1.msra.mxu0 0.0
    %4231 = vmatprep.subr.mxu0 0.0
    %4232 = vmatpush1.msra.mxu0 0.0
    %4233 = vmatprep.subr.mxu0 0.0
    %4234 = vmatpush1.msra.mxu0 0.0
    %4235 = vmatprep.subr.mxu0 0.0
    %4236 = vmatpush1.msra.mxu0 0.0
    %4237 = vmatprep.subr.mxu0 0.0
    %4238 = vmatpush1.msra.mxu0 0.0
    %4239 = vmatprep.subr.mxu0 0.0
    %4240 = vmatpush1.msra.mxu0 0.0
    %4241 = vmatprep.subr.mxu0 0.0
    %4242 = vmatpush1.msra.mxu0 0.0
    %4243 = vmatprep.subr.mxu0 0.0
    %4244 = vmatpush1.msra.mxu0 0.0
    %4245 = vmatprep.subr.mxu0 0.0
    %4246 = vmatpush1.msra.mxu0 0.0
    %4247 = vmatprep.subr.mxu0 0.0
    %4248 = vmatpush1.msra.mxu0 0.0
    %4249 = vmatprep.subr.mxu0 0.0
    %4250 = vmatpush1.msra.mxu0 0.0
    %4251 = vmatprep.subr.mxu0 0.0
    %4252 = vmatpush1.msra.mxu0 0.0
    %4253 = vmatprep.subr.mxu0 0.0
    %4254 = vmatpush1.msra.mxu0 0.0
    %4255 = vmatprep.subr.mxu0 0.0
    %4256 = vmatpush1.msra.mxu0 0.0
    %4257 = vmatprep.subr.mxu0 0.0
    %4258 = vmatpush1.msra.mxu0 0.0
    %4259 = vmatprep.subr.mxu0 0.0
    %4260 = vmatpush1.msra.mxu0 0.0
    %4261 = vmatprep.subr.mxu0 0.0
    %4262 = vmatpush1.msra.mxu0 0.0
    %4263 = vmatprep.subr.mxu0 0.0
    %4264 = vmatpush1.msra.mxu0 0.0
    %4265 = vmatprep.subr.mxu0 0.0
    %4266 = vmatpush1.msra.mxu0 0.0
    %4267 = vmatprep.subr.mxu0 0.0
    %4268 = vmatpush1.msra.mxu0 0.0
    %4269 = vmatprep.mubr.f32.mxu0 0.0
    %4270 = vmatmul.mubr.f32.gmra.mrb[0].mxu0 %v4200
    %v4271 = vpop.f32.mrb[0].mxu0
    %v4272 = vadd.f32 %v4198, %v4271
    %v4273 = vpop.f32.mrb[0].mxu0
    %4274 = vmatprep.mubr.f32.mxu0 0.0
    %4275 = vmatmul.mubr.f32.gmra.mrb[0].mxu0 %v4203
    %v4276 = vpop.f32.mrb[0].mxu0
    %v4277 = vadd.f32 %v4198, %v4276
    %v4278 = vpop.f32.mrb[0].mxu0
    %4279 = vdwg.mxu0
    %v4280 = vadd.f32 %v2225, %v4272
    %v4281 = vadd.f32 %v2226, %v4277
    %v4282 = vsel %vm2033, %v4280, 0.0
    %4283 = vadd.xlane.f32.xlu0 %v4282
    %v4284 = vpop.xlane.xlu0 %4283
    %v4285 = vsel %vm2033, %v4281, 0.0
    %4286 = vadd.xlane.f32.xlu0 %v4285
    %v4287 = vpop.xlane.xlu0 %4286
    %v4288 = vmul.f32 %v4284, %v2148
    %v4289 = vmul.f32 %v4287, %v2148
    %v4290 = vsub.f32 %v4280, %v4288
    %v4291 = vsub.f32 %v4281, %v4289
    %v4292 = vmul.f32 %v4290, %v4290
    %v4293 = vmul.f32 %v4291, %v4291
    %v4294 = vsel %vm2033, %v4292, 0.0
    %4295 = vadd.xlane.f32.xlu0 %v4294
    %v4296 = vpop.xlane.xlu0 %4295
    %v4297 = vsel %vm2033, %v4293, 0.0
    %4298 = vadd.xlane.f32.xlu0 %v4297
    %v4299 = vpop.xlane.xlu0 %4298
    %v4300 = vmul.f32 %v4296, %v2148
    %v4301 = vmul.f32 %v4299, %v2148
    %v4302 = vadd.f32 %v4300, 1e-05
    %v4303 = vadd.f32 %v4301, 1e-05
    %v4304 = vrsqrt.pop %v4302
    %v4305 = vrsqrt.pop %v4303
    %v4306 = vmul.f32 %v4290, %v4304
    %v4307 = vmul.f32 %v4291, %v4305
    %4310 = vrot.lane.b32.xlu0 %v4280, 96
    %v4311 = vpop.permute.xlu0 %4310
    %4312 = vrot.lane.b32.xlu0 %v4281, 96
    %v4313 = vpop.permute.xlu0 %4312
    %v4316 = vsel %vm2033, %v4311, 0.0
    %4317 = vadd.xlane.f32.xlu0 %v4316
    %v4318 = vpop.xlane.xlu0 %4317
    %v4319 = vsel %vm2033, %v4313, 0.0
    %4320 = vadd.xlane.f32.xlu0 %v4319
    %v4321 = vpop.xlane.xlu0 %4320
    %v4322 = vmul.f32 %v4318, %v2148
    %v4323 = vmul.f32 %v4321, %v2148
    %v4324 = vsub.f32 %v4280, %v4322
    %v4325 = vsub.f32 %v4281, %v4323
    %v4326 = vmul.f32 %v4324, %v4324
    %v4327 = vmul.f32 %v4325, %v4325
    %4330 = vrot.lane.b32.xlu0 %v4326, 96
    %v4331 = vpop.permute.xlu0 %4330
    %4332 = vrot.lane.b32.xlu0 %v4327, 96
    %v4333 = vpop.permute.xlu0 %4332
    %v4336 = vsel %vm2033, %v4331, 0.0
    %4337 = vadd.xlane.f32.xlu0 %v4336
    %v4338 = vpop.xlane.xlu0 %4337
    %v4339 = vsel %vm2033, %v4333, 0.0
    %4340 = vadd.xlane.f32.xlu0 %v4339
    %v4341 = vpop.xlane.xlu0 %4340
    %v4342 = vmul.f32 %v4338, %v2148
    %v4343 = vmul.f32 %v4341, %v2148
    %v4344 = vadd.f32 %v4342, 1e-05
    %v4345 = vadd.f32 %v4343, 1e-05
    %v4346 = vrsqrt.pop %v4344
    %v4347 = vrsqrt.pop %v4345
    %v4348 = vmul.f32 %v4324, %v4346
    %v4349 = vmul.f32 %v4325, %v4347
    %v4350 = vsel %vm2033, %v4306, %v4348
    %v4351 = vsel %vm2033, %v4307, %v4349
    %v4352 = vld [vmem:[#allocation8 + $0x5] sm:$0x1]
    %v4353 = vlaneseq
    %v4354 = vshrl.u32 %v4353, 7
    %v4355 = vsub.s32 0, %v4354
    %v4356 = vrot.slane %v4352, %v4355
    %v4357 = vmul.f32 %v4350, %v4356
    %v4358 = vmul.f32 %v4351, %v4356
    %v4359 = vld [vmem:[#allocation8 + $0x8] sm:$0x1]
    %v4360 = vlaneseq
    %v4361 = vshrl.u32 %v4360, 7
    %v4362 = vsub.s32 0, %v4361
    %v4363 = vrot.slane %v4359, %v4362
    %v4364 = vadd.f32 %v4357, %v4363
    %v4365 = vadd.f32 %v4358, %v4363
    %v4366 = vld [vmem:[%s3] sm:$0xff]
    %v4367 = vld [vmem:[%s3 + $0x8] sm:$0xff]
    %v4368 = vld [vmem:[%s3 + $0x10] sm:$0xff]
    %v4369 = vld [vmem:[%s3 + $0x18] sm:$0xff]
    %v4370 = vld [vmem:[%s3 + $0x20] sm:$0xff]
    %v4371 = vld [vmem:[%s3 + $0x28] sm:$0xff]
    %v4372 = vld [vmem:[%s3 + $0x30] sm:$0xff]
    %v4373 = vld [vmem:[%s3 + $0x38] sm:$0xff]
    %v4374 = vld [vmem:[#allocation8 + $0x2] sm:$0x1]
    %v4375 = vlaneseq
    %v4376 = vshrl.u32 %v4375, 7
    %v4377 = vsub.s32 0, %v4376
    %v4378 = vrot.slane %v4374, %v4377
    %v4380 = vsel %vm108, %v4364, 0
    %v4383 = vsel %vm108, %v4365, 0
    %4385 = vmatprep.subr.mxu0 0.0
    %4386 = vmatpush1.msra.mxu0 %v4366
    %4387 = vmatprep.subr.mxu0 0.0
    %4388 = vmatpush1.msra.mxu0 %v4367
    %4389 = vmatprep.subr.mxu0 0.0
    %4390 = vmatpush1.msra.mxu0 %v4368
    %4391 = vmatprep.subr.mxu0 0.0
    %4392 = vmatpush1.msra.mxu0 %v4369
    %4393 = vmatprep.subr.mxu0 0.0
    %4394 = vmatpush1.msra.mxu0 %v4370
    %4395 = vmatprep.subr.mxu0 0.0
    %4396 = vmatpush1.msra.mxu0 %v4371
    %4397 = vmatprep.subr.mxu0 0.0
    %4398 = vmatpush1.msra.mxu0 %v4372
    %4399 = vmatprep.subr.mxu0 0.0
    %4400 = vmatpush1.msra.mxu0 %v4373
    %4401 = vmatprep.subr.mxu0 0.0
    %4402 = vmatpush1.msra.mxu0 0.0
    %4403 = vmatprep.subr.mxu0 0.0
    %4404 = vmatpush1.msra.mxu0 0.0
    %4405 = vmatprep.subr.mxu0 0.0
    %4406 = vmatpush1.msra.mxu0 0.0
    %4407 = vmatprep.subr.mxu0 0.0
    %4408 = vmatpush1.msra.mxu0 0.0
    %4409 = vmatprep.subr.mxu0 0.0
    %4410 = vmatpush1.msra.mxu0 0.0
    %4411 = vmatprep.subr.mxu0 0.0
    %4412 = vmatpush1.msra.mxu0 0.0
    %4413 = vmatprep.subr.mxu0 0.0
    %4414 = vmatpush1.msra.mxu0 0.0
    %4415 = vmatprep.subr.mxu0 0.0
    %4416 = vmatpush1.msra.mxu0 0.0
    %4417 = vmatprep.subr.mxu0 0.0
    %4418 = vmatpush1.msra.mxu0 0.0
    %4419 = vmatprep.subr.mxu0 0.0
    %4420 = vmatpush1.msra.mxu0 0.0
    %4421 = vmatprep.subr.mxu0 0.0
    %4422 = vmatpush1.msra.mxu0 0.0
    %4423 = vmatprep.subr.mxu0 0.0
    %4424 = vmatpush1.msra.mxu0 0.0
    %4425 = vmatprep.subr.mxu0 0.0
    %4426 = vmatpush1.msra.mxu0 0.0
    %4427 = vmatprep.subr.mxu0 0.0
    %4428 = vmatpush1.msra.mxu0 0.0
    %4429 = vmatprep.subr.mxu0 0.0
    %4430 = vmatpush1.msra.mxu0 0.0
    %4431 = vmatprep.subr.mxu0 0.0
    %4432 = vmatpush1.msra.mxu0 0.0
    %4433 = vmatprep.subr.mxu0 0.0
    %4434 = vmatpush1.msra.mxu0 0.0
    %4435 = vmatprep.subr.mxu0 0.0
    %4436 = vmatpush1.msra.mxu0 0.0
    %4437 = vmatprep.subr.mxu0 0.0
    %4438 = vmatpush1.msra.mxu0 0.0
    %4439 = vmatprep.subr.mxu0 0.0
    %4440 = vmatpush1.msra.mxu0 0.0
    %4441 = vmatprep.subr.mxu0 0.0
    %4442 = vmatpush1.msra.mxu0 0.0
    %4443 = vmatprep.subr.mxu0 0.0
    %4444 = vmatpush1.msra.mxu0 0.0
    %4445 = vmatprep.subr.mxu0 0.0
    %4446 = vmatpush1.msra.mxu0 0.0
    %4447 = vmatprep.subr.mxu0 0.0
    %4448 = vmatpush1.msra.mxu0 0.0
    %4449 = vmatprep.mubr.f32.mxu0 0.0
    %4450 = vmatmul.mubr.f32.gmra.mrb[0].mxu0 %v4380
    %v4451 = vpop.f32.mrb[0].mxu0
    %v4452 = vadd.f32 %v4378, %v4451
    %v4453 = vpop.f32.mrb[0].mxu0
    %4454 = vmatprep.mubr.f32.mxu0 0.0
    %4455 = vmatmul.mubr.f32.gmra.mrb[0].mxu0 %v4383
    %v4456 = vpop.f32.mrb[0].mxu0
    %v4457 = vadd.f32 %v4378, %v4456
    %v4458 = vpop.f32.mrb[0].mxu0
    %4459 = vdwg.mxu0
    %v4460 = vmax.f32 %v4452, 0.0
    %v4461 = vmax.f32 %v4457, 0.0
    %v4462 = vld [vmem:[#allocation7] sm:$0xff]
    %v4463 = vld [vmem:[#allocation7 + $0x8] sm:$0xff]
    %v4464 = vld [vmem:[#allocation7 + $0x10] sm:$0xff]
    %v4465 = vld [vmem:[#allocation7 + $0x18] sm:$0xff]
    %v4466 = vld [vmem:[#allocation7 + $0x20] sm:$0xff]
    %v4467 = vld [vmem:[#allocation7 + $0x28] sm:$0xff]
    %v4468 = vld [vmem:[#allocation7 + $0x30] sm:$0xff]
    %v4469 = vld [vmem:[#allocation7 + $0x38] sm:$0xff]
    %v4470 = vld [vmem:[#allocation7 + $0x40] sm:$0xff]
    %v4471 = vld [vmem:[#allocation7 + $0x48] sm:$0xff]
    %v4472 = vld [vmem:[#allocation7 + $0x50] sm:$0xff]
    %v4473 = vld [vmem:[#allocation7 + $0x58] sm:$0xff]
    %v4474 = vld [vmem:[#allocation7 + $0x60] sm:$0xff]
    %v4475 = vld [vmem:[#allocation7 + $0x68] sm:$0xff]
    %v4476 = vld [vmem:[#allocation7 + $0x70] sm:$0xff]
    %v4477 = vld [vmem:[#allocation7 + $0x78] sm:$0xff]
    %v4478 = vld [vmem:[#allocation8 + $0x3] sm:$0x1]
    %v4479 = vlaneseq
    %v4480 = vshrl.u32 %v4479, 7
    %v4481 = vsub.s32 0, %v4480
    %v4482 = vrot.slane %v4478, %v4481
    %4483 = vmatprep.subr.mxu0 0.0
    %4484 = vmatpush1.msra.mxu0 %v4462
    %4485 = vmatprep.subr.mxu0 0.0
    %4486 = vmatpush1.msra.mxu0 %v4463
    %4487 = vmatprep.subr.mxu0 0.0
    %4488 = vmatpush1.msra.mxu0 %v4464
    %4489 = vmatprep.subr.mxu0 0.0
    %4490 = vmatpush1.msra.mxu0 %v4465
    %4491 = vmatprep.subr.mxu0 0.0
    %4492 = vmatpush1.msra.mxu0 %v4466
    %4493 = vmatprep.subr.mxu0 0.0
    %4494 = vmatpush1.msra.mxu0 %v4467
    %4495 = vmatprep.subr.mxu0 0.0
    %4496 = vmatpush1.msra.mxu0 %v4468
    %4497 = vmatprep.subr.mxu0 0.0
    %4498 = vmatpush1.msra.mxu0 %v4469
    %4499 = vmatprep.subr.mxu0 0.0
    %4500 = vmatpush1.msra.mxu0 %v4470
    %4501 = vmatprep.subr.mxu0 0.0
    %4502 = vmatpush1.msra.mxu0 %v4471
    %4503 = vmatprep.subr.mxu0 0.0
    %4504 = vmatpush1.msra.mxu0 %v4472
    %4505 = vmatprep.subr.mxu0 0.0
    %4506 = vmatpush1.msra.mxu0 %v4473
    %4507 = vmatprep.subr.mxu0 0.0
    %4508 = vmatpush1.msra.mxu0 %v4474
    %4509 = vmatprep.subr.mxu0 0.0
    %4510 = vmatpush1.msra.mxu0 %v4475
    %4511 = vmatprep.subr.mxu0 0.0
    %4512 = vmatpush1.msra.mxu0 %v4476
    %4513 = vmatprep.subr.mxu0 0.0
    %4514 = vmatpush1.msra.mxu0 %v4477
    %4515 = vmatprep.subr.mxu0 0.0
    %4516 = vmatpush1.msra.mxu0 0.0
    %4517 = vmatprep.subr.mxu0 0.0
    %4518 = vmatpush1.msra.mxu0 0.0
    %4519 = vmatprep.subr.mxu0 0.0
    %4520 = vmatpush1.msra.mxu0 0.0
    %4521 = vmatprep.subr.mxu0 0.0
    %4522 = vmatpush1.msra.mxu0 0.0
    %4523 = vmatprep.subr.mxu0 0.0
    %4524 = vmatpush1.msra.mxu0 0.0
    %4525 = vmatprep.subr.mxu0 0.0
    %4526 = vmatpush1.msra.mxu0 0.0
    %4527 = vmatprep.subr.mxu0 0.0
    %4528 = vmatpush1.msra.mxu0 0.0
    %4529 = vmatprep.subr.mxu0 0.0
    %4530 = vmatpush1.msra.mxu0 0.0
    %4531 = vmatprep.subr.mxu0 0.0
    %4532 = vmatpush1.msra.mxu0 0.0
    %4533 = vmatprep.subr.mxu0 0.0
    %4534 = vmatpush1.msra.mxu0 0.0
    %4535 = vmatprep.subr.mxu0 0.0
    %4536 = vmatpush1.msra.mxu0 0.0
    %4537 = vmatprep.subr.mxu0 0.0
    %4538 = vmatpush1.msra.mxu0 0.0
    %4539 = vmatprep.subr.mxu0 0.0
    %4540 = vmatpush1.msra.mxu0 0.0
    %4541 = vmatprep.subr.mxu0 0.0
    %4542 = vmatpush1.msra.mxu0 0.0
    %4543 = vmatprep.subr.mxu0 0.0
    %4544 = vmatpush1.msra.mxu0 0.0
    %4545 = vmatprep.subr.mxu0 0.0
    %4546 = vmatpush1.msra.mxu0 0.0
    %4547 = vmatprep.mubr.f32.mxu0 0.0
    %4548 = vmatmul.mubr.f32.gmra.mrb[0].mxu0 %v4460
    %v4549 = vpop.f32.mrb[0].mxu0
    %v4550 = vadd.f32 %v4482, %v4549
    %v4551 = vpop.f32.mrb[0].mxu0
    %4552 = vmatprep.mubr.f32.mxu0 0.0
    %4553 = vmatmul.mubr.f32.gmra.mrb[0].mxu0 %v4461
    %v4554 = vpop.f32.mrb[0].mxu0
    %v4555 = vadd.f32 %v4482, %v4554
    %v4556 = vpop.f32.mrb[0].mxu0
    %4557 = vdwg.mxu0
    %v4558 = vadd.f32 %v4364, %v4550
    %v4559 = vadd.f32 %v4365, %v4555
    %v4560 = vsel %vm2033, %v4558, 0.0
    %4561 = vadd.xlane.f32.xlu0 %v4560
    %v4562 = vpop.xlane.xlu0 %4561
    %v4563 = vsel %vm2033, %v4559, 0.0
    %4564 = vadd.xlane.f32.xlu0 %v4563
    %v4565 = vpop.xlane.xlu0 %4564
    %v4566 = vmul.f32 %v4562, %v2148
    %v4567 = vmul.f32 %v4565, %v2148
    %v4568 = vsub.f32 %v4558, %v4566
    %v4569 = vsub.f32 %v4559, %v4567
    %v4570 = vmul.f32 %v4568, %v4568
    %v4571 = vmul.f32 %v4569, %v4569
    %v4572 = vsel %vm2033, %v4570, 0.0
    %4573 = vadd.xlane.f32.xlu0 %v4572
    %v4574 = vpop.xlane.xlu0 %4573
    %v4575 = vsel %vm2033, %v4571, 0.0
    %4576 = vadd.xlane.f32.xlu0 %v4575
    %v4577 = vpop.xlane.xlu0 %4576
    %v4578 = vmul.f32 %v4574, %v2148
    %v4579 = vmul.f32 %v4577, %v2148
    %v4580 = vadd.f32 %v4578, 1e-05
    %v4581 = vadd.f32 %v4579, 1e-05
    %v4582 = vrsqrt.pop %v4580
    %v4583 = vrsqrt.pop %v4581
    %v4584 = vmul.f32 %v4568, %v4582
    %v4585 = vmul.f32 %v4569, %v4583
    %4588 = vrot.lane.b32.xlu0 %v4558, 96
    %v4589 = vpop.permute.xlu0 %4588
    %4590 = vrot.lane.b32.xlu0 %v4559, 96
    %v4591 = vpop.permute.xlu0 %4590
    %v4594 = vsel %vm2033, %v4589, 0.0
    %4595 = vadd.xlane.f32.xlu0 %v4594
    %v4596 = vpop.xlane.xlu0 %4595
    %v4597 = vsel %vm2033, %v4591, 0.0
    %4598 = vadd.xlane.f32.xlu0 %v4597
    %v4599 = vpop.xlane.xlu0 %4598
    %v4600 = vmul.f32 %v4596, %v2148
    %v4601 = vmul.f32 %v4599, %v2148
    %v4602 = vsub.f32 %v4558, %v4600
    %v4603 = vsub.f32 %v4559, %v4601
    %v4604 = vmul.f32 %v4602, %v4602
    %v4605 = vmul.f32 %v4603, %v4603
    %4608 = vrot.lane.b32.xlu0 %v4604, 96
    %v4609 = vpop.permute.xlu0 %4608
    %4610 = vrot.lane.b32.xlu0 %v4605, 96
    %v4611 = vpop.permute.xlu0 %4610
    %v4614 = vsel %vm2033, %v4609, 0.0
    %4615 = vadd.xlane.f32.xlu0 %v4614
    %v4616 = vpop.xlane.xlu0 %4615
    %v4617 = vsel %vm2033, %v4611, 0.0
    %4618 = vadd.xlane.f32.xlu0 %v4617
    %v4619 = vpop.xlane.xlu0 %4618
    %v4620 = vmul.f32 %v4616, %v2148
    %v4621 = vmul.f32 %v4619, %v2148
    %v4622 = vadd.f32 %v4620, 1e-05
    %v4623 = vadd.f32 %v4621, 1e-05
    %v4624 = vrsqrt.pop %v4622
    %v4625 = vrsqrt.pop %v4623
    %v4626 = vmul.f32 %v4602, %v4624
    %v4627 = vmul.f32 %v4603, %v4625
    %v4628 = vsel %vm2033, %v4584, %v4626
    %v4629 = vsel %vm2033, %v4585, %v4627
    %v4630 = vld [vmem:[#allocation8 + $0x6] sm:$0x1]
    %v4631 = vlaneseq
    %v4632 = vshrl.u32 %v4631, 7
    %v4633 = vsub.s32 0, %v4632
    %v4634 = vrot.slane %v4630, %v4633
    %v4635 = vmul.f32 %v4628, %v4634
    %v4636 = vmul.f32 %v4629, %v4634
    %v4637 = vld [vmem:[#allocation8 + $0x9] sm:$0x1]
    %v4638 = vlaneseq
    %v4639 = vshrl.u32 %v4638, 7
    %v4640 = vsub.s32 0, %v4639
    %v4641 = vrot.slane %v4637, %v4640
    %v4642 = vadd.f32 %v4635, %v4641
    %v4643 = vadd.f32 %v4636, %v4641
    %4644 = vst.msk [vmem:[#allocation10] sm:$0xff] %vm2033, %v4642
    %4645 = vst.msk [vmem:[#allocation10 + $0x8] sm:$0xff] %vm2033, %v4643
    %4648 = vrot.lane.b32.xlu0 %v4642, 96
    %v4649 = vpop.permute.xlu0 %4648
    %4650 = vrot.lane.b32.xlu0 %v4643, 96
    %v4651 = vpop.permute.xlu0 %4650
    %4654 = vst.msk [vmem:[#allocation11] sm:$0xff] %vm2033, %v4649
    %4655 = vst.msk [vmem:[#allocation11 + $0x8] sm:$0xff] %vm2033, %v4651
    // Predicated region
    $region42: #{_lambda_.1} parent=1 // pred_check
      _
    $region43: #{_lambda_.1} parent=1 // pred_check_branch
      %4657 = sbr.rel (0) target = $region45
    $region44: #{_lambda_.1} parent=1 // pred_region
      %s4659 = ssub.s32 256, 256
      %4660 = vsyncadd [#allocation4], %s4659
      %s4661 = sshll.u32 [#allocation10], 4
      %s4662 = int_to_ptr.vmem [resolvable:$true] %s4661
      %4667 = dma.vmem_to_hbm [thread:$0]  %s4662, 256, %s6, [#allocation4], 128, 128, 8
    $region45: #{_lambda_.1} parent=1 // pred_fallthru
      _
    // Predicated region
    $region46: #{_lambda_.1} parent=1 // pred_check
      _
    $region47: #{_lambda_.1} parent=1 // pred_check_branch
      %4669 = sbr.rel (0) target = $region49
    $region48: #{_lambda_.1} parent=1 // pred_region
      %s4671 = ssub.s32 256, 256
      %4672 = vsyncadd [#allocation12], %s4671
      %s4673 = sshll.u32 [#allocation11], 4
      %s4674 = int_to_ptr.vmem [resolvable:$true] %s4673
      %4679 = dma.vmem_to_hbm [thread:$0]  %s4674, 256, %s7, [#allocation12], 128, 128, 8
    $region49: #{_lambda_.1} parent=1 // pred_fallthru
      _
    // Predicated region
    $region50: #{_lambda_.1} parent=1 // pred_check
      _
    $region51: #{_lambda_.1} parent=1 // pred_check_branch
      %4681 = sbr.rel (0) target = $region53
    $region52: #{_lambda_.1} parent=1 // pred_region
      %4682 = dma.done [#allocation4], 256
    $region53: #{_lambda_.1} parent=1 // pred_fallthru
      _
    // Predicated region
    $region54: #{_lambda_.1} parent=1 // pred_check
      _
    $region55: #{_lambda_.1} parent=1 // pred_check_branch
      %4684 = sbr.rel (0) target = $region57
    $region56: #{_lambda_.1} parent=1 // pred_region
      %4685 = dma.done [#allocation12], 256
    $region57: #{_lambda_.1} parent=1 // pred_fallthru
      _
    %4686 = vsyncpa [#allocation3], 1
    %4687 = vsyncpa [#allocation6], 1
    %4688 = vsyncpa [#allocation9], 1
    %4689 = vsyncpa [#allocation4], 1
    %4690 = vsyncpa [#allocation12], 1

</llo_original>
